<compile_context>
chip_gen: v5e
topology: v5e:2x2
jax: 0.10.0
libtpu: 0.0.40
codegen_flags: <defaults>
</compile_context>

<pallas_src>
import functools

import jax
import jax.numpy as jnp
from jax.experimental import pallas as pl
from jax.experimental.pallas import tpu as pltpu


def _round_up(a, b):
    return (a + b - 1) // b * b


# ----------------------------------------------------------------------------
# Host-side ROIAlign metadata: per-ROI bilinear pooling matrices (boxes only).
# Matches maskrcnn_benchmark ROIAlign (aligned=False): clamp-to-0, edge clamp,
# (-1, size) validity mask, mean over sr*sr samples.
# ----------------------------------------------------------------------------
def _axis_interp_matrix(coords, size, sr):
    # coords: (R, P, sr) raw sample coordinates along one axis -> (R, P, size)
    valid = ((coords >= -1.0) & (coords <= size)).astype(coords.dtype)
    c = jnp.where(coords <= 0.0, 0.0, coords)
    low0 = jnp.floor(c).astype(jnp.int32)
    at_edge = low0 >= size - 1
    low = jnp.where(at_edge, size - 1, low0)
    high = jnp.where(at_edge, size - 1, low0 + 1)
    c = jnp.where(at_edge, low.astype(coords.dtype), c)
    frac = c - low.astype(coords.dtype)
    w_low = (1.0 - frac) * valid
    w_high = frac * valid
    oh_low = jax.nn.one_hot(low, size, dtype=coords.dtype)       # (R, P, sr, size)
    oh_high = jax.nn.one_hot(high, size, dtype=coords.dtype)
    m = w_low[..., None] * oh_low + w_high[..., None] * oh_high
    return m.sum(axis=2) / sr                                     # (R, P, size)


def build_roialign_pool(boxes, H, W, P, sr, scale):
    """boxes: (N, Rp, 4) xyxy in image coords -> poolT (N*Rp, P*P, H*W) f32."""
    N, Rp, _ = boxes.shape
    b = boxes.reshape(N * Rp, 4)
    x1 = b[:, 0] * scale
    y1 = b[:, 1] * scale
    x2 = b[:, 2] * scale
    y2 = b[:, 3] * scale
    roi_w = jnp.maximum(x2 - x1, 1.0)
    roi_h = jnp.maximum(y2 - y1, 1.0)
    bin_w = roi_w / P
    bin_h = roi_h / P
    off = (jnp.arange(P, dtype=jnp.float32)[:, None]
           + (jnp.arange(sr, dtype=jnp.float32)[None, :] + 0.5) / sr)    # (P, sr)
    ys = y1[:, None, None] + off[None] * bin_h[:, None, None]            # (R, P, sr)
    xs = x1[:, None, None] + off[None] * bin_w[:, None, None]
    My = _axis_interp_matrix(ys, H, sr)                                  # (R, P, H)
    Mx = _axis_interp_matrix(xs, W, sr)                                  # (R, P, W)
    # poolT[r, p*P+q, h*W+w] = My[r,p,h] * Mx[r,q,w]   (p = ph, q = pw)
    return jnp.einsum("rph,rqw->rpqhw", My, Mx).reshape(N * Rp, P * P, H * W)


# ----------------------------------------------------------------------------
# Single fused kernel:  per-image 1x1 conv (cached) -> ROIAlign (TR ROIs/step)
#                        -> fc6+ReLU -> fc7+ReLU
# ----------------------------------------------------------------------------
def _make_kernel(TR, PP, D1):
    def kernel(x_ref, wc_ref, bc_ref, poolT_ref, w6_ref, b6_ref, w7_ref, b7_ref,
               o_ref, g_ref):
        # x_ref    : (1, HW, C_in)   bf16, image of the current grid row (n)
        # wc_ref   : (C_in, C_out)   bf16 concatenated [conv1 | conv2] 1x1 weights
        # bc_ref   : (1, C_out)      f32 concatenated bias
        # poolT_ref: (1, PP*TR, HW)  bf16 pooling matrices, rows p-major / t-minor
        # w6_ref   : (PP, C_out, D1) bf16 fc6 weights regrouped by spatial bin
        # w7_ref   : (D1, D2)        bf16
        # o_ref    : (1, TR, D2)     f32 final features for the TR ROIs
        # g_ref    : (HW, C_out)     bf16 VMEM scratch: cached conv+ReLU output

        # Recompute the shared 1x1 conv only on the first ROI group of an image.
        @pl.when(pl.program_id(1) == 0)
        def _():
            g = jnp.dot(x_ref[0], wc_ref[...],
                        preferred_element_type=jnp.float32)       # (HW, C_out)
            g_ref[...] = jnp.maximum(g + bc_ref[...], 0.0).astype(g_ref.dtype)

        # ROIAlign for TR ROIs at once, lane-dense N=512 MXU matmul.
        pooled = jnp.dot(poolT_ref[0], g_ref[...],
                         preferred_element_type=jnp.float32)      # (PP*TR, C_out)
        pooled = pooled.astype(jnp.bfloat16)

        # fc6: contract over (spatial bin p, channel c) with no flatten/relayout.
        h = jnp.zeros((TR, D1), jnp.float32)
        for p in range(PP):                                       # static, unrolled
            h = h + jnp.dot(pooled[p * TR:(p + 1) * TR, :], w6_ref[p],
                            preferred_element_type=jnp.float32)
        h = jnp.maximum(h + b6_ref[...], 0.0).astype(jnp.bfloat16)

        # fc7 + ReLU.
        y = jnp.dot(h, w7_ref[...], preferred_element_type=jnp.float32)
        o_ref[0] = jnp.maximum(y + b7_ref[...], 0.0).astype(o_ref.dtype)

    return kernel


# ----------------------------------------------------------------------------
# Full forward:  x1=relu(conv1(x)); x2=relu(conv2(x)); cat; ROIAlign;
#                flatten; relu(fc6); relu(fc7)
# ----------------------------------------------------------------------------
def pva_box_feature_extractor(x_nchw, boxes, params, *, resolution,
                              spatial_scale, sampling_ratio):
    if sampling_ratio <= 0:
        raise NotImplementedError(
            "sampling_ratio=0 (adaptive sampling grid) is not supported")

    N, C_in, H, W = x_nchw.shape
    P = resolution
    PP = P * P
    HW = H * W
    Nb, R_img, _ = boxes.shape
    assert Nb == N, (Nb, N)

    # ROI packing: TR ROIs per grid step so the pooling matmul's M-dim ~ 128.
    TR = max(1, min(R_img, max(1, 128 // PP)))
    R_pad = _round_up(R_img, TR)
    G = R_pad // TR
    if R_pad != R_img:
        boxes = jnp.pad(boxes, ((0, 0), (0, R_pad - R_img), (0, 0)))

    # One-time weight prep (constant-foldable under jit).
    w_cat = jnp.concatenate([params["w1"], params["w2"]], axis=1)     # (C_in, 512)
    b_cat = jnp.concatenate([params["b1"], params["b2"]], axis=0)     # (512,)
    C_out = w_cat.shape[1]
    wc = w_cat.astype(jnp.bfloat16)
    bc = b_cat.reshape(1, C_out).astype(jnp.float32)

    D1 = params["w6"].shape[1]
    D2 = params["w7"].shape[1]
    # fc6 rows are in PyTorch's (c, y, x) flatten order; regroup to (pq, c, d)
    # so the (pq, c)-ordered pooled features need no runtime permutation.
    w6_3d = (params["w6"].reshape(C_out, PP, D1).transpose(1, 0, 2)
             .astype(jnp.bfloat16))                                   # (PP, C_out, D1)
    b6 = params["b6"].reshape(1, D1).astype(jnp.float32)
    w7 = params["w7"].astype(jnp.bfloat16)
    b7 = params["b7"].reshape(1, D2).astype(jnp.float32)

    # Per-ROI pooling matrices from boxes only; group TR ROIs per step with
    # p-major row order (row = p*TR + t) so fc6 can take contiguous row slices.
    poolT = build_roialign_pool(boxes, H, W, P, sampling_ratio, spatial_scale)
    poolT = (poolT.reshape(N, G, TR, PP, HW).transpose(0, 1, 3, 2, 4)
             .reshape(N * G, PP * TR, HW).astype(jnp.bfloat16))

    # Lane-dense image layout: one relayout per image, amortized over all ROIs.
    x_t = jnp.transpose(x_nchw.reshape(N, C_in, HW), (0, 2, 1)).astype(jnp.bfloat16)

    kernel = _make_kernel(TR, PP, D1)
    out = pl.pallas_call(
        kernel,
        out_shape=jax.ShapeDtypeStruct((N * G, TR, D2), jnp.float32),
        grid_spec=pltpu.PrefetchScalarGridSpec(
            num_scalar_prefetch=0,
            grid=(N, G),                                   # (image, ROI group)
            in_specs=[
                pl.BlockSpec((1, HW, C_in), lambda n, g: (n, 0, 0)),
                pl.BlockSpec((C_in, C_out), lambda n, g: (0, 0)),       # resident
                pl.BlockSpec((1, C_out), lambda n, g: (0, 0)),          # resident
                pl.BlockSpec((1, PP * TR, HW), lambda n, g: (n * G + g, 0, 0)),
                pl.BlockSpec((PP, C_out, D1), lambda n, g: (0, 0, 0)),  # resident
                pl.BlockSpec((1, D1), lambda n, g: (0, 0)),             # resident
                pl.BlockSpec((D1, D2), lambda n, g: (0, 0)),            # resident
                pl.BlockSpec((1, D2), lambda n, g: (0, 0)),             # resident
            ],
            out_specs=pl.BlockSpec((1, TR, D2), lambda n, g: (n * G + g, 0, 0)),
            scratch_shapes=[pltpu.VMEM((HW, C_out), jnp.bfloat16)],
        ),
        compiler_params=pltpu.CompilerParams(
            dimension_semantics=("parallel", "arbitrary"),
            vmem_limit_bytes=48 * 1024 * 1024),
    )(x_t, wc, bc, poolT, w6_3d, b6, w7, b7)

    # Drop ROI padding (no-op when R_img % TR == 0); both reshapes keep the
    # lane-dense 128-wide last dim, so no relayout pass is needed.
    out = out.reshape(N, R_pad, D2)[:, :R_img].reshape(N * R_img, D2)
    return out


if __name__ == "__main__":
    # Small synthetic config consistent with the module.
    N, C_in, H, W = 2, 32, 16, 16
    resolution = 4                       # POOLER_RESOLUTION
    spatial_scale = 0.25                 # POOLER_SCALES = (0.25,)
    sampling_ratio = 2                   # POOLER_SAMPLING_RATIO
    rep_size = 128                       # MLP_HEAD_DIM
    rois_per_img = 4
    in_size = 512 * resolution * resolution

    key = jax.random.PRNGKey(0)
    ks = jax.random.split(key, 10)

    x_nchw = jax.random.normal(ks[0], (N, C_in, H, W), jnp.float32)

    params = {
        # 1x1 conv weights stored as (C_in, C_out); fc weights as (in, out);
        # fc6 rows are in PyTorch's channel-major (c, y, x) flatten order.
        "w1": jax.random.normal(ks[1], (C_in, 128), jnp.float32) * 0.05,
        "b1": jax.random.normal(ks[2], (128,), jnp.float32) * 0.05,
        "w2": jax.random.normal(ks[3], (C_in, 384), jnp.float32) * 0.05,
        "b2": jax.random.normal(ks[4], (384,), jnp.float32) * 0.05,
        "w6": jax.random.normal(ks[5], (in_size, rep_size), jnp.float32) * 0.02,
        "b6": jax.random.normal(ks[6], (rep_size,), jnp.float32) * 0.02,
        "w7": jax.random.normal(ks[7], (rep_size, rep_size), jnp.float32) * 0.02,
        "b7": jax.random.normal(ks[8], (rep_size,), jnp.float32) * 0.02,
    }

    # Proposals: per-image xyxy boxes in image coordinates (image = H/scale).
    img_size = H / spatial_scale
    raw = jax.random.uniform(ks[9], (N, rois_per_img, 4),
                             minval=0.0, maxval=img_size, dtype=jnp.float32)
    x1y1 = jnp.minimum(raw[..., :2], raw[..., 2:])
    x2y2 = jnp.maximum(raw[..., :2], raw[..., 2:])
    boxes = jnp.concatenate([x1y1, x2y2], axis=-1)            # (N, rois_per_img, 4)

    fwd = jax.jit(functools.partial(
        pva_box_feature_extractor,
        resolution=resolution,
        spatial_scale=spatial_scale,
        sampling_ratio=sampling_ratio))

    out = fwd(x_nchw, boxes, params)
    jax.block_until_ready(out)
    assert out.shape == (N * rois_per_img, rep_size), out.shape
    assert bool(jnp.all(jnp.isfinite(out)))
    print("KERNEL_OK")
</pallas_src>

<mosaic_0001>
module attributes {stable_mosaic.version = 11 : i64} {
  func.func @kernel(%arg0: i32, %arg1: i32, %arg2: memref<1x256x32xbf16, #tpu.memory_space<vmem>>, %arg3: memref<32x512xbf16, #tpu.memory_space<vmem>>, %arg4: memref<1x512xf32, #tpu.memory_space<vmem>>, %arg5: memref<1x64x256xbf16, #tpu.memory_space<vmem>>, %arg6: memref<16x512x128xbf16, #tpu.memory_space<vmem>>, %arg7: memref<1x128xf32, #tpu.memory_space<vmem>>, %arg8: memref<128x128xbf16, #tpu.memory_space<vmem>>, %arg9: memref<1x128xf32, #tpu.memory_space<vmem>>, %arg10: memref<1x4x128xf32, #tpu.memory_space<vmem>>, %arg11: memref<256x512xbf16, #tpu.memory_space<vmem>>) attributes {dimension_semantics = [#tpu.dimension_semantics<parallel>, #tpu.dimension_semantics<arbitrary>], iteration_bounds = array<i64: 2, 1>, scalar_prefetch = 0 : i64, scratch_operands = 1 : i64, tpu.core_type = #tpu.core_type<tc>, window_params = [{transform_indices = @transform_0, window_bounds = array<i64: 1, 256, 32>}, {pipeline_mode = #tpu.pipeline_mode<synchronous>, transform_indices = @transform_1, window_bounds = array<i64: 32, 512>}, {pipeline_mode = #tpu.pipeline_mode<synchronous>, transform_indices = @transform_2, window_bounds = array<i64: 1, 512>}, {transform_indices = @transform_3, window_bounds = array<i64: 1, 64, 256>}, {pipeline_mode = #tpu.pipeline_mode<synchronous>, transform_indices = @transform_4, window_bounds = array<i64: 16, 512, 128>}, {pipeline_mode = #tpu.pipeline_mode<synchronous>, transform_indices = @transform_5, window_bounds = array<i64: 1, 128>}, {pipeline_mode = #tpu.pipeline_mode<synchronous>, transform_indices = @transform_6, window_bounds = array<i64: 128, 128>}, {pipeline_mode = #tpu.pipeline_mode<synchronous>, transform_indices = @transform_7, window_bounds = array<i64: 1, 128>}, {transform_indices = @transform_8, window_bounds = array<i64: 1, 4, 128>}]} {
    %c0_i32 = arith.constant 0 : i32
    %0 = arith.cmpi eq, %arg1, %c0_i32 : i32
    %1 = arith.extui %0 : i1 to i32
    %c0_i32_0 = arith.constant 0 : i32
    %2 = arith.cmpi ne, %1, %c0_i32_0 : i32
    scf.if %2 {
      %c0_67 = arith.constant 0 : index
      %c0_68 = arith.constant 0 : index
      %c0_69 = arith.constant 0 : index
      %105 = vector.load %arg2[%c0_67, %c0_68, %c0_69] : memref<1x256x32xbf16, #tpu.memory_space<vmem>>, vector<1x256x32xbf16>
      %106 = vector.shape_cast %105 : vector<1x256x32xbf16> to vector<256x32xbf16>
      %c0_70 = arith.constant 0 : index
      %c0_71 = arith.constant 0 : index
      %107 = vector.load %arg3[%c0_70, %c0_71] : memref<32x512xbf16, #tpu.memory_space<vmem>>, vector<32x512xbf16>
      %cst_72 = arith.constant dense<0.000000e+00> : vector<256x512xf32>
      %108 = tpu.matmul %106, %107, %cst_72 {dimension_numbers = #tpu.dot_dimension_numbers<[1], [0], [0], [1], [0, 0, 1, 1], [], []>} : vector<256x32xbf16>, vector<32x512xbf16>, vector<256x512xf32> -> vector<256x512xf32>
      %c0_73 = arith.constant 0 : index
      %c0_74 = arith.constant 0 : index
      %109 = vector.load %arg4[%c0_73, %c0_74] : memref<1x512xf32, #tpu.memory_space<vmem>>, vector<1x512xf32>
      %110 = vector.broadcast %109 : vector<1x512xf32> to vector<256x512xf32>
      %111 = arith.addf %108, %110 : vector<256x512xf32>
      %cst_75 = arith.constant 0.000000e+00 : f32
      %112 = vector.broadcast %cst_75 : f32 to vector<256x512xf32>
      %113 = arith.maximumf %111, %112 : vector<256x512xf32>
      %114 = arith.truncf %113 : vector<256x512xf32> to vector<256x512xbf16>
      %c0_76 = arith.constant 0 : index
      %c0_77 = arith.constant 0 : index
      %115 = vector.load %arg11[%c0_76, %c0_77] : memref<256x512xbf16, #tpu.memory_space<vmem>>, vector<256x512xbf16>
      tpu.vector_store %arg11[%c0_76, %c0_77], %114 {strides = array<i32>} : memref<256x512xbf16, #tpu.memory_space<vmem>>, vector<256x512xbf16>,
    } else {
    }
    %c0 = arith.constant 0 : index
    %c0_1 = arith.constant 0 : index
    %c0_2 = arith.constant 0 : index
    %3 = vector.load %arg5[%c0, %c0_1, %c0_2] : memref<1x64x256xbf16, #tpu.memory_space<vmem>>, vector<1x64x256xbf16>
    %4 = vector.shape_cast %3 : vector<1x64x256xbf16> to vector<64x256xbf16>
    %c0_3 = arith.constant 0 : index
    %c0_4 = arith.constant 0 : index
    %5 = vector.load %arg11[%c0_3, %c0_4] : memref<256x512xbf16, #tpu.memory_space<vmem>>, vector<256x512xbf16>
    %cst = arith.constant dense<0.000000e+00> : vector<64x512xf32>
    %6 = tpu.matmul %4, %5, %cst {dimension_numbers = #tpu.dot_dimension_numbers<[1], [0], [0], [1], [0, 0, 1, 1], [], []>} : vector<64x256xbf16>, vector<256x512xbf16>, vector<64x512xf32> -> vector<64x512xf32>
    %7 = arith.truncf %6 : vector<64x512xf32> to vector<64x512xbf16>
    %cst_5 = arith.constant 0.000000e+00 : f32
    %8 = vector.broadcast %cst_5 : f32 to vector<4x128xf32>
    %9 = vector.extract_strided_slice %7 {offsets = [0, 0], sizes = [4, 512], strides = [1, 1]} : vector<64x512xbf16> to vector<4x512xbf16>
    %c0_6 = arith.constant 0 : index
    %c0_7 = arith.constant 0 : index
    %c0_8 = arith.constant 0 : index
    %10 = vector.load %arg6[%c0_6, %c0_7, %c0_8] : memref<16x512x128xbf16, #tpu.memory_space<vmem>>, vector<1x512x128xbf16>
    %11 = vector.shape_cast %10 : vector<1x512x128xbf16> to vector<512x128xbf16>
    %cst_9 = arith.constant dense<0.000000e+00> : vector<4x128xf32>
    %12 = tpu.matmul %9, %11, %cst_9 {dimension_numbers = #tpu.dot_dimension_numbers<[1], [0], [0], [1], [0, 0, 1, 1], [], []>} : vector<4x512xbf16>, vector<512x128xbf16>, vector<4x128xf32> -> vector<4x128xf32>
    %13 = arith.addf %8, %12 : vector<4x128xf32>
    %14 = vector.extract_strided_slice %7 {offsets = [4, 0], sizes = [4, 512], strides = [1, 1]} : vector<64x512xbf16> to vector<4x512xbf16>
    %c1 = arith.constant 1 : index
    %c0_10 = arith.constant 0 : index
    %c0_11 = arith.constant 0 : index
    %15 = vector.load %arg6[%c1, %c0_10, %c0_11] : memref<16x512x128xbf16, #tpu.memory_space<vmem>>, vector<1x512x128xbf16>
    %16 = vector.shape_cast %15 : vector<1x512x128xbf16> to vector<512x128xbf16>
    %cst_12 = arith.constant dense<0.000000e+00> : vector<4x128xf32>
    %17 = tpu.matmul %14, %16, %cst_12 {dimension_numbers = #tpu.dot_dimension_numbers<[1], [0], [0], [1], [0, 0, 1, 1], [], []>} : vector<4x512xbf16>, vector<512x128xbf16>, vector<4x128xf32> -> vector<4x128xf32>
    %18 = arith.addf %13, %17 : vector<4x128xf32>
    %19 = vector.extract_strided_slice %7 {offsets = [8, 0], sizes = [4, 512], strides = [1, 1]} : vector<64x512xbf16> to vector<4x512xbf16>
    %c2 = arith.constant 2 : index
    %c0_13 = arith.constant 0 : index
    %c0_14 = arith.constant 0 : index
    %20 = vector.load %arg6[%c2, %c0_13, %c0_14] : memref<16x512x128xbf16, #tpu.memory_space<vmem>>, vector<1x512x128xbf16>
    %21 = vector.shape_cast %20 : vector<1x512x128xbf16> to vector<512x128xbf16>
    %cst_15 = arith.constant dense<0.000000e+00> : vector<4x128xf32>
    %22 = tpu.matmul %19, %21, %cst_15 {dimension_numbers = #tpu.dot_dimension_numbers<[1], [0], [0], [1], [0, 0, 1, 1], [], []>} : vector<4x512xbf16>, vector<512x128xbf16>, vector<4x128xf32> -> vector<4x128xf32>
    %23 = arith.addf %18, %22 : vector<4x128xf32>
    %24 = vector.extract_strided_slice %7 {offsets = [12, 0], sizes = [4, 512], strides = [1, 1]} : vector<64x512xbf16> to vector<4x512xbf16>
    %c3 = arith.constant 3 : index
    %c0_16 = arith.constant 0 : index
    %c0_17 = arith.constant 0 : index
    %25 = vector.load %arg6[%c3, %c0_16, %c0_17] : memref<16x512x128xbf16, #tpu.memory_space<vmem>>, vector<1x512x128xbf16>
    %26 = vector.shape_cast %25 : vector<1x512x128xbf16> to vector<512x128xbf16>
    %cst_18 = arith.constant dense<0.000000e+00> : vector<4x128xf32>
    %27 = tpu.matmul %24, %26, %cst_18 {dimension_numbers = #tpu.dot_dimension_numbers<[1], [0], [0], [1], [0, 0, 1, 1], [], []>} : vector<4x512xbf16>, vector<512x128xbf16>, vector<4x128xf32> -> vector<4x128xf32>
    %28 = arith.addf %23, %27 : vector<4x128xf32>
    %29 = vector.extract_strided_slice %7 {offsets = [16, 0], sizes = [4, 512], strides = [1, 1]} : vector<64x512xbf16> to vector<4x512xbf16>
    %c4 = arith.constant 4 : index
    %c0_19 = arith.constant 0 : index
    %c0_20 = arith.constant 0 : index
    %30 = vector.load %arg6[%c4, %c0_19, %c0_20] : memref<16x512x128xbf16, #tpu.memory_space<vmem>>, vector<1x512x128xbf16>
    %31 = vector.shape_cast %30 : vector<1x512x128xbf16> to vector<512x128xbf16>
    %cst_21 = arith.constant dense<0.000000e+00> : vector<4x128xf32>
    %32 = tpu.matmul %29, %31, %cst_21 {dimension_numbers = #tpu.dot_dimension_numbers<[1], [0], [0], [1], [0, 0, 1, 1], [], []>} : vector<4x512xbf16>, vector<512x128xbf16>, vector<4x128xf32> -> vector<4x128xf32>
    %33 = arith.addf %28, %32 : vector<4x128xf32>
    %34 = vector.extract_strided_slice %7 {offsets = [20, 0], sizes = [4, 512], strides = [1, 1]} : vector<64x512xbf16> to vector<4x512xbf16>
    %c5 = arith.constant 5 : index
    %c0_22 = arith.constant 0 : index
    %c0_23 = arith.constant 0 : index
    %35 = vector.load %arg6[%c5, %c0_22, %c0_23] : memref<16x512x128xbf16, #tpu.memory_space<vmem>>, vector<1x512x128xbf16>
    %36 = vector.shape_cast %35 : vector<1x512x128xbf16> to vector<512x128xbf16>
    %cst_24 = arith.constant dense<0.000000e+00> : vector<4x128xf32>
    %37 = tpu.matmul %34, %36, %cst_24 {dimension_numbers = #tpu.dot_dimension_numbers<[1], [0], [0], [1], [0, 0, 1, 1], [], []>} : vector<4x512xbf16>, vector<512x128xbf16>, vector<4x128xf32> -> vector<4x128xf32>
    %38 = arith.addf %33, %37 : vector<4x128xf32>
    %39 = vector.extract_strided_slice %7 {offsets = [24, 0], sizes = [4, 512], strides = [1, 1]} : vector<64x512xbf16> to vector<4x512xbf16>
    %c6 = arith.constant 6 : index
    %c0_25 = arith.constant 0 : index
    %c0_26 = arith.constant 0 : index
    %40 = vector.load %arg6[%c6, %c0_25, %c0_26] : memref<16x512x128xbf16, #tpu.memory_space<vmem>>, vector<1x512x128xbf16>
    %41 = vector.shape_cast %40 : vector<1x512x128xbf16> to vector<512x128xbf16>
    %cst_27 = arith.constant dense<0.000000e+00> : vector<4x128xf32>
    %42 = tpu.matmul %39, %41, %cst_27 {dimension_numbers = #tpu.dot_dimension_numbers<[1], [0], [0], [1], [0, 0, 1, 1], [], []>} : vector<4x512xbf16>, vector<512x128xbf16>, vector<4x128xf32> -> vector<4x128xf32>
    %43 = arith.addf %38, %42 : vector<4x128xf32>
    %44 = vector.extract_strided_slice %7 {offsets = [28, 0], sizes = [4, 512], strides = [1, 1]} : vector<64x512xbf16> to vector<4x512xbf16>
    %c7 = arith.constant 7 : index
    %c0_28 = arith.constant 0 : index
    %c0_29 = arith.constant 0 : index
    %45 = vector.load %arg6[%c7, %c0_28, %c0_29] : memref<16x512x128xbf16, #tpu.memory_space<vmem>>, vector<1x512x128xbf16>
    %46 = vector.shape_cast %45 : vector<1x512x128xbf16> to vector<512x128xbf16>
    %cst_30 = arith.constant dense<0.000000e+00> : vector<4x128xf32>
    %47 = tpu.matmul %44, %46, %cst_30 {dimension_numbers = #tpu.dot_dimension_numbers<[1], [0], [0], [1], [0, 0, 1, 1], [], []>} : vector<4x512xbf16>, vector<512x128xbf16>, vector<4x128xf32> -> vector<4x128xf32>
    %48 = arith.addf %43, %47 : vector<4x128xf32>
    %49 = vector.extract_strided_slice %7 {offsets = [32, 0], sizes = [4, 512], strides = [1, 1]} : vector<64x512xbf16> to vector<4x512xbf16>
    %c8 = arith.constant 8 : index
    %c0_31 = arith.constant 0 : index
    %c0_32 = arith.constant 0 : index
    %50 = vector.load %arg6[%c8, %c0_31, %c0_32] : memref<16x512x128xbf16, #tpu.memory_space<vmem>>, vector<1x512x128xbf16>
    %51 = vector.shape_cast %50 : vector<1x512x128xbf16> to vector<512x128xbf16>
    %cst_33 = arith.constant dense<0.000000e+00> : vector<4x128xf32>
    %52 = tpu.matmul %49, %51, %cst_33 {dimension_numbers = #tpu.dot_dimension_numbers<[1], [0], [0], [1], [0, 0, 1, 1], [], []>} : vector<4x512xbf16>, vector<512x128xbf16>, vector<4x128xf32> -> vector<4x128xf32>
    %53 = arith.addf %48, %52 : vector<4x128xf32>
    %54 = vector.extract_strided_slice %7 {offsets = [36, 0], sizes = [4, 512], strides = [1, 1]} : vector<64x512xbf16> to vector<4x512xbf16>
    %c9 = arith.constant 9 : index
    %c0_34 = arith.constant 0 : index
    %c0_35 = arith.constant 0 : index
    %55 = vector.load %arg6[%c9, %c0_34, %c0_35] : memref<16x512x128xbf16, #tpu.memory_space<vmem>>, vector<1x512x128xbf16>
    %56 = vector.shape_cast %55 : vector<1x512x128xbf16> to vector<512x128xbf16>
    %cst_36 = arith.constant dense<0.000000e+00> : vector<4x128xf32>
    %57 = tpu.matmul %54, %56, %cst_36 {dimension_numbers = #tpu.dot_dimension_numbers<[1], [0], [0], [1], [0, 0, 1, 1], [], []>} : vector<4x512xbf16>, vector<512x128xbf16>, vector<4x128xf32> -> vector<4x128xf32>
    %58 = arith.addf %53, %57 : vector<4x128xf32>
    %59 = vector.extract_strided_slice %7 {offsets = [40, 0], sizes = [4, 512], strides = [1, 1]} : vector<64x512xbf16> to vector<4x512xbf16>
    %c10 = arith.constant 10 : index
    %c0_37 = arith.constant 0 : index
    %c0_38 = arith.constant 0 : index
    %60 = vector.load %arg6[%c10, %c0_37, %c0_38] : memref<16x512x128xbf16, #tpu.memory_space<vmem>>, vector<1x512x128xbf16>
    %61 = vector.shape_cast %60 : vector<1x512x128xbf16> to vector<512x128xbf16>
    %cst_39 = arith.constant dense<0.000000e+00> : vector<4x128xf32>
    %62 = tpu.matmul %59, %61, %cst_39 {dimension_numbers = #tpu.dot_dimension_numbers<[1], [0], [0], [1], [0, 0, 1, 1], [], []>} : vector<4x512xbf16>, vector<512x128xbf16>, vector<4x128xf32> -> vector<4x128xf32>
    %63 = arith.addf %58, %62 : vector<4x128xf32>
    %64 = vector.extract_strided_slice %7 {offsets = [44, 0], sizes = [4, 512], strides = [1, 1]} : vector<64x512xbf16> to vector<4x512xbf16>
    %c11 = arith.constant 11 : index
    %c0_40 = arith.constant 0 : index
    %c0_41 = arith.constant 0 : index
    %65 = vector.load %arg6[%c11, %c0_40, %c0_41] : memref<16x512x128xbf16, #tpu.memory_space<vmem>>, vector<1x512x128xbf16>
    %66 = vector.shape_cast %65 : vector<1x512x128xbf16> to vector<512x128xbf16>
    %cst_42 = arith.constant dense<0.000000e+00> : vector<4x128xf32>
    %67 = tpu.matmul %64, %66, %cst_42 {dimension_numbers = #tpu.dot_dimension_numbers<[1], [0], [0], [1], [0, 0, 1, 1], [], []>} : vector<4x512xbf16>, vector<512x128xbf16>, vector<4x128xf32> -> vector<4x128xf32>
    %68 = arith.addf %63, %67 : vector<4x128xf32>
    %69 = vector.extract_strided_slice %7 {offsets = [48, 0], sizes = [4, 512], strides = [1, 1]} : vector<64x512xbf16> to vector<4x512xbf16>
    %c12 = arith.constant 12 : index
    %c0_43 = arith.constant 0 : index
    %c0_44 = arith.constant 0 : index
    %70 = vector.load %arg6[%c12, %c0_43, %c0_44] : memref<16x512x128xbf16, #tpu.memory_space<vmem>>, vector<1x512x128xbf16>
    %71 = vector.shape_cast %70 : vector<1x512x128xbf16> to vector<512x128xbf16>
    %cst_45 = arith.constant dense<0.000000e+00> : vector<4x128xf32>
    %72 = tpu.matmul %69, %71, %cst_45 {dimension_numbers = #tpu.dot_dimension_numbers<[1], [0], [0], [1], [0, 0, 1, 1], [], []>} : vector<4x512xbf16>, vector<512x128xbf16>, vector<4x128xf32> -> vector<4x128xf32>
    %73 = arith.addf %68, %72 : vector<4x128xf32>
    %74 = vector.extract_strided_slice %7 {offsets = [52, 0], sizes = [4, 512], strides = [1, 1]} : vector<64x512xbf16> to vector<4x512xbf16>
    %c13 = arith.constant 13 : index
    %c0_46 = arith.constant 0 : index
    %c0_47 = arith.constant 0 : index
    %75 = vector.load %arg6[%c13, %c0_46, %c0_47] : memref<16x512x128xbf16, #tpu.memory_space<vmem>>, vector<1x512x128xbf16>
    %76 = vector.shape_cast %75 : vector<1x512x128xbf16> to vector<512x128xbf16>
    %cst_48 = arith.constant dense<0.000000e+00> : vector<4x128xf32>
    %77 = tpu.matmul %74, %76, %cst_48 {dimension_numbers = #tpu.dot_dimension_numbers<[1], [0], [0], [1], [0, 0, 1, 1], [], []>} : vector<4x512xbf16>, vector<512x128xbf16>, vector<4x128xf32> -> vector<4x128xf32>
    %78 = arith.addf %73, %77 : vector<4x128xf32>
    %79 = vector.extract_strided_slice %7 {offsets = [56, 0], sizes = [4, 512], strides = [1, 1]} : vector<64x512xbf16> to vector<4x512xbf16>
    %c14 = arith.constant 14 : index
    %c0_49 = arith.constant 0 : index
    %c0_50 = arith.constant 0 : index
    %80 = vector.load %arg6[%c14, %c0_49, %c0_50] : memref<16x512x128xbf16, #tpu.memory_space<vmem>>, vector<1x512x128xbf16>
    %81 = vector.shape_cast %80 : vector<1x512x128xbf16> to vector<512x128xbf16>
    %cst_51 = arith.constant dense<0.000000e+00> : vector<4x128xf32>
    %82 = tpu.matmul %79, %81, %cst_51 {dimension_numbers = #tpu.dot_dimension_numbers<[1], [0], [0], [1], [0, 0, 1, 1], [], []>} : vector<4x512xbf16>, vector<512x128xbf16>, vector<4x128xf32> -> vector<4x128xf32>
    %83 = arith.addf %78, %82 : vector<4x128xf32>
    %84 = vector.extract_strided_slice %7 {offsets = [60, 0], sizes = [4, 512], strides = [1, 1]} : vector<64x512xbf16> to vector<4x512xbf16>
    %c15 = arith.constant 15 : index
    %c0_52 = arith.constant 0 : index
    %c0_53 = arith.constant 0 : index
    %85 = vector.load %arg6[%c15, %c0_52, %c0_53] : memref<16x512x128xbf16, #tpu.memory_space<vmem>>, vector<1x512x128xbf16>
    %86 = vector.shape_cast %85 : vector<1x512x128xbf16> to vector<512x128xbf16>
    %cst_54 = arith.constant dense<0.000000e+00> : vector<4x128xf32>
    %87 = tpu.matmul %84, %86, %cst_54 {dimension_numbers = #tpu.dot_dimension_numbers<[1], [0], [0], [1], [0, 0, 1, 1], [], []>} : vector<4x512xbf16>, vector<512x128xbf16>, vector<4x128xf32> -> vector<4x128xf32>
    %88 = arith.addf %83, %87 : vector<4x128xf32>
    %c0_55 = arith.constant 0 : index
    %c0_56 = arith.constant 0 : index
    %89 = vector.load %arg7[%c0_55, %c0_56] : memref<1x128xf32, #tpu.memory_space<vmem>>, vector<1x128xf32>
    %90 = vector.broadcast %89 : vector<1x128xf32> to vector<4x128xf32>
    %91 = arith.addf %88, %90 : vector<4x128xf32>
    %cst_57 = arith.constant 0.000000e+00 : f32
    %92 = vector.broadcast %cst_57 : f32 to vector<4x128xf32>
    %93 = arith.maximumf %91, %92 : vector<4x128xf32>
    %94 = arith.truncf %93 : vector<4x128xf32> to vector<4x128xbf16>
    %c0_58 = arith.constant 0 : index
    %c0_59 = arith.constant 0 : index
    %95 = vector.load %arg8[%c0_58, %c0_59] : memref<128x128xbf16, #tpu.memory_space<vmem>>, vector<128x128xbf16>
    %cst_60 = arith.constant dense<0.000000e+00> : vector<4x128xf32>
    %96 = tpu.matmul %94, %95, %cst_60 {dimension_numbers = #tpu.dot_dimension_numbers<[1], [0], [0], [1], [0, 0, 1, 1], [], []>} : vector<4x128xbf16>, vector<128x128xbf16>, vector<4x128xf32> -> vector<4x128xf32>
    %c0_61 = arith.constant 0 : index
    %c0_62 = arith.constant 0 : index
    %97 = vector.load %arg9[%c0_61, %c0_62] : memref<1x128xf32, #tpu.memory_space<vmem>>, vector<1x128xf32>
    %98 = vector.broadcast %97 : vector<1x128xf32> to vector<4x128xf32>
    %99 = arith.addf %96, %98 : vector<4x128xf32>
    %cst_63 = arith.constant 0.000000e+00 : f32
    %100 = vector.broadcast %cst_63 : f32 to vector<4x128xf32>
    %101 = arith.maximumf %99, %100 : vector<4x128xf32>
    %c0_64 = arith.constant 0 : index
    %c0_65 = arith.constant 0 : index
    %c0_66 = arith.constant 0 : index
    %102 = vector.load %arg10[%c0_64, %c0_65, %c0_66] : memref<1x4x128xf32, #tpu.memory_space<vmem>>, vector<1x4x128xf32>
    %103 = vector.shape_cast %102 : vector<1x4x128xf32> to vector<4x128xf32>
    %104 = vector.shape_cast %101 : vector<4x128xf32> to vector<1x4x128xf32>
    tpu.vector_store %arg10[%c0_64, %c0_65, %c0_66], %104 {strides = array<i32>} : memref<1x4x128xf32, #tpu.memory_space<vmem>>, vector<1x4x128xf32>,
    return
  }
  func.func @transform_0(%arg0: i32, %arg1: i32) -> (i32, i32, i32) {
    %c0_i32 = arith.constant 0 : i32
    %c0_i32_0 = arith.constant 0 : i32
    %c0_i32_1 = arith.constant 0 : i32
    return %arg0, %c0_i32, %c0_i32_0 : i32, i32, i32
  }
  func.func @transform_1(%arg0: i32, %arg1: i32) -> (i32, i32) {
    %c0_i32 = arith.constant 0 : i32
    %c0_i32_0 = arith.constant 0 : i32
    %c0_i32_1 = arith.constant 0 : i32
    return %c0_i32, %c0_i32_0 : i32, i32
  }
  func.func @transform_2(%arg0: i32, %arg1: i32) -> (i32, i32) {
    %c0_i32 = arith.constant 0 : i32
    %c0_i32_0 = arith.constant 0 : i32
    %c0_i32_1 = arith.constant 0 : i32
    return %c0_i32, %c0_i32_0 : i32, i32
  }
  func.func @transform_3(%arg0: i32, %arg1: i32) -> (i32, i32, i32) {
    %c1_i32 = arith.constant 1 : i32
    %0 = arith.muli %arg0, %c1_i32 : i32
    %1 = arith.addi %0, %arg1 : i32
    %c0_i32 = arith.constant 0 : i32
    %c0_i32_0 = arith.constant 0 : i32
    %c0_i32_1 = arith.constant 0 : i32
    return %1, %c0_i32, %c0_i32_0 : i32, i32, i32
  }
  func.func @transform_4(%arg0: i32, %arg1: i32) -> (i32, i32, i32) {
    %c0_i32 = arith.constant 0 : i32
    %c0_i32_0 = arith.constant 0 : i32
    %c0_i32_1 = arith.constant 0 : i32
    %c0_i32_2 = arith.constant 0 : i32
    return %c0_i32, %c0_i32_0, %c0_i32_1 : i32, i32, i32
  }
  func.func @transform_5(%arg0: i32, %arg1: i32) -> (i32, i32) {
    %c0_i32 = arith.constant 0 : i32
    %c0_i32_0 = arith.constant 0 : i32
    %c0_i32_1 = arith.constant 0 : i32
    return %c0_i32, %c0_i32_0 : i32, i32
  }
  func.func @transform_6(%arg0: i32, %arg1: i32) -> (i32, i32) {
    %c0_i32 = arith.constant 0 : i32
    %c0_i32_0 = arith.constant 0 : i32
    %c0_i32_1 = arith.constant 0 : i32
    return %c0_i32, %c0_i32_0 : i32, i32
  }
  func.func @transform_7(%arg0: i32, %arg1: i32) -> (i32, i32) {
    %c0_i32 = arith.constant 0 : i32
    %c0_i32_0 = arith.constant 0 : i32
    %c0_i32_1 = arith.constant 0 : i32
    return %c0_i32, %c0_i32_0 : i32, i32
  }
  func.func @transform_8(%arg0: i32, %arg1: i32) -> (i32, i32, i32) {
    %c1_i32 = arith.constant 1 : i32
    %0 = arith.muli %arg0, %c1_i32 : i32
    %1 = arith.addi %0, %arg1 : i32
    %c0_i32 = arith.constant 0 : i32
    %c0_i32_0 = arith.constant 0 : i32
    %c0_i32_1 = arith.constant 0 : i32
    return %1, %c0_i32, %c0_i32_0 : i32, i32, i32
  }
}

</mosaic_0001>

<llo_original>
// kernel: pva_box_feature_extractor.1
$region0: #{pva_box_feature_extractor.1}
  #allocation0 [shape = 'u32[]', space=smem, size = 0x4, offset = 0x4, fixed_abs, tag = 'smem constant byte address 0x4 - core index']
  #allocation1 [shape = 'u32[72,128]{1,0:T(1,128)}', space=vmem, size = 0x9000, scoped, tag = 'internal scratch']
  #allocation2 [shape = 'bf16[256,512]{1,0:T(8,128)(2,1)}', space=vmem, size = 0x40000, scoped, tag = 'scratch operand']
  %s0 = inlined_call_operand.vmem [shape: bf16[2,256,32], index: 0, kind: input, shape index: {}]
  %s1 = inlined_call_operand.vmem [shape: bf16[32,512], index: 1, kind: input, shape index: {}]
  %s2 = inlined_call_operand.vmem [shape: f32[1,512], index: 2, kind: input, shape index: {}]
  %s3 = inlined_call_operand.vmem [shape: bf16[2,64,256], index: 3, kind: input, shape index: {}]
  %s4 = inlined_call_operand.vmem [shape: bf16[16,512,128], index: 4, kind: input, shape index: {}]
  %s5 = inlined_call_operand.vmem [shape: f32[1,128], index: 5, kind: input, shape index: {}]
  %s6 = inlined_call_operand.vmem [shape: bf16[128,128], index: 6, kind: input, shape index: {}]
  %s7 = inlined_call_operand.vmem [shape: f32[1,128], index: 7, kind: input, shape index: {}]
  %s8 = inlined_call_operand.hbm [shape: f32[2,4,128], index: 8, kind: output, shape index: {}]
  %s9 = sld [smem:[#allocation0]]
  $region69: #{pva_box_feature_extractor.1} parent=0
    _
  %s11 = ssub.s32 1, %s9
  %s12 = scalar_select 0, %s11, %s9
  $region1: #{pva_box_feature_extractor.1} parent=0
    #allocation3 [shape = 'u8[4096]{0}', space=vmem, size = 0x1000, scoped, tag = 'output window, operand 0']
    #allocation4 [shape = 's32[2]{0}', space=sflag, size = 0x8, scoped, tag = 'scoped memory for pva_box_feature_extractor.1']
    %13 = vsyncpa [#allocation4], 0
    %s14 = scalar_lea.sflag [#allocation4], 1
    %15 = vsyncpa %s14, 0
    loop: start=0, step=1, limit=4
    $region2: #{pva_box_feature_extractor.1} parent=1 // loop_pre_header
      _
    $region3: #{pva_box_feature_extractor.1} parent=1 // loop_header
      %s17 = sphi 0, %s21
      %p18 = scmp.ge.s32.totalorder %s17, 4
      %s24 = sphi 0, %s36
      %s25 = sphi 0, %s32
      %s26 = sphi 0, %s24
      %s27 = sphi 0, %s25
      %s28 = sphi 0, %s26
      %s29 = sphi 0, %s27
      %s39 = sphi 0, %s41
      %s42 = sphi 0, %s39
      %s43 = sphi 0, %s42
      %s59 = sphi 0, %s43
      %s63 = sphi 0, %s63
      %s65 = sphi 0, %s63
      %s66 = sphi 0, %s65
      %s80 = sphi 0, %s66
      %s84 = sphi 0, %s84
      %s86 = sphi 0, %s84
      %s87 = sphi 0, %s86
      %s101 = sphi 0, %s87
      %s109 = sphi 0, %s111
      %s112 = sphi 0, %s109
      %s113 = sphi 0, %s112
      %s129 = sphi 0, %s113
      %s133 = sphi 0, %s133
      %s135 = sphi 0, %s133
      %s136 = sphi 0, %s135
      %s150 = sphi 0, %s136
      %s154 = sphi 0, %s154
      %s156 = sphi 0, %s154
      %s157 = sphi 0, %s156
      %s171 = sphi 0, %s157
      %s175 = sphi 0, %s175
      %s177 = sphi 0, %s175
      %s178 = sphi 0, %s177
      %s192 = sphi 0, %s178
      %s196 = sphi 0, %s196
      %s198 = sphi 0, %s196
      %s199 = sphi 0, %s198
      %s213 = sphi 0, %s199
      %s221 = sphi 0, %s223
      %s224 = sphi 0, %s221
      %s225 = sphi 0, %s224
      %s241 = sphi 0, %s225
    $region4: #{pva_box_feature_extractor.1} parent=1 // loop_header_branch
      %20 = sbr.rel (%p18) target = $region8
    $region5: #{pva_box_feature_extractor.1} parent=1 // loop_body
      %s22 = ssub.s32 %s17, 1
      %s23 = ssub.s32 %s17, 2
      %s30 = sadd.s32 1, %s25
      %p31 = scmp.ge.s32.totalorder %s30, 1
      %s32 = scalar_select %p31, 0, %s30
      %s33 = sadd.s32 1, %s24
      %s34 = scalar_select %p31, %s33, %s24
      %p35 = scmp.ge.s32.totalorder %s34, 2
      %s36 = scalar_select %p35, 0, %s34
      %s37 = ssub.s32 %s24, %s36
      %p38 = scmp.eq.s32.totalorder %s37, 0
      %s40 = sadd.s32 %s39, 1
      %s41 = scalar_select %p38, %s39, %s40
      %p44 = pneg %p38
      %p45 = scmp.eq.s32.totalorder %s17, 1
      %p46 = por %p44, %p45
      %p47 = scmp.ne.s32.totalorder %s39, %s42
      %p48 = scmp.eq.s32.totalorder %s17, 0
      %p49 = por %p47, %p48
      %p50 = scmp.ne.s32.totalorder %s39, %s42
      %p51 = scmp.eq.s32.totalorder %s22, 1
      %p52 = por %p50, %p51
      %p53 = scmp.ne.s32.totalorder %s42, %s43
      %p54 = scmp.eq.s32.totalorder %s22, 0
      %p55 = por %p53, %p54
      %p56 = scmp.ne.s32.totalorder %s42, %s43
      %p57 = scmp.eq.s32.totalorder %s23, 1
      %p58 = por %p56, %p57
      %p60 = scmp.ne.s32.totalorder %s43, %s59
      %p61 = scmp.eq.s32.totalorder %s23, 0
      %p62 = por %p60, %p61
      %s64 = sadd.s32 %s63, 1
      %p67 = scmp.eq.s32.totalorder %s17, 1
      %p68 = scmp.ne.s32.totalorder %s63, %s65
      %p69 = scmp.eq.s32.totalorder %s17, 0
      %p70 = por %p68, %p69
      %p71 = scmp.ne.s32.totalorder %s63, %s65
      %p72 = scmp.eq.s32.totalorder %s22, 1
      %p73 = por %p71, %p72
      %p74 = scmp.ne.s32.totalorder %s65, %s66
      %p75 = scmp.eq.s32.totalorder %s22, 0
      %p76 = por %p74, %p75
      %p77 = scmp.ne.s32.totalorder %s65, %s66
      %p78 = scmp.eq.s32.totalorder %s23, 1
      %p79 = por %p77, %p78
      %p81 = scmp.ne.s32.totalorder %s66, %s80
      %p82 = scmp.eq.s32.totalorder %s23, 0
      %p83 = por %p81, %p82
      %s85 = sadd.s32 %s84, 1
      %p88 = scmp.eq.s32.totalorder %s17, 1
      %p89 = scmp.ne.s32.totalorder %s84, %s86
      %p90 = scmp.eq.s32.totalorder %s17, 0
      %p91 = por %p89, %p90
      %p92 = scmp.ne.s32.totalorder %s84, %s86
      %p93 = scmp.eq.s32.totalorder %s22, 1
      %p94 = por %p92, %p93
      %p95 = scmp.ne.s32.totalorder %s86, %s87
      %p96 = scmp.eq.s32.totalorder %s22, 0
      %p97 = por %p95, %p96
      %p98 = scmp.ne.s32.totalorder %s86, %s87
      %p99 = scmp.eq.s32.totalorder %s23, 1
      %p100 = por %p98, %p99
      %p102 = scmp.ne.s32.totalorder %s87, %s101
      %p103 = scmp.eq.s32.totalorder %s23, 0
      %p104 = por %p102, %p103
      %s105 = sadd.s32 %s24, %s25
      %s106 = sadd.s32 %s36, %s32
      %s107 = ssub.s32 %s105, %s106
      %p108 = scmp.eq.s32.totalorder %s107, 0
      %s110 = sadd.s32 %s109, 1
      %s111 = scalar_select %p108, %s109, %s110
      %p114 = pneg %p108
      %p115 = scmp.eq.s32.totalorder %s17, 1
      %p116 = por %p114, %p115
      %p117 = scmp.ne.s32.totalorder %s109, %s112
      %p118 = scmp.eq.s32.totalorder %s17, 0
      %p119 = por %p117, %p118
      %p120 = scmp.ne.s32.totalorder %s109, %s112
      %p121 = scmp.eq.s32.totalorder %s22, 1
      %p122 = por %p120, %p121
      %p123 = scmp.ne.s32.totalorder %s112, %s113
      %p124 = scmp.eq.s32.totalorder %s22, 0
      %p125 = por %p123, %p124
      %p126 = scmp.ne.s32.totalorder %s112, %s113
      %p127 = scmp.eq.s32.totalorder %s23, 1
      %p128 = por %p126, %p127
      %p130 = scmp.ne.s32.totalorder %s113, %s129
      %p131 = scmp.eq.s32.totalorder %s23, 0
      %p132 = por %p130, %p131
      %s134 = sadd.s32 %s133, 1
      %p137 = scmp.eq.s32.totalorder %s17, 1
      %p138 = scmp.ne.s32.totalorder %s133, %s135
      %p139 = scmp.eq.s32.totalorder %s17, 0
      %p140 = por %p138, %p139
      %p141 = scmp.ne.s32.totalorder %s133, %s135
      %p142 = scmp.eq.s32.totalorder %s22, 1
      %p143 = por %p141, %p142
      %p144 = scmp.ne.s32.totalorder %s135, %s136
      %p145 = scmp.eq.s32.totalorder %s22, 0
      %p146 = por %p144, %p145
      %p147 = scmp.ne.s32.totalorder %s135, %s136
      %p148 = scmp.eq.s32.totalorder %s23, 1
      %p149 = por %p147, %p148
      %p151 = scmp.ne.s32.totalorder %s136, %s150
      %p152 = scmp.eq.s32.totalorder %s23, 0
      %p153 = por %p151, %p152
      %s155 = sadd.s32 %s154, 1
      %p158 = scmp.eq.s32.totalorder %s17, 1
      %p159 = scmp.ne.s32.totalorder %s154, %s156
      %p160 = scmp.eq.s32.totalorder %s17, 0
      %p161 = por %p159, %p160
      %p162 = scmp.ne.s32.totalorder %s154, %s156
      %p163 = scmp.eq.s32.totalorder %s22, 1
      %p164 = por %p162, %p163
      %p165 = scmp.ne.s32.totalorder %s156, %s157
      %p166 = scmp.eq.s32.totalorder %s22, 0
      %p167 = por %p165, %p166
      %p168 = scmp.ne.s32.totalorder %s156, %s157
      %p169 = scmp.eq.s32.totalorder %s23, 1
      %p170 = por %p168, %p169
      %p172 = scmp.ne.s32.totalorder %s157, %s171
      %p173 = scmp.eq.s32.totalorder %s23, 0
      %p174 = por %p172, %p173
      %s176 = sadd.s32 %s175, 1
      %p179 = scmp.eq.s32.totalorder %s17, 1
      %p180 = scmp.ne.s32.totalorder %s175, %s177
      %p181 = scmp.eq.s32.totalorder %s17, 0
      %p182 = por %p180, %p181
      %p183 = scmp.ne.s32.totalorder %s175, %s177
      %p184 = scmp.eq.s32.totalorder %s22, 1
      %p185 = por %p183, %p184
      %p186 = scmp.ne.s32.totalorder %s177, %s178
      %p187 = scmp.eq.s32.totalorder %s22, 0
      %p188 = por %p186, %p187
      %p189 = scmp.ne.s32.totalorder %s177, %s178
      %p190 = scmp.eq.s32.totalorder %s23, 1
      %p191 = por %p189, %p190
      %p193 = scmp.ne.s32.totalorder %s178, %s192
      %p194 = scmp.eq.s32.totalorder %s23, 0
      %p195 = por %p193, %p194
      %s197 = sadd.s32 %s196, 1
      %p200 = scmp.eq.s32.totalorder %s17, 1
      %p201 = scmp.ne.s32.totalorder %s196, %s198
      %p202 = scmp.eq.s32.totalorder %s17, 0
      %p203 = por %p201, %p202
      %p204 = scmp.ne.s32.totalorder %s196, %s198
      %p205 = scmp.eq.s32.totalorder %s22, 1
      %p206 = por %p204, %p205
      %p207 = scmp.ne.s32.totalorder %s198, %s199
      %p208 = scmp.eq.s32.totalorder %s22, 0
      %p209 = por %p207, %p208
      %p210 = scmp.ne.s32.totalorder %s198, %s199
      %p211 = scmp.eq.s32.totalorder %s23, 1
      %p212 = por %p210, %p211
      %p214 = scmp.ne.s32.totalorder %s199, %s213
      %p215 = scmp.eq.s32.totalorder %s23, 0
      %p216 = por %p214, %p215
      %s217 = sadd.s32 %s24, %s25
      %s218 = sadd.s32 %s36, %s32
      %s219 = ssub.s32 %s217, %s218
      %p220 = scmp.eq.s32.totalorder %s219, 0
      %s222 = sadd.s32 %s221, 1
      %s223 = scalar_select %p220, %s221, %s222
      %p226 = pneg %p220
      %p227 = scmp.eq.s32.totalorder %s17, 1
      %p228 = por %p226, %p227
      %p229 = scmp.ne.s32.totalorder %s221, %s224
      %p230 = scmp.eq.s32.totalorder %s17, 0
      %p231 = por %p229, %p230
      %p232 = scmp.ne.s32.totalorder %s221, %s224
      %p233 = scmp.eq.s32.totalorder %s22, 1
      %p234 = por %p232, %p233
      %p235 = scmp.ne.s32.totalorder %s224, %s225
      %p236 = scmp.eq.s32.totalorder %s22, 0
      %p237 = por %p235, %p236
      %p238 = scmp.ne.s32.totalorder %s224, %s225
      %p239 = scmp.eq.s32.totalorder %s23, 1
      %p240 = por %p238, %p239
      %p242 = scmp.ne.s32.totalorder %s225, %s241
      %p243 = scmp.eq.s32.totalorder %s23, 0
      %p244 = por %p242, %p243
      %p245 = scmp.le.s32.totalorder 1, %s17
      %p246 = scmp.lt.s32.totalorder %s17, 3
      %p247 = pnand %p245, %p246
      %p248 = pneg %p247
      // Predicated region
      $region9: #{pva_box_feature_extractor.1} parent=5 // pred_check
        _
      $region10: #{pva_box_feature_extractor.1} parent=5 // pred_check_branch
        %250 = sbr.rel (%p247) target = $region12
      $region11: #{pva_box_feature_extractor.1} parent=5 // pred_region
        %s251 = ssub.s32 %s17, 1
        // Predicated region
        $region13: #{pva_box_feature_extractor.1} parent=11 // pred_check
          %p252 = pneg %p76
        $region14: #{pva_box_feature_extractor.1} parent=11 // pred_check_branch
          %254 = sbr.rel (%p252) target = $region16
        $region15: #{pva_box_feature_extractor.1} parent=11 // pred_region
          _
        $region16: #{pva_box_feature_extractor.1} parent=11 // pred_fallthru
          _
        // Predicated region
        $region17: #{pva_box_feature_extractor.1} parent=11 // pred_check
          %p255 = pneg %p97
        $region18: #{pva_box_feature_extractor.1} parent=11 // pred_check_branch
          %257 = sbr.rel (%p255) target = $region20
        $region19: #{pva_box_feature_extractor.1} parent=11 // pred_region
          _
        $region20: #{pva_box_feature_extractor.1} parent=11 // pred_fallthru
          _
        // Predicated region
        $region21: #{pva_box_feature_extractor.1} parent=11 // pred_check
          %p258 = pneg %p146
        $region22: #{pva_box_feature_extractor.1} parent=11 // pred_check_branch
          %260 = sbr.rel (%p258) target = $region24
        $region23: #{pva_box_feature_extractor.1} parent=11 // pred_region
          _
        $region24: #{pva_box_feature_extractor.1} parent=11 // pred_fallthru
          _
        // Predicated region
        $region25: #{pva_box_feature_extractor.1} parent=11 // pred_check
          %p261 = pneg %p167
        $region26: #{pva_box_feature_extractor.1} parent=11 // pred_check_branch
          %263 = sbr.rel (%p261) target = $region28
        $region27: #{pva_box_feature_extractor.1} parent=11 // pred_region
          _
        $region28: #{pva_box_feature_extractor.1} parent=11 // pred_fallthru
          _
        // Predicated region
        $region29: #{pva_box_feature_extractor.1} parent=11 // pred_check
          %p264 = pneg %p188
        $region30: #{pva_box_feature_extractor.1} parent=11 // pred_check_branch
          %266 = sbr.rel (%p264) target = $region32
        $region31: #{pva_box_feature_extractor.1} parent=11 // pred_region
          _
        $region32: #{pva_box_feature_extractor.1} parent=11 // pred_fallthru
          _
        // Predicated region
        $region33: #{pva_box_feature_extractor.1} parent=11 // pred_check
          %p267 = pneg %p209
        $region34: #{pva_box_feature_extractor.1} parent=11 // pred_check_branch
          %269 = sbr.rel (%p267) target = $region36
        $region35: #{pva_box_feature_extractor.1} parent=11 // pred_region
          _
        $region36: #{pva_box_feature_extractor.1} parent=11 // pred_fallthru
          _
      $region12: #{pva_box_feature_extractor.1} parent=5 // pred_fallthru
        _
      %p270 = scmp.lt.s32.totalorder %s17, 2
      // Predicated region
      $region37: #{pva_box_feature_extractor.1} parent=5 // pred_check
        %p271 = pneg %p270
      $region38: #{pva_box_feature_extractor.1} parent=5 // pred_check_branch
        %273 = sbr.rel (%p271) target = $region40
      $region39: #{pva_box_feature_extractor.1} parent=5 // pred_region
        // Predicated region
        $region41: #{pva_box_feature_extractor.1} parent=39 // pred_check
          %p274 = pneg %p49
        $region42: #{pva_box_feature_extractor.1} parent=39 // pred_check_branch
          %276 = sbr.rel (%p274) target = $region44
        $region43: #{pva_box_feature_extractor.1} parent=39 // pred_region
          %p277 = scmp.lt.s32.totalorder %s24, 1
          %s278 = scalar_select %p277, %s24, 1
          %s279 = smul.addr %s278, 32
          %s280 = smul.addr %s279, 4
          %s281 = scalar_lea.vmem %s0, %s280
        $region44: #{pva_box_feature_extractor.1} parent=39 // pred_fallthru
          _
        // Predicated region
        $region45: #{pva_box_feature_extractor.1} parent=39 // pred_check
          %p282 = pneg %p119
        $region46: #{pva_box_feature_extractor.1} parent=39 // pred_check_branch
          %284 = sbr.rel (%p282) target = $region48
        $region47: #{pva_box_feature_extractor.1} parent=39 // pred_region
          %s285 = sadd.s32 %s24, %s25
          %p286 = scmp.lt.s32.totalorder %s285, 1
          %s287 = scalar_select %p286, %s285, 1
          %s288 = smul.addr %s287, 16
          %s289 = smul.addr %s288, 4
          %s290 = scalar_lea.vmem %s3, %s289
          %s291 = sadd.s32 %s24, %s25
        $region48: #{pva_box_feature_extractor.1} parent=39 // pred_fallthru
          _
      $region40: #{pva_box_feature_extractor.1} parent=5 // pred_fallthru
        _
      %p292 = scmp.le.s32.totalorder 1, %s17
      %p293 = scmp.lt.s32.totalorder %s17, 3
      %p294 = pnand %p292, %p293
      %p295 = pneg %p294
      // Predicated region
      $region49: #{pva_box_feature_extractor.1} parent=5 // pred_check
        _
      $region50: #{pva_box_feature_extractor.1} parent=5 // pred_check_branch
        %297 = sbr.rel (%p294) target = $region52
      $region51: #{pva_box_feature_extractor.1} parent=5 // pred_region
        %s298 = ssub.s32 %s17, 1
        %p299 = scmp.lt.s32.totalorder %s26, 1
        %s300 = scalar_select %p299, %s26, 1
        %s301 = smul.addr %s300, 32
        %s302 = smul.addr %s301, 4
        %s303 = scalar_lea.vmem %s0, %s302
        %p304 = pneg %p55
        %p305 = pneg %p52
        %p306 = pneg %p76
        %p307 = pneg %p73
        %p308 = pneg %p97
        %p309 = pneg %p94
        %s310 = sadd.s32 %s26, %s27
        %p311 = scmp.lt.s32.totalorder %s310, 1
        %s312 = scalar_select %p311, %s310, 1
        %s313 = smul.addr %s312, 16
        %s314 = smul.addr %s313, 4
        %s315 = scalar_lea.vmem %s3, %s314
        %p316 = pneg %p125
        %p317 = pneg %p122
        %p318 = pneg %p146
        %p319 = pneg %p143
        %p320 = pneg %p167
        %p321 = pneg %p164
        %p322 = pneg %p188
        %p323 = pneg %p185
        %p324 = pneg %p209
        %p325 = pneg %p206
        %p326 = pneg %p237
        %p327 = pneg %p234
        %s328 = sand.u32 %s224, 1
        %s329 = scalar_lea.sflag [#allocation4], %s328
        %s330 = sand.u32 %s224, 1
        %s331 = smul.addr %s330, 4
        %s332 = scalar_lea.vmem [#allocation3], %s331
        %p333 = scmp.lt.s32.totalorder %s26, 1
        %s334 = scalar_select %p333, %s26, 1
        %s335 = smul.addr %s334, 32
        %s336 = smul.addr %s335, 4
        %s337 = scalar_lea.vmem %s0, %s336
        %s338 = sadd.s32 %s26, %s27
        %p339 = scmp.lt.s32.totalorder %s338, 1
        %s340 = scalar_select %p339, %s338, 1
        %s341 = smul.addr %s340, 16
        %s342 = smul.addr %s341, 4
        %s343 = scalar_lea.vmem %s3, %s342
        %s344 = sadd.s32 %s26, %s27
        %s345 = sadd.s32 %s26, %s27
        %p347 = scmp.eq.s32.totalorder %s27, 0
        // Predicated region
        $region53: #{pva_box_feature_extractor.1} parent=51 // pred_check
          %p348 = pneg %p347
        $region54: #{pva_box_feature_extractor.1} parent=51 // pred_check_branch
          %350 = sbr.rel (%p348) target = $region56
        $region55: #{pva_box_feature_extractor.1} parent=51 // pred_region
          %v351 = vld [vmem:[%s337] sm:$0xf]
          %v352 = vld [vmem:[%s337 + $0x4] sm:$0xf]
          %v353 = vld [vmem:[%s337 + $0x8] sm:$0xf]
          %v354 = vld [vmem:[%s337 + $0xc] sm:$0xf]
          %v355 = vld [vmem:[%s337 + $0x10] sm:$0xf]
          %v356 = vld [vmem:[%s337 + $0x14] sm:$0xf]
          %v357 = vld [vmem:[%s337 + $0x18] sm:$0xf]
          %v358 = vld [vmem:[%s337 + $0x1c] sm:$0xf]
          %v359 = vld [vmem:[%s337 + $0x20] sm:$0xf]
          %v360 = vld [vmem:[%s337 + $0x24] sm:$0xf]
          %v361 = vld [vmem:[%s337 + $0x28] sm:$0xf]
          %v362 = vld [vmem:[%s337 + $0x2c] sm:$0xf]
          %v363 = vld [vmem:[%s337 + $0x30] sm:$0xf]
          %v364 = vld [vmem:[%s337 + $0x34] sm:$0xf]
          %v365 = vld [vmem:[%s337 + $0x38] sm:$0xf]
          %v366 = vld [vmem:[%s337 + $0x3c] sm:$0xf]
          %v367 = vld [vmem:[%s337 + $0x40] sm:$0xf]
          %v368 = vld [vmem:[%s337 + $0x44] sm:$0xf]
          %v369 = vld [vmem:[%s337 + $0x48] sm:$0xf]
          %v370 = vld [vmem:[%s337 + $0x4c] sm:$0xf]
          %v371 = vld [vmem:[%s337 + $0x50] sm:$0xf]
          %v372 = vld [vmem:[%s337 + $0x54] sm:$0xf]
          %v373 = vld [vmem:[%s337 + $0x58] sm:$0xf]
          %v374 = vld [vmem:[%s337 + $0x5c] sm:$0xf]
          %v375 = vld [vmem:[%s337 + $0x60] sm:$0xf]
          %v376 = vld [vmem:[%s337 + $0x64] sm:$0xf]
          %v377 = vld [vmem:[%s337 + $0x68] sm:$0xf]
          %v378 = vld [vmem:[%s337 + $0x6c] sm:$0xf]
          %v379 = vld [vmem:[%s337 + $0x70] sm:$0xf]
          %v380 = vld [vmem:[%s337 + $0x74] sm:$0xf]
          %v381 = vld [vmem:[%s337 + $0x78] sm:$0xf]
          %v382 = vld [vmem:[%s337 + $0x7c] sm:$0xf]
          %v383 = vld [vmem:[%s1] sm:$0xff]
          %v384 = vld [vmem:[%s1 + $0x8] sm:$0xff]
          %v385 = vld [vmem:[%s1 + $0x10] sm:$0xff]
          %v386 = vld [vmem:[%s1 + $0x18] sm:$0xff]
          %v387 = vld [vmem:[%s1 + $0x20] sm:$0xff]
          %v388 = vld [vmem:[%s1 + $0x28] sm:$0xff]
          %v389 = vld [vmem:[%s1 + $0x30] sm:$0xff]
          %v390 = vld [vmem:[%s1 + $0x38] sm:$0xff]
          %v391 = vld [vmem:[%s2] sm:$0xf]
          %v393 = vperm.slane %v391, 0
          %v394 = vperm.slane %v391, 1
          %v395 = vperm.slane %v391, 2
          %v396 = vperm.slane %v391, 3
          %v433 = vunpack.c.l.b16 %v351
          %v434 = vunpack.c.l.b16 %v352
          %v435 = vunpack.c.l.b16 %v353
          %v436 = vunpack.c.l.b16 %v354
          %v437 = vunpack.c.l.b16 %v355
          %v438 = vunpack.c.l.b16 %v356
          %v439 = vunpack.c.l.b16 %v357
          %v440 = vunpack.c.l.b16 %v358
          %v441 = vunpack.c.l.b16 %v359
          %v442 = vunpack.c.l.b16 %v360
          %v443 = vunpack.c.l.b16 %v361
          %v444 = vunpack.c.l.b16 %v362
          %v445 = vunpack.c.l.b16 %v363
          %v446 = vunpack.c.l.b16 %v364
          %v447 = vunpack.c.l.b16 %v365
          %v448 = vunpack.c.l.b16 %v366
          %v449 = vunpack.c.l.b16 %v367
          %v450 = vunpack.c.l.b16 %v368
          %v451 = vunpack.c.l.b16 %v369
          %v452 = vunpack.c.l.b16 %v370
          %v453 = vunpack.c.l.b16 %v371
          %v454 = vunpack.c.l.b16 %v372
          %v455 = vunpack.c.l.b16 %v373
          %v456 = vunpack.c.l.b16 %v374
          %v457 = vunpack.c.l.b16 %v375
          %v458 = vunpack.c.l.b16 %v376
          %v459 = vunpack.c.l.b16 %v377
          %v460 = vunpack.c.l.b16 %v378
          %v461 = vunpack.c.l.b16 %v379
          %v462 = vunpack.c.l.b16 %v380
          %v463 = vunpack.c.l.b16 %v381
          %v464 = vunpack.c.l.b16 %v382
          %v465 = vpack.c.b16 %v434, %v433
          %v466 = vpack.c.b16 %v436, %v435
          %v467 = vpack.c.b16 %v438, %v437
          %v468 = vpack.c.b16 %v440, %v439
          %v469 = vpack.c.b16 %v442, %v441
          %v470 = vpack.c.b16 %v444, %v443
          %v471 = vpack.c.b16 %v446, %v445
          %v472 = vpack.c.b16 %v448, %v447
          %v473 = vpack.c.b16 %v450, %v449
          %v474 = vpack.c.b16 %v452, %v451
          %v475 = vpack.c.b16 %v454, %v453
          %v476 = vpack.c.b16 %v456, %v455
          %v477 = vpack.c.b16 %v458, %v457
          %v478 = vpack.c.b16 %v460, %v459
          %v479 = vpack.c.b16 %v462, %v461
          %v480 = vpack.c.b16 %v464, %v463
          %v489 = vunpack.c.l.b16 %v383
          %v490 = vunpack.c.h.b16 %v383
          %v491 = vunpack.c.l.b16 %v384
          %v492 = vunpack.c.h.b16 %v384
          %v493 = vunpack.c.l.b16 %v385
          %v494 = vunpack.c.h.b16 %v385
          %v495 = vunpack.c.l.b16 %v386
          %v496 = vunpack.c.h.b16 %v386
          %v497 = vunpack.c.l.b16 %v387
          %v498 = vunpack.c.h.b16 %v387
          %v499 = vunpack.c.l.b16 %v388
          %v500 = vunpack.c.h.b16 %v388
          %v501 = vunpack.c.l.b16 %v389
          %v502 = vunpack.c.h.b16 %v389
          %v503 = vunpack.c.l.b16 %v390
          %v504 = vunpack.c.h.b16 %v390
          %v505 = vpack.c.b16 %v493, %v489
          %v506 = vpack.c.b16 %v494, %v490
          %v507 = vpack.c.b16 %v495, %v491
          %v508 = vpack.c.b16 %v496, %v492
          %v509 = vpack.c.b16 %v501, %v497
          %v510 = vpack.c.b16 %v502, %v498
          %v511 = vpack.c.b16 %v503, %v499
          %v512 = vpack.c.b16 %v504, %v500
          %vm521 = vcmask 261120
          %v523 = vsel %vm521, %v465, 0
          %v526 = vsel %vm521, %v466, 0
          %v529 = vsel %vm521, %v467, 0
          %v532 = vsel %vm521, %v468, 0
          %v535 = vsel %vm521, %v469, 0
          %v538 = vsel %vm521, %v470, 0
          %v541 = vsel %vm521, %v471, 0
          %v544 = vsel %vm521, %v472, 0
          %v547 = vsel %vm521, %v473, 0
          %v550 = vsel %vm521, %v474, 0
          %v553 = vsel %vm521, %v475, 0
          %v556 = vsel %vm521, %v476, 0
          %v559 = vsel %vm521, %v477, 0
          %v562 = vsel %vm521, %v478, 0
          %v565 = vsel %vm521, %v479, 0
          %v568 = vsel %vm521, %v480, 0
          %570 = vmatpush.bf16.msra.mxu0 0
          %571 = vmatpush.bf16.msra.mxu0 0
          %572 = vmatpush.bf16.msra.mxu0 0
          %573 = vmatpush.bf16.msra.mxu0 0
          %574 = vmatpush.bf16.msra.mxu0 0
          %575 = vmatpush.bf16.msra.mxu0 0
          %576 = vmatpush.bf16.msra.mxu0 %v509
          %577 = vmatpush.bf16.msra.mxu0 %v505
          %578 = vmatmul.bf16.gmra.mxu0 %v523
          %v579 = vpop.f32.mrf.mxu0
          %v580 = vadd.f32 %v393, %v579
          %v581 = vpop.f32.mrf.mxu0
          %v582 = vadd.f32 %v393, %v581
          %583 = vmatmul.bf16.gmra.mxu0 %v526
          %v584 = vpop.f32.mrf.mxu0
          %v585 = vadd.f32 %v393, %v584
          %v586 = vpop.f32.mrf.mxu0
          %v587 = vadd.f32 %v393, %v586
          %588 = vmatmul.bf16.gmra.mxu0 %v529
          %v589 = vpop.f32.mrf.mxu0
          %v590 = vadd.f32 %v393, %v589
          %v591 = vpop.f32.mrf.mxu0
          %v592 = vadd.f32 %v393, %v591
          %593 = vmatmul.bf16.gmra.mxu0 %v532
          %v594 = vpop.f32.mrf.mxu0
          %v595 = vadd.f32 %v393, %v594
          %v596 = vpop.f32.mrf.mxu0
          %v597 = vadd.f32 %v393, %v596
          %598 = vmatmul.bf16.gmra.mxu0 %v535
          %v599 = vpop.f32.mrf.mxu0
          %v600 = vadd.f32 %v393, %v599
          %v601 = vpop.f32.mrf.mxu0
          %v602 = vadd.f32 %v393, %v601
          %603 = vmatmul.bf16.gmra.mxu0 %v538
          %v604 = vpop.f32.mrf.mxu0
          %v605 = vadd.f32 %v393, %v604
          %v606 = vpop.f32.mrf.mxu0
          %v607 = vadd.f32 %v393, %v606
          %608 = vmatmul.bf16.gmra.mxu0 %v541
          %v609 = vpop.f32.mrf.mxu0
          %v610 = vadd.f32 %v393, %v609
          %v611 = vpop.f32.mrf.mxu0
          %v612 = vadd.f32 %v393, %v611
          %613 = vmatmul.bf16.gmra.mxu0 %v544
          %v614 = vpop.f32.mrf.mxu0
          %v615 = vadd.f32 %v393, %v614
          %v616 = vpop.f32.mrf.mxu0
          %v617 = vadd.f32 %v393, %v616
          %618 = vmatmul.bf16.gmra.mxu0 %v547
          %v619 = vpop.f32.mrf.mxu0
          %v620 = vadd.f32 %v393, %v619
          %v621 = vpop.f32.mrf.mxu0
          %v622 = vadd.f32 %v393, %v621
          %623 = vmatmul.bf16.gmra.mxu0 %v550
          %v624 = vpop.f32.mrf.mxu0
          %v625 = vadd.f32 %v393, %v624
          %v626 = vpop.f32.mrf.mxu0
          %v627 = vadd.f32 %v393, %v626
          %628 = vmatmul.bf16.gmra.mxu0 %v553
          %v629 = vpop.f32.mrf.mxu0
          %v630 = vadd.f32 %v393, %v629
          %v631 = vpop.f32.mrf.mxu0
          %v632 = vadd.f32 %v393, %v631
          %633 = vmatmul.bf16.gmra.mxu0 %v556
          %v634 = vpop.f32.mrf.mxu0
          %v635 = vadd.f32 %v393, %v634
          %v636 = vpop.f32.mrf.mxu0
          %v637 = vadd.f32 %v393, %v636
          %638 = vmatmul.bf16.gmra.mxu0 %v559
          %v639 = vpop.f32.mrf.mxu0
          %v640 = vadd.f32 %v393, %v639
          %v641 = vpop.f32.mrf.mxu0
          %v642 = vadd.f32 %v393, %v641
          %643 = vmatmul.bf16.gmra.mxu0 %v562
          %v644 = vpop.f32.mrf.mxu0
          %v645 = vadd.f32 %v393, %v644
          %v646 = vpop.f32.mrf.mxu0
          %v647 = vadd.f32 %v393, %v646
          %648 = vmatmul.bf16.gmra.mxu0 %v565
          %v649 = vpop.f32.mrf.mxu0
          %v650 = vadd.f32 %v393, %v649
          %v651 = vpop.f32.mrf.mxu0
          %v652 = vadd.f32 %v393, %v651
          %653 = vmatmul.bf16.gmra.mxu0 %v568
          %v654 = vpop.f32.mrf.mxu0
          %v655 = vadd.f32 %v393, %v654
          %v656 = vpop.f32.mrf.mxu0
          %v657 = vadd.f32 %v393, %v656
          %658 = vdwg.mxu0
          %659 = vmatpush.bf16.msra.mxu0 0
          %660 = vmatpush.bf16.msra.mxu0 0
          %661 = vmatpush.bf16.msra.mxu0 0
          %662 = vmatpush.bf16.msra.mxu0 0
          %663 = vmatpush.bf16.msra.mxu0 0
          %664 = vmatpush.bf16.msra.mxu0 0
          %665 = vmatpush.bf16.msra.mxu0 %v510
          %666 = vmatpush.bf16.msra.mxu0 %v506
          %667 = vmatmul.bf16.gmra.mxu0 %v523
          %v668 = vpop.f32.mrf.mxu0
          %v669 = vadd.f32 %v394, %v668
          %v670 = vpop.f32.mrf.mxu0
          %v671 = vadd.f32 %v394, %v670
          %672 = vmatmul.bf16.gmra.mxu0 %v526
          %v673 = vpop.f32.mrf.mxu0
          %v674 = vadd.f32 %v394, %v673
          %v675 = vpop.f32.mrf.mxu0
          %v676 = vadd.f32 %v394, %v675
          %677 = vmatmul.bf16.gmra.mxu0 %v529
          %v678 = vpop.f32.mrf.mxu0
          %v679 = vadd.f32 %v394, %v678
          %v680 = vpop.f32.mrf.mxu0
          %v681 = vadd.f32 %v394, %v680
          %682 = vmatmul.bf16.gmra.mxu0 %v532
          %v683 = vpop.f32.mrf.mxu0
          %v684 = vadd.f32 %v394, %v683
          %v685 = vpop.f32.mrf.mxu0
          %v686 = vadd.f32 %v394, %v685
          %687 = vmatmul.bf16.gmra.mxu0 %v535
          %v688 = vpop.f32.mrf.mxu0
          %v689 = vadd.f32 %v394, %v688
          %v690 = vpop.f32.mrf.mxu0
          %v691 = vadd.f32 %v394, %v690
          %692 = vmatmul.bf16.gmra.mxu0 %v538
          %v693 = vpop.f32.mrf.mxu0
          %v694 = vadd.f32 %v394, %v693
          %v695 = vpop.f32.mrf.mxu0
          %v696 = vadd.f32 %v394, %v695
          %697 = vmatmul.bf16.gmra.mxu0 %v541
          %v698 = vpop.f32.mrf.mxu0
          %v699 = vadd.f32 %v394, %v698
          %v700 = vpop.f32.mrf.mxu0
          %v701 = vadd.f32 %v394, %v700
          %702 = vmatmul.bf16.gmra.mxu0 %v544
          %v703 = vpop.f32.mrf.mxu0
          %v704 = vadd.f32 %v394, %v703
          %v705 = vpop.f32.mrf.mxu0
          %v706 = vadd.f32 %v394, %v705
          %707 = vmatmul.bf16.gmra.mxu0 %v547
          %v708 = vpop.f32.mrf.mxu0
          %v709 = vadd.f32 %v394, %v708
          %v710 = vpop.f32.mrf.mxu0
          %v711 = vadd.f32 %v394, %v710
          %712 = vmatmul.bf16.gmra.mxu0 %v550
          %v713 = vpop.f32.mrf.mxu0
          %v714 = vadd.f32 %v394, %v713
          %v715 = vpop.f32.mrf.mxu0
          %v716 = vadd.f32 %v394, %v715
          %717 = vmatmul.bf16.gmra.mxu0 %v553
          %v718 = vpop.f32.mrf.mxu0
          %v719 = vadd.f32 %v394, %v718
          %v720 = vpop.f32.mrf.mxu0
          %v721 = vadd.f32 %v394, %v720
          %722 = vmatmul.bf16.gmra.mxu0 %v556
          %v723 = vpop.f32.mrf.mxu0
          %v724 = vadd.f32 %v394, %v723
          %v725 = vpop.f32.mrf.mxu0
          %v726 = vadd.f32 %v394, %v725
          %727 = vmatmul.bf16.gmra.mxu0 %v559
          %v728 = vpop.f32.mrf.mxu0
          %v729 = vadd.f32 %v394, %v728
          %v730 = vpop.f32.mrf.mxu0
          %v731 = vadd.f32 %v394, %v730
          %732 = vmatmul.bf16.gmra.mxu0 %v562
          %v733 = vpop.f32.mrf.mxu0
          %v734 = vadd.f32 %v394, %v733
          %v735 = vpop.f32.mrf.mxu0
          %v736 = vadd.f32 %v394, %v735
          %737 = vmatmul.bf16.gmra.mxu0 %v565
          %v738 = vpop.f32.mrf.mxu0
          %v739 = vadd.f32 %v394, %v738
          %v740 = vpop.f32.mrf.mxu0
          %v741 = vadd.f32 %v394, %v740
          %742 = vmatmul.bf16.gmra.mxu0 %v568
          %v743 = vpop.f32.mrf.mxu0
          %v744 = vadd.f32 %v394, %v743
          %v745 = vpop.f32.mrf.mxu0
          %v746 = vadd.f32 %v394, %v745
          %747 = vdwg.mxu0
          %748 = vmatpush.bf16.msra.mxu0 0
          %749 = vmatpush.bf16.msra.mxu0 0
          %750 = vmatpush.bf16.msra.mxu0 0
          %751 = vmatpush.bf16.msra.mxu0 0
          %752 = vmatpush.bf16.msra.mxu0 0
          %753 = vmatpush.bf16.msra.mxu0 0
          %754 = vmatpush.bf16.msra.mxu0 %v511
          %755 = vmatpush.bf16.msra.mxu0 %v507
          %756 = vmatmul.bf16.gmra.mxu0 %v523
          %v757 = vpop.f32.mrf.mxu0
          %v758 = vadd.f32 %v395, %v757
          %v759 = vpop.f32.mrf.mxu0
          %v760 = vadd.f32 %v395, %v759
          %761 = vmatmul.bf16.gmra.mxu0 %v526
          %v762 = vpop.f32.mrf.mxu0
          %v763 = vadd.f32 %v395, %v762
          %v764 = vpop.f32.mrf.mxu0
          %v765 = vadd.f32 %v395, %v764
          %766 = vmatmul.bf16.gmra.mxu0 %v529
          %v767 = vpop.f32.mrf.mxu0
          %v768 = vadd.f32 %v395, %v767
          %v769 = vpop.f32.mrf.mxu0
          %v770 = vadd.f32 %v395, %v769
          %771 = vmatmul.bf16.gmra.mxu0 %v532
          %v772 = vpop.f32.mrf.mxu0
          %v773 = vadd.f32 %v395, %v772
          %v774 = vpop.f32.mrf.mxu0
          %v775 = vadd.f32 %v395, %v774
          %776 = vmatmul.bf16.gmra.mxu0 %v535
          %v777 = vpop.f32.mrf.mxu0
          %v778 = vadd.f32 %v395, %v777
          %v779 = vpop.f32.mrf.mxu0
          %v780 = vadd.f32 %v395, %v779
          %781 = vmatmul.bf16.gmra.mxu0 %v538
          %v782 = vpop.f32.mrf.mxu0
          %v783 = vadd.f32 %v395, %v782
          %v784 = vpop.f32.mrf.mxu0
          %v785 = vadd.f32 %v395, %v784
          %786 = vmatmul.bf16.gmra.mxu0 %v541
          %v787 = vpop.f32.mrf.mxu0
          %v788 = vadd.f32 %v395, %v787
          %v789 = vpop.f32.mrf.mxu0
          %v790 = vadd.f32 %v395, %v789
          %791 = vmatmul.bf16.gmra.mxu0 %v544
          %v792 = vpop.f32.mrf.mxu0
          %v793 = vadd.f32 %v395, %v792
          %v794 = vpop.f32.mrf.mxu0
          %v795 = vadd.f32 %v395, %v794
          %796 = vmatmul.bf16.gmra.mxu0 %v547
          %v797 = vpop.f32.mrf.mxu0
          %v798 = vadd.f32 %v395, %v797
          %v799 = vpop.f32.mrf.mxu0
          %v800 = vadd.f32 %v395, %v799
          %801 = vmatmul.bf16.gmra.mxu0 %v550
          %v802 = vpop.f32.mrf.mxu0
          %v803 = vadd.f32 %v395, %v802
          %v804 = vpop.f32.mrf.mxu0
          %v805 = vadd.f32 %v395, %v804
          %806 = vmatmul.bf16.gmra.mxu0 %v553
          %v807 = vpop.f32.mrf.mxu0
          %v808 = vadd.f32 %v395, %v807
          %v809 = vpop.f32.mrf.mxu0
          %v810 = vadd.f32 %v395, %v809
          %811 = vmatmul.bf16.gmra.mxu0 %v556
          %v812 = vpop.f32.mrf.mxu0
          %v813 = vadd.f32 %v395, %v812
          %v814 = vpop.f32.mrf.mxu0
          %v815 = vadd.f32 %v395, %v814
          %816 = vmatmul.bf16.gmra.mxu0 %v559
          %v817 = vpop.f32.mrf.mxu0
          %v818 = vadd.f32 %v395, %v817
          %v819 = vpop.f32.mrf.mxu0
          %v820 = vadd.f32 %v395, %v819
          %821 = vmatmul.bf16.gmra.mxu0 %v562
          %v822 = vpop.f32.mrf.mxu0
          %v823 = vadd.f32 %v395, %v822
          %v824 = vpop.f32.mrf.mxu0
          %v825 = vadd.f32 %v395, %v824
          %826 = vmatmul.bf16.gmra.mxu0 %v565
          %v827 = vpop.f32.mrf.mxu0
          %v828 = vadd.f32 %v395, %v827
          %v829 = vpop.f32.mrf.mxu0
          %v830 = vadd.f32 %v395, %v829
          %831 = vmatmul.bf16.gmra.mxu0 %v568
          %v832 = vpop.f32.mrf.mxu0
          %v833 = vadd.f32 %v395, %v832
          %v834 = vpop.f32.mrf.mxu0
          %v835 = vadd.f32 %v395, %v834
          %836 = vdwg.mxu0
          %837 = vmatpush.bf16.msra.mxu0 0
          %838 = vmatpush.bf16.msra.mxu0 0
          %839 = vmatpush.bf16.msra.mxu0 0
          %840 = vmatpush.bf16.msra.mxu0 0
          %841 = vmatpush.bf16.msra.mxu0 0
          %842 = vmatpush.bf16.msra.mxu0 0
          %843 = vmatpush.bf16.msra.mxu0 %v512
          %844 = vmatpush.bf16.msra.mxu0 %v508
          %845 = vmatmul.bf16.gmra.mxu0 %v523
          %v846 = vpop.f32.mrf.mxu0
          %v847 = vadd.f32 %v396, %v846
          %v848 = vpop.f32.mrf.mxu0
          %v849 = vadd.f32 %v396, %v848
          %850 = vmatmul.bf16.gmra.mxu0 %v526
          %v851 = vpop.f32.mrf.mxu0
          %v852 = vadd.f32 %v396, %v851
          %v853 = vpop.f32.mrf.mxu0
          %v854 = vadd.f32 %v396, %v853
          %855 = vmatmul.bf16.gmra.mxu0 %v529
          %v856 = vpop.f32.mrf.mxu0
          %v857 = vadd.f32 %v396, %v856
          %v858 = vpop.f32.mrf.mxu0
          %v859 = vadd.f32 %v396, %v858
          %860 = vmatmul.bf16.gmra.mxu0 %v532
          %v861 = vpop.f32.mrf.mxu0
          %v862 = vadd.f32 %v396, %v861
          %v863 = vpop.f32.mrf.mxu0
          %v864 = vadd.f32 %v396, %v863
          %865 = vmatmul.bf16.gmra.mxu0 %v535
          %v866 = vpop.f32.mrf.mxu0
          %v867 = vadd.f32 %v396, %v866
          %v868 = vpop.f32.mrf.mxu0
          %v869 = vadd.f32 %v396, %v868
          %870 = vmatmul.bf16.gmra.mxu0 %v538
          %v871 = vpop.f32.mrf.mxu0
          %v872 = vadd.f32 %v396, %v871
          %v873 = vpop.f32.mrf.mxu0
          %v874 = vadd.f32 %v396, %v873
          %875 = vmatmul.bf16.gmra.mxu0 %v541
          %v876 = vpop.f32.mrf.mxu0
          %v877 = vadd.f32 %v396, %v876
          %v878 = vpop.f32.mrf.mxu0
          %v879 = vadd.f32 %v396, %v878
          %880 = vmatmul.bf16.gmra.mxu0 %v544
          %v881 = vpop.f32.mrf.mxu0
          %v882 = vadd.f32 %v396, %v881
          %v883 = vpop.f32.mrf.mxu0
          %v884 = vadd.f32 %v396, %v883
          %885 = vmatmul.bf16.gmra.mxu0 %v547
          %v886 = vpop.f32.mrf.mxu0
          %v887 = vadd.f32 %v396, %v886
          %v888 = vpop.f32.mrf.mxu0
          %v889 = vadd.f32 %v396, %v888
          %890 = vmatmul.bf16.gmra.mxu0 %v550
          %v891 = vpop.f32.mrf.mxu0
          %v892 = vadd.f32 %v396, %v891
          %v893 = vpop.f32.mrf.mxu0
          %v894 = vadd.f32 %v396, %v893
          %895 = vmatmul.bf16.gmra.mxu0 %v553
          %v896 = vpop.f32.mrf.mxu0
          %v897 = vadd.f32 %v396, %v896
          %v898 = vpop.f32.mrf.mxu0
          %v899 = vadd.f32 %v396, %v898
          %900 = vmatmul.bf16.gmra.mxu0 %v556
          %v901 = vpop.f32.mrf.mxu0
          %v902 = vadd.f32 %v396, %v901
          %v903 = vpop.f32.mrf.mxu0
          %v904 = vadd.f32 %v396, %v903
          %905 = vmatmul.bf16.gmra.mxu0 %v559
          %v906 = vpop.f32.mrf.mxu0
          %v907 = vadd.f32 %v396, %v906
          %v908 = vpop.f32.mrf.mxu0
          %v909 = vadd.f32 %v396, %v908
          %910 = vmatmul.bf16.gmra.mxu0 %v562
          %v911 = vpop.f32.mrf.mxu0
          %v912 = vadd.f32 %v396, %v911
          %v913 = vpop.f32.mrf.mxu0
          %v914 = vadd.f32 %v396, %v913
          %915 = vmatmul.bf16.gmra.mxu0 %v565
          %v916 = vpop.f32.mrf.mxu0
          %v917 = vadd.f32 %v396, %v916
          %v918 = vpop.f32.mrf.mxu0
          %v919 = vadd.f32 %v396, %v918
          %920 = vmatmul.bf16.gmra.mxu0 %v568
          %v921 = vpop.f32.mrf.mxu0
          %v922 = vadd.f32 %v396, %v921
          %v923 = vpop.f32.mrf.mxu0
          %v924 = vadd.f32 %v396, %v923
          %925 = vdwg.mxu0
          %v926 = vmax.f32 %v580, 0.0
          %v927 = vmax.f32 %v669, 0.0
          %v928 = vmax.f32 %v758, 0.0
          %v929 = vmax.f32 %v847, 0.0
          %v930 = vmax.f32 %v582, 0.0
          %v931 = vmax.f32 %v671, 0.0
          %v932 = vmax.f32 %v760, 0.0
          %v933 = vmax.f32 %v849, 0.0
          %v934 = vmax.f32 %v585, 0.0
          %v935 = vmax.f32 %v674, 0.0
          %v936 = vmax.f32 %v763, 0.0
          %v937 = vmax.f32 %v852, 0.0
          %v938 = vmax.f32 %v587, 0.0
          %v939 = vmax.f32 %v676, 0.0
          %v940 = vmax.f32 %v765, 0.0
          %v941 = vmax.f32 %v854, 0.0
          %v942 = vmax.f32 %v590, 0.0
          %v943 = vmax.f32 %v679, 0.0
          %v944 = vmax.f32 %v768, 0.0
          %v945 = vmax.f32 %v857, 0.0
          %v946 = vmax.f32 %v592, 0.0
          %v947 = vmax.f32 %v681, 0.0
          %v948 = vmax.f32 %v770, 0.0
          %v949 = vmax.f32 %v859, 0.0
          %v950 = vmax.f32 %v595, 0.0
          %v951 = vmax.f32 %v684, 0.0
          %v952 = vmax.f32 %v773, 0.0
          %v953 = vmax.f32 %v862, 0.0
          %v954 = vmax.f32 %v597, 0.0
          %v955 = vmax.f32 %v686, 0.0
          %v956 = vmax.f32 %v775, 0.0
          %v957 = vmax.f32 %v864, 0.0
          %v958 = vmax.f32 %v600, 0.0
          %v959 = vmax.f32 %v689, 0.0
          %v960 = vmax.f32 %v778, 0.0
          %v961 = vmax.f32 %v867, 0.0
          %v962 = vmax.f32 %v602, 0.0
          %v963 = vmax.f32 %v691, 0.0
          %v964 = vmax.f32 %v780, 0.0
          %v965 = vmax.f32 %v869, 0.0
          %v966 = vmax.f32 %v605, 0.0
          %v967 = vmax.f32 %v694, 0.0
          %v968 = vmax.f32 %v783, 0.0
          %v969 = vmax.f32 %v872, 0.0
          %v970 = vmax.f32 %v607, 0.0
          %v971 = vmax.f32 %v696, 0.0
          %v972 = vmax.f32 %v785, 0.0
          %v973 = vmax.f32 %v874, 0.0
          %v974 = vmax.f32 %v610, 0.0
          %v975 = vmax.f32 %v699, 0.0
          %v976 = vmax.f32 %v788, 0.0
          %v977 = vmax.f32 %v877, 0.0
          %v978 = vmax.f32 %v612, 0.0
          %v979 = vmax.f32 %v701, 0.0
          %v980 = vmax.f32 %v790, 0.0
          %v981 = vmax.f32 %v879, 0.0
          %v982 = vmax.f32 %v615, 0.0
          %v983 = vmax.f32 %v704, 0.0
          %v984 = vmax.f32 %v793, 0.0
          %v985 = vmax.f32 %v882, 0.0
          %v986 = vmax.f32 %v617, 0.0
          %v987 = vmax.f32 %v706, 0.0
          %v988 = vmax.f32 %v795, 0.0
          %v989 = vmax.f32 %v884, 0.0
          %v990 = vmax.f32 %v620, 0.0
          %v991 = vmax.f32 %v709, 0.0
          %v992 = vmax.f32 %v798, 0.0
          %v993 = vmax.f32 %v887, 0.0
          %v994 = vmax.f32 %v622, 0.0
          %v995 = vmax.f32 %v711, 0.0
          %v996 = vmax.f32 %v800, 0.0
          %v997 = vmax.f32 %v889, 0.0
          %v998 = vmax.f32 %v625, 0.0
          %v999 = vmax.f32 %v714, 0.0
          %v1000 = vmax.f32 %v803, 0.0
          %v1001 = vmax.f32 %v892, 0.0
          %v1002 = vmax.f32 %v627, 0.0
          %v1003 = vmax.f32 %v716, 0.0
          %v1004 = vmax.f32 %v805, 0.0
          %v1005 = vmax.f32 %v894, 0.0
          %v1006 = vmax.f32 %v630, 0.0
          %v1007 = vmax.f32 %v719, 0.0
          %v1008 = vmax.f32 %v808, 0.0
          %v1009 = vmax.f32 %v897, 0.0
          %v1010 = vmax.f32 %v632, 0.0
          %v1011 = vmax.f32 %v721, 0.0
          %v1012 = vmax.f32 %v810, 0.0
          %v1013 = vmax.f32 %v899, 0.0
          %v1014 = vmax.f32 %v635, 0.0
          %v1015 = vmax.f32 %v724, 0.0
          %v1016 = vmax.f32 %v813, 0.0
          %v1017 = vmax.f32 %v902, 0.0
          %v1018 = vmax.f32 %v637, 0.0
          %v1019 = vmax.f32 %v726, 0.0
          %v1020 = vmax.f32 %v815, 0.0
          %v1021 = vmax.f32 %v904, 0.0
          %v1022 = vmax.f32 %v640, 0.0
          %v1023 = vmax.f32 %v729, 0.0
          %v1024 = vmax.f32 %v818, 0.0
          %v1025 = vmax.f32 %v907, 0.0
          %v1026 = vmax.f32 %v642, 0.0
          %v1027 = vmax.f32 %v731, 0.0
          %v1028 = vmax.f32 %v820, 0.0
          %v1029 = vmax.f32 %v909, 0.0
          %v1030 = vmax.f32 %v645, 0.0
          %v1031 = vmax.f32 %v734, 0.0
          %v1032 = vmax.f32 %v823, 0.0
          %v1033 = vmax.f32 %v912, 0.0
          %v1034 = vmax.f32 %v647, 0.0
          %v1035 = vmax.f32 %v736, 0.0
          %v1036 = vmax.f32 %v825, 0.0
          %v1037 = vmax.f32 %v914, 0.0
          %v1038 = vmax.f32 %v650, 0.0
          %v1039 = vmax.f32 %v739, 0.0
          %v1040 = vmax.f32 %v828, 0.0
          %v1041 = vmax.f32 %v917, 0.0
          %v1042 = vmax.f32 %v652, 0.0
          %v1043 = vmax.f32 %v741, 0.0
          %v1044 = vmax.f32 %v830, 0.0
          %v1045 = vmax.f32 %v919, 0.0
          %v1046 = vmax.f32 %v655, 0.0
          %v1047 = vmax.f32 %v744, 0.0
          %v1048 = vmax.f32 %v833, 0.0
          %v1049 = vmax.f32 %v922, 0.0
          %v1050 = vmax.f32 %v657, 0.0
          %v1051 = vmax.f32 %v746, 0.0
          %v1052 = vmax.f32 %v835, 0.0
          %v1053 = vmax.f32 %v924, 0.0
          %v1054 = vpack.c.bf16 %v927, %v926
          %v1055 = vpack.c.bf16 %v929, %v928
          %v1056 = vpack.c.bf16 %v931, %v930
          %v1057 = vpack.c.bf16 %v933, %v932
          %v1058 = vpack.c.bf16 %v935, %v934
          %v1059 = vpack.c.bf16 %v937, %v936
          %v1060 = vpack.c.bf16 %v939, %v938
          %v1061 = vpack.c.bf16 %v941, %v940
          %v1062 = vpack.c.bf16 %v943, %v942
          %v1063 = vpack.c.bf16 %v945, %v944
          %v1064 = vpack.c.bf16 %v947, %v946
          %v1065 = vpack.c.bf16 %v949, %v948
          %v1066 = vpack.c.bf16 %v951, %v950
          %v1067 = vpack.c.bf16 %v953, %v952
          %v1068 = vpack.c.bf16 %v955, %v954
          %v1069 = vpack.c.bf16 %v957, %v956
          %v1070 = vpack.c.bf16 %v959, %v958
          %v1071 = vpack.c.bf16 %v961, %v960
          %v1072 = vpack.c.bf16 %v963, %v962
          %v1073 = vpack.c.bf16 %v965, %v964
          %v1074 = vpack.c.bf16 %v967, %v966
          %v1075 = vpack.c.bf16 %v969, %v968
          %v1076 = vpack.c.bf16 %v971, %v970
          %v1077 = vpack.c.bf16 %v973, %v972
          %v1078 = vpack.c.bf16 %v975, %v974
          %v1079 = vpack.c.bf16 %v977, %v976
          %v1080 = vpack.c.bf16 %v979, %v978
          %v1081 = vpack.c.bf16 %v981, %v980
          %v1082 = vpack.c.bf16 %v983, %v982
          %v1083 = vpack.c.bf16 %v985, %v984
          %v1084 = vpack.c.bf16 %v987, %v986
          %v1085 = vpack.c.bf16 %v989, %v988
          %v1086 = vpack.c.bf16 %v991, %v990
          %v1087 = vpack.c.bf16 %v993, %v992
          %v1088 = vpack.c.bf16 %v995, %v994
          %v1089 = vpack.c.bf16 %v997, %v996
          %v1090 = vpack.c.bf16 %v999, %v998
          %v1091 = vpack.c.bf16 %v1001, %v1000
          %v1092 = vpack.c.bf16 %v1003, %v1002
          %v1093 = vpack.c.bf16 %v1005, %v1004
          %v1094 = vpack.c.bf16 %v1007, %v1006
          %v1095 = vpack.c.bf16 %v1009, %v1008
          %v1096 = vpack.c.bf16 %v1011, %v1010
          %v1097 = vpack.c.bf16 %v1013, %v1012
          %v1098 = vpack.c.bf16 %v1015, %v1014
          %v1099 = vpack.c.bf16 %v1017, %v1016
          %v1100 = vpack.c.bf16 %v1019, %v1018
          %v1101 = vpack.c.bf16 %v1021, %v1020
          %v1102 = vpack.c.bf16 %v1023, %v1022
          %v1103 = vpack.c.bf16 %v1025, %v1024
          %v1104 = vpack.c.bf16 %v1027, %v1026
          %v1105 = vpack.c.bf16 %v1029, %v1028
          %v1106 = vpack.c.bf16 %v1031, %v1030
          %v1107 = vpack.c.bf16 %v1033, %v1032
          %v1108 = vpack.c.bf16 %v1035, %v1034
          %v1109 = vpack.c.bf16 %v1037, %v1036
          %v1110 = vpack.c.bf16 %v1039, %v1038
          %v1111 = vpack.c.bf16 %v1041, %v1040
          %v1112 = vpack.c.bf16 %v1043, %v1042
          %v1113 = vpack.c.bf16 %v1045, %v1044
          %v1114 = vpack.c.bf16 %v1047, %v1046
          %v1115 = vpack.c.bf16 %v1049, %v1048
          %v1116 = vpack.c.bf16 %v1051, %v1050
          %v1117 = vpack.c.bf16 %v1053, %v1052
          %1118 = vst [vmem:[#allocation2] sm:$0xff] %v1054
          %1119 = vst [vmem:[#allocation2 + $0x8] sm:$0xff] %v1055
          %1120 = vst [vmem:[#allocation2 + $0x10] sm:$0xff] %v1056
          %1121 = vst [vmem:[#allocation2 + $0x18] sm:$0xff] %v1057
          %1122 = vst [vmem:[#allocation2 + $0x20] sm:$0xff] %v1058
          %1123 = vst [vmem:[#allocation2 + $0x28] sm:$0xff] %v1059
          %1124 = vst [vmem:[#allocation2 + $0x30] sm:$0xff] %v1060
          %1125 = vst [vmem:[#allocation2 + $0x38] sm:$0xff] %v1061
          %1126 = vst [vmem:[#allocation2 + $0x40] sm:$0xff] %v1062
          %1127 = vst [vmem:[#allocation2 + $0x48] sm:$0xff] %v1063
          %1128 = vst [vmem:[#allocation2 + $0x50] sm:$0xff] %v1064
          %1129 = vst [vmem:[#allocation2 + $0x58] sm:$0xff] %v1065
          %1130 = vst [vmem:[#allocation2 + $0x60] sm:$0xff] %v1066
          %1131 = vst [vmem:[#allocation2 + $0x68] sm:$0xff] %v1067
          %1132 = vst [vmem:[#allocation2 + $0x70] sm:$0xff] %v1068
          %1133 = vst [vmem:[#allocation2 + $0x78] sm:$0xff] %v1069
          %1134 = vst [vmem:[#allocation2 + $0x80] sm:$0xff] %v1070
          %1135 = vst [vmem:[#allocation2 + $0x88] sm:$0xff] %v1071
          %1136 = vst [vmem:[#allocation2 + $0x90] sm:$0xff] %v1072
          %1137 = vst [vmem:[#allocation2 + $0x98] sm:$0xff] %v1073
          %1138 = vst [vmem:[#allocation2 + $0xa0] sm:$0xff] %v1074
          %1139 = vst [vmem:[#allocation2 + $0xa8] sm:$0xff] %v1075
          %1140 = vst [vmem:[#allocation2 + $0xb0] sm:$0xff] %v1076
          %1141 = vst [vmem:[#allocation2 + $0xb8] sm:$0xff] %v1077
          %1142 = vst [vmem:[#allocation2 + $0xc0] sm:$0xff] %v1078
          %1143 = vst [vmem:[#allocation2 + $0xc8] sm:$0xff] %v1079
          %1144 = vst [vmem:[#allocation2 + $0xd0] sm:$0xff] %v1080
          %1145 = vst [vmem:[#allocation2 + $0xd8] sm:$0xff] %v1081
          %1146 = vst [vmem:[#allocation2 + $0xe0] sm:$0xff] %v1082
          %1147 = vst [vmem:[#allocation2 + $0xe8] sm:$0xff] %v1083
          %1148 = vst [vmem:[#allocation2 + $0xf0] sm:$0xff] %v1084
          %1149 = vst [vmem:[#allocation2 + $0xf8] sm:$0xff] %v1085
          %1150 = vst [vmem:[#allocation2 + $0x100] sm:$0xff] %v1086
          %1151 = vst [vmem:[#allocation2 + $0x108] sm:$0xff] %v1087
          %1152 = vst [vmem:[#allocation2 + $0x110] sm:$0xff] %v1088
          %1153 = vst [vmem:[#allocation2 + $0x118] sm:$0xff] %v1089
          %1154 = vst [vmem:[#allocation2 + $0x120] sm:$0xff] %v1090
          %1155 = vst [vmem:[#allocation2 + $0x128] sm:$0xff] %v1091
          %1156 = vst [vmem:[#allocation2 + $0x130] sm:$0xff] %v1092
          %1157 = vst [vmem:[#allocation2 + $0x138] sm:$0xff] %v1093
          %1158 = vst [vmem:[#allocation2 + $0x140] sm:$0xff] %v1094
          %1159 = vst [vmem:[#allocation2 + $0x148] sm:$0xff] %v1095
          %1160 = vst [vmem:[#allocation2 + $0x150] sm:$0xff] %v1096
          %1161 = vst [vmem:[#allocation2 + $0x158] sm:$0xff] %v1097
          %1162 = vst [vmem:[#allocation2 + $0x160] sm:$0xff] %v1098
          %1163 = vst [vmem:[#allocation2 + $0x168] sm:$0xff] %v1099
          %1164 = vst [vmem:[#allocation2 + $0x170] sm:$0xff] %v1100
          %1165 = vst [vmem:[#allocation2 + $0x178] sm:$0xff] %v1101
          %1166 = vst [vmem:[#allocation2 + $0x180] sm:$0xff] %v1102
          %1167 = vst [vmem:[#allocation2 + $0x188] sm:$0xff] %v1103
          %1168 = vst [vmem:[#allocation2 + $0x190] sm:$0xff] %v1104
          %1169 = vst [vmem:[#allocation2 + $0x198] sm:$0xff] %v1105
          %1170 = vst [vmem:[#allocation2 + $0x1a0] sm:$0xff] %v1106
          %1171 = vst [vmem:[#allocation2 + $0x1a8] sm:$0xff] %v1107
          %1172 = vst [vmem:[#allocation2 + $0x1b0] sm:$0xff] %v1108
          %1173 = vst [vmem:[#allocation2 + $0x1b8] sm:$0xff] %v1109
          %1174 = vst [vmem:[#allocation2 + $0x1c0] sm:$0xff] %v1110
          %1175 = vst [vmem:[#allocation2 + $0x1c8] sm:$0xff] %v1111
          %1176 = vst [vmem:[#allocation2 + $0x1d0] sm:$0xff] %v1112
          %1177 = vst [vmem:[#allocation2 + $0x1d8] sm:$0xff] %v1113
          %1178 = vst [vmem:[#allocation2 + $0x1e0] sm:$0xff] %v1114
          %1179 = vst [vmem:[#allocation2 + $0x1e8] sm:$0xff] %v1115
          %1180 = vst [vmem:[#allocation2 + $0x1f0] sm:$0xff] %v1116
          %1181 = vst [vmem:[#allocation2 + $0x1f8] sm:$0xff] %v1117
        $region56: #{pva_box_feature_extractor.1} parent=51 // pred_fallthru
          _
        %v1182 = vld [vmem:[%s343] sm:$0xff]
        %v1183 = vld [vmem:[%s343 + $0x8] sm:$0xff]
        %v1184 = vld [vmem:[%s343 + $0x10] sm:$0xff]
        %v1185 = vld [vmem:[%s343 + $0x18] sm:$0xff]
        %v1186 = vld [vmem:[%s343 + $0x20] sm:$0xff]
        %v1187 = vld [vmem:[%s343 + $0x28] sm:$0xff]
        %v1188 = vld [vmem:[%s343 + $0x30] sm:$0xff]
        %v1189 = vld [vmem:[%s343 + $0x38] sm:$0xff]
        %v1190 = vld [vmem:[#allocation2] sm:$0xff]
        %v1191 = vld [vmem:[#allocation2 + $0x8] sm:$0xff]
        %v1192 = vld [vmem:[#allocation2 + $0x10] sm:$0xff]
        %v1193 = vld [vmem:[#allocation2 + $0x18] sm:$0xff]
        %v1194 = vld [vmem:[#allocation2 + $0x20] sm:$0xff]
        %v1195 = vld [vmem:[#allocation2 + $0x28] sm:$0xff]
        %v1196 = vld [vmem:[#allocation2 + $0x30] sm:$0xff]
        %v1197 = vld [vmem:[#allocation2 + $0x38] sm:$0xff]
        %v1198 = vld [vmem:[#allocation2 + $0x40] sm:$0xff]
        %v1199 = vld [vmem:[#allocation2 + $0x48] sm:$0xff]
        %v1200 = vld [vmem:[#allocation2 + $0x50] sm:$0xff]
        %v1201 = vld [vmem:[#allocation2 + $0x58] sm:$0xff]
        %v1202 = vld [vmem:[#allocation2 + $0x60] sm:$0xff]
        %v1203 = vld [vmem:[#allocation2 + $0x68] sm:$0xff]
        %v1204 = vld [vmem:[#allocation2 + $0x70] sm:$0xff]
        %v1205 = vld [vmem:[#allocation2 + $0x78] sm:$0xff]
        %v1206 = vld [vmem:[#allocation2 + $0x80] sm:$0xff]
        %v1207 = vld [vmem:[#allocation2 + $0x88] sm:$0xff]
        %v1208 = vld [vmem:[#allocation2 + $0x90] sm:$0xff]
        %v1209 = vld [vmem:[#allocation2 + $0x98] sm:$0xff]
        %v1210 = vld [vmem:[#allocation2 + $0xa0] sm:$0xff]
        %v1211 = vld [vmem:[#allocation2 + $0xa8] sm:$0xff]
        %v1212 = vld [vmem:[#allocation2 + $0xb0] sm:$0xff]
        %v1213 = vld [vmem:[#allocation2 + $0xb8] sm:$0xff]
        %v1214 = vld [vmem:[#allocation2 + $0xc0] sm:$0xff]
        %v1215 = vld [vmem:[#allocation2 + $0xc8] sm:$0xff]
        %v1216 = vld [vmem:[#allocation2 + $0xd0] sm:$0xff]
        %v1217 = vld [vmem:[#allocation2 + $0xd8] sm:$0xff]
        %v1218 = vld [vmem:[#allocation2 + $0xe0] sm:$0xff]
        %v1219 = vld [vmem:[#allocation2 + $0xe8] sm:$0xff]
        %v1220 = vld [vmem:[#allocation2 + $0xf0] sm:$0xff]
        %v1221 = vld [vmem:[#allocation2 + $0xf8] sm:$0xff]
        %v1222 = vld [vmem:[#allocation2 + $0x100] sm:$0xff]
        %v1223 = vld [vmem:[#allocation2 + $0x108] sm:$0xff]
        %v1224 = vld [vmem:[#allocation2 + $0x110] sm:$0xff]
        %v1225 = vld [vmem:[#allocation2 + $0x118] sm:$0xff]
        %v1226 = vld [vmem:[#allocation2 + $0x120] sm:$0xff]
        %v1227 = vld [vmem:[#allocation2 + $0x128] sm:$0xff]
        %v1228 = vld [vmem:[#allocation2 + $0x130] sm:$0xff]
        %v1229 = vld [vmem:[#allocation2 + $0x138] sm:$0xff]
        %v1230 = vld [vmem:[#allocation2 + $0x140] sm:$0xff]
        %v1231 = vld [vmem:[#allocation2 + $0x148] sm:$0xff]
        %v1232 = vld [vmem:[#allocation2 + $0x150] sm:$0xff]
        %v1233 = vld [vmem:[#allocation2 + $0x158] sm:$0xff]
        %v1234 = vld [vmem:[#allocation2 + $0x160] sm:$0xff]
        %v1235 = vld [vmem:[#allocation2 + $0x168] sm:$0xff]
        %v1236 = vld [vmem:[#allocation2 + $0x170] sm:$0xff]
        %v1237 = vld [vmem:[#allocation2 + $0x178] sm:$0xff]
        %v1238 = vld [vmem:[#allocation2 + $0x180] sm:$0xff]
        %v1239 = vld [vmem:[#allocation2 + $0x188] sm:$0xff]
        %v1240 = vld [vmem:[#allocation2 + $0x190] sm:$0xff]
        %v1241 = vld [vmem:[#allocation2 + $0x198] sm:$0xff]
        %v1242 = vld [vmem:[#allocation2 + $0x1a0] sm:$0xff]
        %v1243 = vld [vmem:[#allocation2 + $0x1a8] sm:$0xff]
        %v1244 = vld [vmem:[#allocation2 + $0x1b0] sm:$0xff]
        %v1245 = vld [vmem:[#allocation2 + $0x1b8] sm:$0xff]
        %v1246 = vld [vmem:[#allocation2 + $0x1c0] sm:$0xff]
        %v1247 = vld [vmem:[#allocation2 + $0x1c8] sm:$0xff]
        %v1248 = vld [vmem:[#allocation2 + $0x1d0] sm:$0xff]
        %v1249 = vld [vmem:[#allocation2 + $0x1d8] sm:$0xff]
        %v1250 = vld [vmem:[#allocation2 + $0x1e0] sm:$0xff]
        %v1251 = vld [vmem:[#allocation2 + $0x1e8] sm:$0xff]
        %v1252 = vld [vmem:[#allocation2 + $0x1f0] sm:$0xff]
        %v1253 = vld [vmem:[#allocation2 + $0x1f8] sm:$0xff]
        %v1262 = vunpack.c.l.b16 %v1182
        %v1263 = vunpack.c.h.b16 %v1182
        %v1264 = vunpack.c.l.b16 %v1183
        %v1265 = vunpack.c.h.b16 %v1183
        %v1266 = vunpack.c.l.b16 %v1184
        %v1267 = vunpack.c.h.b16 %v1184
        %v1268 = vunpack.c.l.b16 %v1185
        %v1269 = vunpack.c.h.b16 %v1185
        %v1270 = vunpack.c.l.b16 %v1186
        %v1271 = vunpack.c.h.b16 %v1186
        %v1272 = vunpack.c.l.b16 %v1187
        %v1273 = vunpack.c.h.b16 %v1187
        %v1274 = vunpack.c.l.b16 %v1188
        %v1275 = vunpack.c.h.b16 %v1188
        %v1276 = vunpack.c.l.b16 %v1189
        %v1277 = vunpack.c.h.b16 %v1189
        %v1278 = vpack.c.b16 %v1264, %v1262
        %v1279 = vpack.c.b16 %v1265, %v1263
        %v1280 = vpack.c.b16 %v1268, %v1266
        %v1281 = vpack.c.b16 %v1269, %v1267
        %v1282 = vpack.c.b16 %v1272, %v1270
        %v1283 = vpack.c.b16 %v1273, %v1271
        %v1284 = vpack.c.b16 %v1276, %v1274
        %v1285 = vpack.c.b16 %v1277, %v1275
        %v1358 = vunpack.c.l.b16 %v1190
        %v1359 = vunpack.c.h.b16 %v1190
        %v1360 = vunpack.c.l.b16 %v1191
        %v1361 = vunpack.c.h.b16 %v1191
        %v1362 = vunpack.c.l.b16 %v1192
        %v1363 = vunpack.c.h.b16 %v1192
        %v1364 = vunpack.c.l.b16 %v1193
        %v1365 = vunpack.c.h.b16 %v1193
        %v1366 = vunpack.c.l.b16 %v1194
        %v1367 = vunpack.c.h.b16 %v1194
        %v1368 = vunpack.c.l.b16 %v1195
        %v1369 = vunpack.c.h.b16 %v1195
        %v1370 = vunpack.c.l.b16 %v1196
        %v1371 = vunpack.c.h.b16 %v1196
        %v1372 = vunpack.c.l.b16 %v1197
        %v1373 = vunpack.c.h.b16 %v1197
        %v1374 = vunpack.c.l.b16 %v1198
        %v1375 = vunpack.c.h.b16 %v1198
        %v1376 = vunpack.c.l.b16 %v1199
        %v1377 = vunpack.c.h.b16 %v1199
        %v1378 = vunpack.c.l.b16 %v1200
        %v1379 = vunpack.c.h.b16 %v1200
        %v1380 = vunpack.c.l.b16 %v1201
        %v1381 = vunpack.c.h.b16 %v1201
        %v1382 = vunpack.c.l.b16 %v1202
        %v1383 = vunpack.c.h.b16 %v1202
        %v1384 = vunpack.c.l.b16 %v1203
        %v1385 = vunpack.c.h.b16 %v1203
        %v1386 = vunpack.c.l.b16 %v1204
        %v1387 = vunpack.c.h.b16 %v1204
        %v1388 = vunpack.c.l.b16 %v1205
        %v1389 = vunpack.c.h.b16 %v1205
        %v1390 = vunpack.c.l.b16 %v1206
        %v1391 = vunpack.c.h.b16 %v1206
        %v1392 = vunpack.c.l.b16 %v1207
        %v1393 = vunpack.c.h.b16 %v1207
        %v1394 = vunpack.c.l.b16 %v1208
        %v1395 = vunpack.c.h.b16 %v1208
        %v1396 = vunpack.c.l.b16 %v1209
        %v1397 = vunpack.c.h.b16 %v1209
        %v1398 = vunpack.c.l.b16 %v1210
        %v1399 = vunpack.c.h.b16 %v1210
        %v1400 = vunpack.c.l.b16 %v1211
        %v1401 = vunpack.c.h.b16 %v1211
        %v1402 = vunpack.c.l.b16 %v1212
        %v1403 = vunpack.c.h.b16 %v1212
        %v1404 = vunpack.c.l.b16 %v1213
        %v1405 = vunpack.c.h.b16 %v1213
        %v1406 = vunpack.c.l.b16 %v1214
        %v1407 = vunpack.c.h.b16 %v1214
        %v1408 = vunpack.c.l.b16 %v1215
        %v1409 = vunpack.c.h.b16 %v1215
        %v1410 = vunpack.c.l.b16 %v1216
        %v1411 = vunpack.c.h.b16 %v1216
        %v1412 = vunpack.c.l.b16 %v1217
        %v1413 = vunpack.c.h.b16 %v1217
        %v1414 = vunpack.c.l.b16 %v1218
        %v1415 = vunpack.c.h.b16 %v1218
        %v1416 = vunpack.c.l.b16 %v1219
        %v1417 = vunpack.c.h.b16 %v1219
        %v1418 = vunpack.c.l.b16 %v1220
        %v1419 = vunpack.c.h.b16 %v1220
        %v1420 = vunpack.c.l.b16 %v1221
        %v1421 = vunpack.c.h.b16 %v1221
        %v1422 = vunpack.c.l.b16 %v1222
        %v1423 = vunpack.c.h.b16 %v1222
        %v1424 = vunpack.c.l.b16 %v1223
        %v1425 = vunpack.c.h.b16 %v1223
        %v1426 = vunpack.c.l.b16 %v1224
        %v1427 = vunpack.c.h.b16 %v1224
        %v1428 = vunpack.c.l.b16 %v1225
        %v1429 = vunpack.c.h.b16 %v1225
        %v1430 = vunpack.c.l.b16 %v1226
        %v1431 = vunpack.c.h.b16 %v1226
        %v1432 = vunpack.c.l.b16 %v1227
        %v1433 = vunpack.c.h.b16 %v1227
        %v1434 = vunpack.c.l.b16 %v1228
        %v1435 = vunpack.c.h.b16 %v1228
        %v1436 = vunpack.c.l.b16 %v1229
        %v1437 = vunpack.c.h.b16 %v1229
        %v1438 = vunpack.c.l.b16 %v1230
        %v1439 = vunpack.c.h.b16 %v1230
        %v1440 = vunpack.c.l.b16 %v1231
        %v1441 = vunpack.c.h.b16 %v1231
        %v1442 = vunpack.c.l.b16 %v1232
        %v1443 = vunpack.c.h.b16 %v1232
        %v1444 = vunpack.c.l.b16 %v1233
        %v1445 = vunpack.c.h.b16 %v1233
        %v1446 = vunpack.c.l.b16 %v1234
        %v1447 = vunpack.c.h.b16 %v1234
        %v1448 = vunpack.c.l.b16 %v1235
        %v1449 = vunpack.c.h.b16 %v1235
        %v1450 = vunpack.c.l.b16 %v1236
        %v1451 = vunpack.c.h.b16 %v1236
        %v1452 = vunpack.c.l.b16 %v1237
        %v1453 = vunpack.c.h.b16 %v1237
        %v1454 = vunpack.c.l.b16 %v1238
        %v1455 = vunpack.c.h.b16 %v1238
        %v1456 = vunpack.c.l.b16 %v1239
        %v1457 = vunpack.c.h.b16 %v1239
        %v1458 = vunpack.c.l.b16 %v1240
        %v1459 = vunpack.c.h.b16 %v1240
        %v1460 = vunpack.c.l.b16 %v1241
        %v1461 = vunpack.c.h.b16 %v1241
        %v1462 = vunpack.c.l.b16 %v1242
        %v1463 = vunpack.c.h.b16 %v1242
        %v1464 = vunpack.c.l.b16 %v1243
        %v1465 = vunpack.c.h.b16 %v1243
        %v1466 = vunpack.c.l.b16 %v1244
        %v1467 = vunpack.c.h.b16 %v1244
        %v1468 = vunpack.c.l.b16 %v1245
        %v1469 = vunpack.c.h.b16 %v1245
        %v1470 = vunpack.c.l.b16 %v1246
        %v1471 = vunpack.c.h.b16 %v1246
        %v1472 = vunpack.c.l.b16 %v1247
        %v1473 = vunpack.c.h.b16 %v1247
        %v1474 = vunpack.c.l.b16 %v1248
        %v1475 = vunpack.c.h.b16 %v1248
        %v1476 = vunpack.c.l.b16 %v1249
        %v1477 = vunpack.c.h.b16 %v1249
        %v1478 = vunpack.c.l.b16 %v1250
        %v1479 = vunpack.c.h.b16 %v1250
        %v1480 = vunpack.c.l.b16 %v1251
        %v1481 = vunpack.c.h.b16 %v1251
        %v1482 = vunpack.c.l.b16 %v1252
        %v1483 = vunpack.c.h.b16 %v1252
        %v1484 = vunpack.c.l.b16 %v1253
        %v1485 = vunpack.c.h.b16 %v1253
        %v1486 = vpack.c.b16 %v1362, %v1358
        %v1487 = vpack.c.b16 %v1363, %v1359
        %v1488 = vpack.c.b16 %v1364, %v1360
        %v1489 = vpack.c.b16 %v1365, %v1361
        %v1490 = vpack.c.b16 %v1370, %v1366
        %v1491 = vpack.c.b16 %v1371, %v1367
        %v1492 = vpack.c.b16 %v1372, %v1368
        %v1493 = vpack.c.b16 %v1373, %v1369
        %v1494 = vpack.c.b16 %v1378, %v1374
        %v1495 = vpack.c.b16 %v1379, %v1375
        %v1496 = vpack.c.b16 %v1380, %v1376
        %v1497 = vpack.c.b16 %v1381, %v1377
        %v1498 = vpack.c.b16 %v1386, %v1382
        %v1499 = vpack.c.b16 %v1387, %v1383
        %v1500 = vpack.c.b16 %v1388, %v1384
        %v1501 = vpack.c.b16 %v1389, %v1385
        %v1502 = vpack.c.b16 %v1394, %v1390
        %v1503 = vpack.c.b16 %v1395, %v1391
        %v1504 = vpack.c.b16 %v1396, %v1392
        %v1505 = vpack.c.b16 %v1397, %v1393
        %v1506 = vpack.c.b16 %v1402, %v1398
        %v1507 = vpack.c.b16 %v1403, %v1399
        %v1508 = vpack.c.b16 %v1404, %v1400
        %v1509 = vpack.c.b16 %v1405, %v1401
        %v1510 = vpack.c.b16 %v1410, %v1406
        %v1511 = vpack.c.b16 %v1411, %v1407
        %v1512 = vpack.c.b16 %v1412, %v1408
        %v1513 = vpack.c.b16 %v1413, %v1409
        %v1514 = vpack.c.b16 %v1418, %v1414
        %v1515 = vpack.c.b16 %v1419, %v1415
        %v1516 = vpack.c.b16 %v1420, %v1416
        %v1517 = vpack.c.b16 %v1421, %v1417
        %v1518 = vpack.c.b16 %v1426, %v1422
        %v1519 = vpack.c.b16 %v1427, %v1423
        %v1520 = vpack.c.b16 %v1428, %v1424
        %v1521 = vpack.c.b16 %v1429, %v1425
        %v1522 = vpack.c.b16 %v1434, %v1430
        %v1523 = vpack.c.b16 %v1435, %v1431
        %v1524 = vpack.c.b16 %v1436, %v1432
        %v1525 = vpack.c.b16 %v1437, %v1433
        %v1526 = vpack.c.b16 %v1442, %v1438
        %v1527 = vpack.c.b16 %v1443, %v1439
        %v1528 = vpack.c.b16 %v1444, %v1440
        %v1529 = vpack.c.b16 %v1445, %v1441
        %v1530 = vpack.c.b16 %v1450, %v1446
        %v1531 = vpack.c.b16 %v1451, %v1447
        %v1532 = vpack.c.b16 %v1452, %v1448
        %v1533 = vpack.c.b16 %v1453, %v1449
        %v1534 = vpack.c.b16 %v1458, %v1454
        %v1535 = vpack.c.b16 %v1459, %v1455
        %v1536 = vpack.c.b16 %v1460, %v1456
        %v1537 = vpack.c.b16 %v1461, %v1457
        %v1538 = vpack.c.b16 %v1466, %v1462
        %v1539 = vpack.c.b16 %v1467, %v1463
        %v1540 = vpack.c.b16 %v1468, %v1464
        %v1541 = vpack.c.b16 %v1469, %v1465
        %v1542 = vpack.c.b16 %v1474, %v1470
        %v1543 = vpack.c.b16 %v1475, %v1471
        %v1544 = vpack.c.b16 %v1476, %v1472
        %v1545 = vpack.c.b16 %v1477, %v1473
        %v1546 = vpack.c.b16 %v1482, %v1478
        %v1547 = vpack.c.b16 %v1483, %v1479
        %v1548 = vpack.c.b16 %v1484, %v1480
        %v1549 = vpack.c.b16 %v1485, %v1481
        %1614 = vmatpush.bf16.msra.mxu0 %v1514
        %1615 = vmatpush.bf16.msra.mxu0 %v1510
        %1616 = vmatpush.bf16.msra.mxu0 %v1506
        %1617 = vmatpush.bf16.msra.mxu0 %v1502
        %1618 = vmatpush.bf16.msra.mxu0 %v1498
        %1619 = vmatpush.bf16.msra.mxu0 %v1494
        %1620 = vmatpush.bf16.msra.mxu0 %v1490
        %1621 = vmatpush.bf16.msra.mxu0 %v1486
        %1622 = vmatmul.bf16.gmra.mxu0 %v1278
        %v1623 = vpop.f32.mrf.mxu0
        %v1624 = vadd.f32 0.0, %v1623
        %v1625 = vpop.f32.mrf.mxu0
        %v1626 = vadd.f32 0.0, %v1625
        %1627 = vmatmul.bf16.gmra.mxu0 %v1280
        %v1628 = vpop.f32.mrf.mxu0
        %v1629 = vadd.f32 0.0, %v1628
        %v1630 = vpop.f32.mrf.mxu0
        %v1631 = vadd.f32 0.0, %v1630
        %1632 = vmatmul.bf16.gmra.mxu0 %v1282
        %v1633 = vpop.f32.mrf.mxu0
        %v1634 = vadd.f32 0.0, %v1633
        %v1635 = vpop.f32.mrf.mxu0
        %v1636 = vadd.f32 0.0, %v1635
        %1637 = vmatmul.bf16.gmra.mxu0 %v1284
        %v1638 = vpop.f32.mrf.mxu0
        %v1639 = vadd.f32 0.0, %v1638
        %v1640 = vpop.f32.mrf.mxu0
        %v1641 = vadd.f32 0.0, %v1640
        %1642 = vdwg.mxu0
        %1643 = vmatpush.bf16.msra.mxu0 %v1546
        %1644 = vmatpush.bf16.msra.mxu0 %v1542
        %1645 = vmatpush.bf16.msra.mxu0 %v1538
        %1646 = vmatpush.bf16.msra.mxu0 %v1534
        %1647 = vmatpush.bf16.msra.mxu0 %v1530
        %1648 = vmatpush.bf16.msra.mxu0 %v1526
        %1649 = vmatpush.bf16.msra.mxu0 %v1522
        %1650 = vmatpush.bf16.msra.mxu0 %v1518
        %1651 = vmatmul.bf16.gmra.mxu0 %v1279
        %v1652 = vpop.f32.mrf.mxu0
        %v1653 = vadd.f32 %v1624, %v1652
        %v1654 = vpop.f32.mrf.mxu0
        %v1655 = vadd.f32 %v1626, %v1654
        %1656 = vmatmul.bf16.gmra.mxu0 %v1281
        %v1657 = vpop.f32.mrf.mxu0
        %v1658 = vadd.f32 %v1629, %v1657
        %v1659 = vpop.f32.mrf.mxu0
        %v1660 = vadd.f32 %v1631, %v1659
        %1661 = vmatmul.bf16.gmra.mxu0 %v1283
        %v1662 = vpop.f32.mrf.mxu0
        %v1663 = vadd.f32 %v1634, %v1662
        %v1664 = vpop.f32.mrf.mxu0
        %v1665 = vadd.f32 %v1636, %v1664
        %1666 = vmatmul.bf16.gmra.mxu0 %v1285
        %v1667 = vpop.f32.mrf.mxu0
        %v1668 = vadd.f32 %v1639, %v1667
        %v1669 = vpop.f32.mrf.mxu0
        %v1670 = vadd.f32 %v1641, %v1669
        %1671 = vdwg.mxu0
        %1672 = vmatpush.bf16.msra.mxu0 %v1515
        %1673 = vmatpush.bf16.msra.mxu0 %v1511
        %1674 = vmatpush.bf16.msra.mxu0 %v1507
        %1675 = vmatpush.bf16.msra.mxu0 %v1503
        %1676 = vmatpush.bf16.msra.mxu0 %v1499
        %1677 = vmatpush.bf16.msra.mxu0 %v1495
        %1678 = vmatpush.bf16.msra.mxu0 %v1491
        %1679 = vmatpush.bf16.msra.mxu0 %v1487
        %1680 = vmatmul.bf16.gmra.mxu0 %v1278
        %v1681 = vpop.f32.mrf.mxu0
        %v1682 = vadd.f32 0.0, %v1681
        %v1683 = vpop.f32.mrf.mxu0
        %v1684 = vadd.f32 0.0, %v1683
        %1685 = vmatmul.bf16.gmra.mxu0 %v1280
        %v1686 = vpop.f32.mrf.mxu0
        %v1687 = vadd.f32 0.0, %v1686
        %v1688 = vpop.f32.mrf.mxu0
        %v1689 = vadd.f32 0.0, %v1688
        %1690 = vmatmul.bf16.gmra.mxu0 %v1282
        %v1691 = vpop.f32.mrf.mxu0
        %v1692 = vadd.f32 0.0, %v1691
        %v1693 = vpop.f32.mrf.mxu0
        %v1694 = vadd.f32 0.0, %v1693
        %1695 = vmatmul.bf16.gmra.mxu0 %v1284
        %v1696 = vpop.f32.mrf.mxu0
        %v1697 = vadd.f32 0.0, %v1696
        %v1698 = vpop.f32.mrf.mxu0
        %v1699 = vadd.f32 0.0, %v1698
        %1700 = vdwg.mxu0
        %1701 = vmatpush.bf16.msra.mxu0 %v1547
        %1702 = vmatpush.bf16.msra.mxu0 %v1543
        %1703 = vmatpush.bf16.msra.mxu0 %v1539
        %1704 = vmatpush.bf16.msra.mxu0 %v1535
        %1705 = vmatpush.bf16.msra.mxu0 %v1531
        %1706 = vmatpush.bf16.msra.mxu0 %v1527
        %1707 = vmatpush.bf16.msra.mxu0 %v1523
        %1708 = vmatpush.bf16.msra.mxu0 %v1519
        %1709 = vmatmul.bf16.gmra.mxu0 %v1279
        %v1710 = vpop.f32.mrf.mxu0
        %v1711 = vadd.f32 %v1682, %v1710
        %v1712 = vpop.f32.mrf.mxu0
        %v1713 = vadd.f32 %v1684, %v1712
        %1714 = vmatmul.bf16.gmra.mxu0 %v1281
        %v1715 = vpop.f32.mrf.mxu0
        %v1716 = vadd.f32 %v1687, %v1715
        %v1717 = vpop.f32.mrf.mxu0
        %v1718 = vadd.f32 %v1689, %v1717
        %1719 = vmatmul.bf16.gmra.mxu0 %v1283
        %v1720 = vpop.f32.mrf.mxu0
        %v1721 = vadd.f32 %v1692, %v1720
        %v1722 = vpop.f32.mrf.mxu0
        %v1723 = vadd.f32 %v1694, %v1722
        %1724 = vmatmul.bf16.gmra.mxu0 %v1285
        %v1725 = vpop.f32.mrf.mxu0
        %v1726 = vadd.f32 %v1697, %v1725
        %v1727 = vpop.f32.mrf.mxu0
        %v1728 = vadd.f32 %v1699, %v1727
        %1729 = vdwg.mxu0
        %1730 = vmatpush.bf16.msra.mxu0 %v1516
        %1731 = vmatpush.bf16.msra.mxu0 %v1512
        %1732 = vmatpush.bf16.msra.mxu0 %v1508
        %1733 = vmatpush.bf16.msra.mxu0 %v1504
        %1734 = vmatpush.bf16.msra.mxu0 %v1500
        %1735 = vmatpush.bf16.msra.mxu0 %v1496
        %1736 = vmatpush.bf16.msra.mxu0 %v1492
        %1737 = vmatpush.bf16.msra.mxu0 %v1488
        %1738 = vmatmul.bf16.gmra.mxu0 %v1278
        %v1739 = vpop.f32.mrf.mxu0
        %v1740 = vadd.f32 0.0, %v1739
        %v1741 = vpop.f32.mrf.mxu0
        %v1742 = vadd.f32 0.0, %v1741
        %1743 = vmatmul.bf16.gmra.mxu0 %v1280
        %v1744 = vpop.f32.mrf.mxu0
        %v1745 = vadd.f32 0.0, %v1744
        %v1746 = vpop.f32.mrf.mxu0
        %v1747 = vadd.f32 0.0, %v1746
        %1748 = vmatmul.bf16.gmra.mxu0 %v1282
        %v1749 = vpop.f32.mrf.mxu0
        %v1750 = vadd.f32 0.0, %v1749
        %v1751 = vpop.f32.mrf.mxu0
        %v1752 = vadd.f32 0.0, %v1751
        %1753 = vmatmul.bf16.gmra.mxu0 %v1284
        %v1754 = vpop.f32.mrf.mxu0
        %v1755 = vadd.f32 0.0, %v1754
        %v1756 = vpop.f32.mrf.mxu0
        %v1757 = vadd.f32 0.0, %v1756
        %1758 = vdwg.mxu0
        %1759 = vmatpush.bf16.msra.mxu0 %v1548
        %1760 = vmatpush.bf16.msra.mxu0 %v1544
        %1761 = vmatpush.bf16.msra.mxu0 %v1540
        %1762 = vmatpush.bf16.msra.mxu0 %v1536
        %1763 = vmatpush.bf16.msra.mxu0 %v1532
        %1764 = vmatpush.bf16.msra.mxu0 %v1528
        %1765 = vmatpush.bf16.msra.mxu0 %v1524
        %1766 = vmatpush.bf16.msra.mxu0 %v1520
        %1767 = vmatmul.bf16.gmra.mxu0 %v1279
        %v1768 = vpop.f32.mrf.mxu0
        %v1769 = vadd.f32 %v1740, %v1768
        %v1770 = vpop.f32.mrf.mxu0
        %v1771 = vadd.f32 %v1742, %v1770
        %1772 = vmatmul.bf16.gmra.mxu0 %v1281
        %v1773 = vpop.f32.mrf.mxu0
        %v1774 = vadd.f32 %v1745, %v1773
        %v1775 = vpop.f32.mrf.mxu0
        %v1776 = vadd.f32 %v1747, %v1775
        %1777 = vmatmul.bf16.gmra.mxu0 %v1283
        %v1778 = vpop.f32.mrf.mxu0
        %v1779 = vadd.f32 %v1750, %v1778
        %v1780 = vpop.f32.mrf.mxu0
        %v1781 = vadd.f32 %v1752, %v1780
        %1782 = vmatmul.bf16.gmra.mxu0 %v1285
        %v1783 = vpop.f32.mrf.mxu0
        %v1784 = vadd.f32 %v1755, %v1783
        %v1785 = vpop.f32.mrf.mxu0
        %v1786 = vadd.f32 %v1757, %v1785
        %1787 = vdwg.mxu0
        %1788 = vmatpush.bf16.msra.mxu0 %v1517
        %1789 = vmatpush.bf16.msra.mxu0 %v1513
        %1790 = vmatpush.bf16.msra.mxu0 %v1509
        %1791 = vmatpush.bf16.msra.mxu0 %v1505
        %1792 = vmatpush.bf16.msra.mxu0 %v1501
        %1793 = vmatpush.bf16.msra.mxu0 %v1497
        %1794 = vmatpush.bf16.msra.mxu0 %v1493
        %1795 = vmatpush.bf16.msra.mxu0 %v1489
        %1796 = vmatmul.bf16.gmra.mxu0 %v1278
        %v1797 = vpop.f32.mrf.mxu0
        %v1798 = vadd.f32 0.0, %v1797
        %v1799 = vpop.f32.mrf.mxu0
        %v1800 = vadd.f32 0.0, %v1799
        %1801 = vmatmul.bf16.gmra.mxu0 %v1280
        %v1802 = vpop.f32.mrf.mxu0
        %v1803 = vadd.f32 0.0, %v1802
        %v1804 = vpop.f32.mrf.mxu0
        %v1805 = vadd.f32 0.0, %v1804
        %1806 = vmatmul.bf16.gmra.mxu0 %v1282
        %v1807 = vpop.f32.mrf.mxu0
        %v1808 = vadd.f32 0.0, %v1807
        %v1809 = vpop.f32.mrf.mxu0
        %v1810 = vadd.f32 0.0, %v1809
        %1811 = vmatmul.bf16.gmra.mxu0 %v1284
        %v1812 = vpop.f32.mrf.mxu0
        %v1813 = vadd.f32 0.0, %v1812
        %v1814 = vpop.f32.mrf.mxu0
        %v1815 = vadd.f32 0.0, %v1814
        %1816 = vdwg.mxu0
        %1817 = vmatpush.bf16.msra.mxu0 %v1549
        %1818 = vmatpush.bf16.msra.mxu0 %v1545
        %1819 = vmatpush.bf16.msra.mxu0 %v1541
        %1820 = vmatpush.bf16.msra.mxu0 %v1537
        %1821 = vmatpush.bf16.msra.mxu0 %v1533
        %1822 = vmatpush.bf16.msra.mxu0 %v1529
        %1823 = vmatpush.bf16.msra.mxu0 %v1525
        %1824 = vmatpush.bf16.msra.mxu0 %v1521
        %1825 = vmatmul.bf16.gmra.mxu0 %v1279
        %v1826 = vpop.f32.mrf.mxu0
        %v1827 = vadd.f32 %v1798, %v1826
        %v1828 = vpop.f32.mrf.mxu0
        %v1829 = vadd.f32 %v1800, %v1828
        %1830 = vmatmul.bf16.gmra.mxu0 %v1281
        %v1831 = vpop.f32.mrf.mxu0
        %v1832 = vadd.f32 %v1803, %v1831
        %v1833 = vpop.f32.mrf.mxu0
        %v1834 = vadd.f32 %v1805, %v1833
        %1835 = vmatmul.bf16.gmra.mxu0 %v1283
        %v1836 = vpop.f32.mrf.mxu0
        %v1837 = vadd.f32 %v1808, %v1836
        %v1838 = vpop.f32.mrf.mxu0
        %v1839 = vadd.f32 %v1810, %v1838
        %1840 = vmatmul.bf16.gmra.mxu0 %v1285
        %v1841 = vpop.f32.mrf.mxu0
        %v1842 = vadd.f32 %v1813, %v1841
        %v1843 = vpop.f32.mrf.mxu0
        %v1844 = vadd.f32 %v1815, %v1843
        %1845 = vdwg.mxu0
        %v1846 = vpack.c.bf16 %v1711, %v1653
        %v1847 = vpack.c.bf16 %v1827, %v1769
        %v1848 = vpack.c.bf16 %v1713, %v1655
        %v1849 = vpack.c.bf16 %v1829, %v1771
        %v1850 = vpack.c.bf16 %v1716, %v1658
        %v1851 = vpack.c.bf16 %v1832, %v1774
        %v1852 = vpack.c.bf16 %v1718, %v1660
        %v1853 = vpack.c.bf16 %v1834, %v1776
        %v1854 = vpack.c.bf16 %v1721, %v1663
        %v1855 = vpack.c.bf16 %v1837, %v1779
        %v1856 = vpack.c.bf16 %v1723, %v1665
        %v1857 = vpack.c.bf16 %v1839, %v1781
        %v1858 = vpack.c.bf16 %v1726, %v1668
        %v1859 = vpack.c.bf16 %v1842, %v1784
        %v1860 = vpack.c.bf16 %v1728, %v1670
        %v1861 = vpack.c.bf16 %v1844, %v1786
        %v1862 = vld [vmem:[%s4] sm:$0xf]
        %v1863 = vld [vmem:[%s4 + $0x4] sm:$0xf]
        %v1864 = vld [vmem:[%s4 + $0x8] sm:$0xf]
        %v1865 = vld [vmem:[%s4 + $0xc] sm:$0xf]
        %v1866 = vld [vmem:[%s4 + $0x10] sm:$0xf]
        %v1867 = vld [vmem:[%s4 + $0x14] sm:$0xf]
        %v1868 = vld [vmem:[%s4 + $0x18] sm:$0xf]
        %v1869 = vld [vmem:[%s4 + $0x1c] sm:$0xf]
        %v1870 = vld [vmem:[%s4 + $0x20] sm:$0xf]
        %v1871 = vld [vmem:[%s4 + $0x24] sm:$0xf]
        %v1872 = vld [vmem:[%s4 + $0x28] sm:$0xf]
        %v1873 = vld [vmem:[%s4 + $0x2c] sm:$0xf]
        %v1874 = vld [vmem:[%s4 + $0x30] sm:$0xf]
        %v1875 = vld [vmem:[%s4 + $0x34] sm:$0xf]
        %v1876 = vld [vmem:[%s4 + $0x38] sm:$0xf]
        %v1877 = vld [vmem:[%s4 + $0x3c] sm:$0xf]
        %v1878 = vld [vmem:[%s4 + $0x40] sm:$0xf]
        %v1879 = vld [vmem:[%s4 + $0x44] sm:$0xf]
        %v1880 = vld [vmem:[%s4 + $0x48] sm:$0xf]
        %v1881 = vld [vmem:[%s4 + $0x4c] sm:$0xf]
        %v1882 = vld [vmem:[%s4 + $0x50] sm:$0xf]
        %v1883 = vld [vmem:[%s4 + $0x54] sm:$0xf]
        %v1884 = vld [vmem:[%s4 + $0x58] sm:$0xf]
        %v1885 = vld [vmem:[%s4 + $0x5c] sm:$0xf]
        %v1886 = vld [vmem:[%s4 + $0x60] sm:$0xf]
        %v1887 = vld [vmem:[%s4 + $0x64] sm:$0xf]
        %v1888 = vld [vmem:[%s4 + $0x68] sm:$0xf]
        %v1889 = vld [vmem:[%s4 + $0x6c] sm:$0xf]
        %v1890 = vld [vmem:[%s4 + $0x70] sm:$0xf]
        %v1891 = vld [vmem:[%s4 + $0x74] sm:$0xf]
        %v1892 = vld [vmem:[%s4 + $0x78] sm:$0xf]
        %v1893 = vld [vmem:[%s4 + $0x7c] sm:$0xf]
        %v1894 = vld [vmem:[%s4 + $0x80] sm:$0xf]
        %v1895 = vld [vmem:[%s4 + $0x84] sm:$0xf]
        %v1896 = vld [vmem:[%s4 + $0x88] sm:$0xf]
        %v1897 = vld [vmem:[%s4 + $0x8c] sm:$0xf]
        %v1898 = vld [vmem:[%s4 + $0x90] sm:$0xf]
        %v1899 = vld [vmem:[%s4 + $0x94] sm:$0xf]
        %v1900 = vld [vmem:[%s4 + $0x98] sm:$0xf]
        %v1901 = vld [vmem:[%s4 + $0x9c] sm:$0xf]
        %v1902 = vld [vmem:[%s4 + $0xa0] sm:$0xf]
        %v1903 = vld [vmem:[%s4 + $0xa4] sm:$0xf]
        %v1904 = vld [vmem:[%s4 + $0xa8] sm:$0xf]
        %v1905 = vld [vmem:[%s4 + $0xac] sm:$0xf]
        %v1906 = vld [vmem:[%s4 + $0xb0] sm:$0xf]
        %v1907 = vld [vmem:[%s4 + $0xb4] sm:$0xf]
        %v1908 = vld [vmem:[%s4 + $0xb8] sm:$0xf]
        %v1909 = vld [vmem:[%s4 + $0xbc] sm:$0xf]
        %v1910 = vld [vmem:[%s4 + $0xc0] sm:$0xf]
        %v1911 = vld [vmem:[%s4 + $0xc4] sm:$0xf]
        %v1912 = vld [vmem:[%s4 + $0xc8] sm:$0xf]
        %v1913 = vld [vmem:[%s4 + $0xcc] sm:$0xf]
        %v1914 = vld [vmem:[%s4 + $0xd0] sm:$0xf]
        %v1915 = vld [vmem:[%s4 + $0xd4] sm:$0xf]
        %v1916 = vld [vmem:[%s4 + $0xd8] sm:$0xf]
        %v1917 = vld [vmem:[%s4 + $0xdc] sm:$0xf]
        %v1918 = vld [vmem:[%s4 + $0xe0] sm:$0xf]
        %v1919 = vld [vmem:[%s4 + $0xe4] sm:$0xf]
        %v1920 = vld [vmem:[%s4 + $0xe8] sm:$0xf]
        %v1921 = vld [vmem:[%s4 + $0xec] sm:$0xf]
        %v1922 = vld [vmem:[%s4 + $0xf0] sm:$0xf]
        %v1923 = vld [vmem:[%s4 + $0xf4] sm:$0xf]
        %v1924 = vld [vmem:[%s4 + $0xf8] sm:$0xf]
        %v1925 = vld [vmem:[%s4 + $0xfc] sm:$0xf]
        %s1926 = scalar_lea.vmem %s4, 256
        %v1927 = vld [vmem:[%s1926] sm:$0xf]
        %v1928 = vld [vmem:[%s1926 + $0x4] sm:$0xf]
        %v1929 = vld [vmem:[%s1926 + $0x8] sm:$0xf]
        %v1930 = vld [vmem:[%s1926 + $0xc] sm:$0xf]
        %v1931 = vld [vmem:[%s1926 + $0x10] sm:$0xf]
        %v1932 = vld [vmem:[%s1926 + $0x14] sm:$0xf]
        %v1933 = vld [vmem:[%s1926 + $0x18] sm:$0xf]
        %v1934 = vld [vmem:[%s1926 + $0x1c] sm:$0xf]
        %v1935 = vld [vmem:[%s1926 + $0x20] sm:$0xf]
        %v1936 = vld [vmem:[%s1926 + $0x24] sm:$0xf]
        %v1937 = vld [vmem:[%s1926 + $0x28] sm:$0xf]
        %v1938 = vld [vmem:[%s1926 + $0x2c] sm:$0xf]
        %v1939 = vld [vmem:[%s1926 + $0x30] sm:$0xf]
        %v1940 = vld [vmem:[%s1926 + $0x34] sm:$0xf]
        %v1941 = vld [vmem:[%s1926 + $0x38] sm:$0xf]
        %v1942 = vld [vmem:[%s1926 + $0x3c] sm:$0xf]
        %v1943 = vld [vmem:[%s1926 + $0x40] sm:$0xf]
        %v1944 = vld [vmem:[%s1926 + $0x44] sm:$0xf]
        %v1945 = vld [vmem:[%s1926 + $0x48] sm:$0xf]
        %v1946 = vld [vmem:[%s1926 + $0x4c] sm:$0xf]
        %v1947 = vld [vmem:[%s1926 + $0x50] sm:$0xf]
        %v1948 = vld [vmem:[%s1926 + $0x54] sm:$0xf]
        %v1949 = vld [vmem:[%s1926 + $0x58] sm:$0xf]
        %v1950 = vld [vmem:[%s1926 + $0x5c] sm:$0xf]
        %v1951 = vld [vmem:[%s1926 + $0x60] sm:$0xf]
        %v1952 = vld [vmem:[%s1926 + $0x64] sm:$0xf]
        %v1953 = vld [vmem:[%s1926 + $0x68] sm:$0xf]
        %v1954 = vld [vmem:[%s1926 + $0x6c] sm:$0xf]
        %v1955 = vld [vmem:[%s1926 + $0x70] sm:$0xf]
        %v1956 = vld [vmem:[%s1926 + $0x74] sm:$0xf]
        %v1957 = vld [vmem:[%s1926 + $0x78] sm:$0xf]
        %v1958 = vld [vmem:[%s1926 + $0x7c] sm:$0xf]
        %v1959 = vld [vmem:[%s1926 + $0x80] sm:$0xf]
        %v1960 = vld [vmem:[%s1926 + $0x84] sm:$0xf]
        %v1961 = vld [vmem:[%s1926 + $0x88] sm:$0xf]
        %v1962 = vld [vmem:[%s1926 + $0x8c] sm:$0xf]
        %v1963 = vld [vmem:[%s1926 + $0x90] sm:$0xf]
        %v1964 = vld [vmem:[%s1926 + $0x94] sm:$0xf]
        %v1965 = vld [vmem:[%s1926 + $0x98] sm:$0xf]
        %v1966 = vld [vmem:[%s1926 + $0x9c] sm:$0xf]
        %v1967 = vld [vmem:[%s1926 + $0xa0] sm:$0xf]
        %v1968 = vld [vmem:[%s1926 + $0xa4] sm:$0xf]
        %v1969 = vld [vmem:[%s1926 + $0xa8] sm:$0xf]
        %v1970 = vld [vmem:[%s1926 + $0xac] sm:$0xf]
        %v1971 = vld [vmem:[%s1926 + $0xb0] sm:$0xf]
        %v1972 = vld [vmem:[%s1926 + $0xb4] sm:$0xf]
        %v1973 = vld [vmem:[%s1926 + $0xb8] sm:$0xf]
        %v1974 = vld [vmem:[%s1926 + $0xbc] sm:$0xf]
        %v1975 = vld [vmem:[%s1926 + $0xc0] sm:$0xf]
        %v1976 = vld [vmem:[%s1926 + $0xc4] sm:$0xf]
        %v1977 = vld [vmem:[%s1926 + $0xc8] sm:$0xf]
        %v1978 = vld [vmem:[%s1926 + $0xcc] sm:$0xf]
        %v1979 = vld [vmem:[%s1926 + $0xd0] sm:$0xf]
        %v1980 = vld [vmem:[%s1926 + $0xd4] sm:$0xf]
        %v1981 = vld [vmem:[%s1926 + $0xd8] sm:$0xf]
        %v1982 = vld [vmem:[%s1926 + $0xdc] sm:$0xf]
        %v1983 = vld [vmem:[%s1926 + $0xe0] sm:$0xf]
        %v1984 = vld [vmem:[%s1926 + $0xe4] sm:$0xf]
        %v1985 = vld [vmem:[%s1926 + $0xe8] sm:$0xf]
        %v1986 = vld [vmem:[%s1926 + $0xec] sm:$0xf]
        %v1987 = vld [vmem:[%s1926 + $0xf0] sm:$0xf]
        %v1988 = vld [vmem:[%s1926 + $0xf4] sm:$0xf]
        %v1989 = vld [vmem:[%s1926 + $0xf8] sm:$0xf]
        %v1990 = vld [vmem:[%s1926 + $0xfc] sm:$0xf]
        %v1993 = vunpack.c.l.b16 %v1846
        %v1994 = vunpack.c.h.b16 %v1846
        %v1995 = vunpack.c.l.b16 %v1847
        %v1996 = vunpack.c.h.b16 %v1847
        %v1997 = vpack.c.b16 %v1993, %v1993
        %v1998 = vpack.c.b16 %v1994, %v1994
        %v1999 = vpack.c.b16 %v1995, %v1995
        %v2000 = vpack.c.b16 %v1996, %v1996
        %v2001 = vrot.slane %v1997, 2
        %v2002 = vrot.slane %v1998, 2
        %v2003 = vrot.slane %v1999, 2
        %v2004 = vrot.slane %v2000, 2
        %v2073 = vunpack.c.l.b16 %v1927
        %v2074 = vunpack.c.l.b16 %v1928
        %v2075 = vunpack.c.l.b16 %v1929
        %v2076 = vunpack.c.l.b16 %v1930
        %v2077 = vunpack.c.l.b16 %v1931
        %v2078 = vunpack.c.l.b16 %v1932
        %v2079 = vunpack.c.l.b16 %v1933
        %v2080 = vunpack.c.l.b16 %v1934
        %v2081 = vunpack.c.l.b16 %v1935
        %v2082 = vunpack.c.l.b16 %v1936
        %v2083 = vunpack.c.l.b16 %v1937
        %v2084 = vunpack.c.l.b16 %v1938
        %v2085 = vunpack.c.l.b16 %v1939
        %v2086 = vunpack.c.l.b16 %v1940
        %v2087 = vunpack.c.l.b16 %v1941
        %v2088 = vunpack.c.l.b16 %v1942
        %v2089 = vunpack.c.l.b16 %v1943
        %v2090 = vunpack.c.l.b16 %v1944
        %v2091 = vunpack.c.l.b16 %v1945
        %v2092 = vunpack.c.l.b16 %v1946
        %v2093 = vunpack.c.l.b16 %v1947
        %v2094 = vunpack.c.l.b16 %v1948
        %v2095 = vunpack.c.l.b16 %v1949
        %v2096 = vunpack.c.l.b16 %v1950
        %v2097 = vunpack.c.l.b16 %v1951
        %v2098 = vunpack.c.l.b16 %v1952
        %v2099 = vunpack.c.l.b16 %v1953
        %v2100 = vunpack.c.l.b16 %v1954
        %v2101 = vunpack.c.l.b16 %v1955
        %v2102 = vunpack.c.l.b16 %v1956
        %v2103 = vunpack.c.l.b16 %v1957
        %v2104 = vunpack.c.l.b16 %v1958
        %v2105 = vunpack.c.l.b16 %v1959
        %v2106 = vunpack.c.l.b16 %v1960
        %v2107 = vunpack.c.l.b16 %v1961
        %v2108 = vunpack.c.l.b16 %v1962
        %v2109 = vunpack.c.l.b16 %v1963
        %v2110 = vunpack.c.l.b16 %v1964
        %v2111 = vunpack.c.l.b16 %v1965
        %v2112 = vunpack.c.l.b16 %v1966
        %v2113 = vunpack.c.l.b16 %v1967
        %v2114 = vunpack.c.l.b16 %v1968
        %v2115 = vunpack.c.l.b16 %v1969
        %v2116 = vunpack.c.l.b16 %v1970
        %v2117 = vunpack.c.l.b16 %v1971
        %v2118 = vunpack.c.l.b16 %v1972
        %v2119 = vunpack.c.l.b16 %v1973
        %v2120 = vunpack.c.l.b16 %v1974
        %v2121 = vunpack.c.l.b16 %v1975
        %v2122 = vunpack.c.l.b16 %v1976
        %v2123 = vunpack.c.l.b16 %v1977
        %v2124 = vunpack.c.l.b16 %v1978
        %v2125 = vunpack.c.l.b16 %v1979
        %v2126 = vunpack.c.l.b16 %v1980
        %v2127 = vunpack.c.l.b16 %v1981
        %v2128 = vunpack.c.l.b16 %v1982
        %v2129 = vunpack.c.l.b16 %v1983
        %v2130 = vunpack.c.l.b16 %v1984
        %v2131 = vunpack.c.l.b16 %v1985
        %v2132 = vunpack.c.l.b16 %v1986
        %v2133 = vunpack.c.l.b16 %v1987
        %v2134 = vunpack.c.l.b16 %v1988
        %v2135 = vunpack.c.l.b16 %v1989
        %v2136 = vunpack.c.l.b16 %v1990
        %v2137 = vpack.c.b16 %v2074, %v2073
        %v2138 = vpack.c.b16 %v2076, %v2075
        %v2139 = vpack.c.b16 %v2078, %v2077
        %v2140 = vpack.c.b16 %v2080, %v2079
        %v2141 = vpack.c.b16 %v2082, %v2081
        %v2142 = vpack.c.b16 %v2084, %v2083
        %v2143 = vpack.c.b16 %v2086, %v2085
        %v2144 = vpack.c.b16 %v2088, %v2087
        %v2145 = vpack.c.b16 %v2090, %v2089
        %v2146 = vpack.c.b16 %v2092, %v2091
        %v2147 = vpack.c.b16 %v2094, %v2093
        %v2148 = vpack.c.b16 %v2096, %v2095
        %v2149 = vpack.c.b16 %v2098, %v2097
        %v2150 = vpack.c.b16 %v2100, %v2099
        %v2151 = vpack.c.b16 %v2102, %v2101
        %v2152 = vpack.c.b16 %v2104, %v2103
        %v2153 = vpack.c.b16 %v2106, %v2105
        %v2154 = vpack.c.b16 %v2108, %v2107
        %v2155 = vpack.c.b16 %v2110, %v2109
        %v2156 = vpack.c.b16 %v2112, %v2111
        %v2157 = vpack.c.b16 %v2114, %v2113
        %v2158 = vpack.c.b16 %v2116, %v2115
        %v2159 = vpack.c.b16 %v2118, %v2117
        %v2160 = vpack.c.b16 %v2120, %v2119
        %v2161 = vpack.c.b16 %v2122, %v2121
        %v2162 = vpack.c.b16 %v2124, %v2123
        %v2163 = vpack.c.b16 %v2126, %v2125
        %v2164 = vpack.c.b16 %v2128, %v2127
        %v2165 = vpack.c.b16 %v2130, %v2129
        %v2166 = vpack.c.b16 %v2132, %v2131
        %v2167 = vpack.c.b16 %v2134, %v2133
        %v2168 = vpack.c.b16 %v2136, %v2135
        %2201 = vmatpush.bf16.msra.mxu0 %v2144
        %2202 = vmatpush.bf16.msra.mxu0 %v2143
        %2203 = vmatpush.bf16.msra.mxu0 %v2142
        %2204 = vmatpush.bf16.msra.mxu0 %v2141
        %2205 = vmatpush.bf16.msra.mxu0 %v2140
        %2206 = vmatpush.bf16.msra.mxu0 %v2139
        %2207 = vmatpush.bf16.msra.mxu0 %v2138
        %2208 = vmatpush.bf16.msra.mxu0 %v2137
        %2209 = vmatmul.bf16.gmra.mxu0 %v2001
        %v2210 = vpop.f32.mrf.mxu0
        %v2211 = vadd.f32 0.0, %v2210
        %v2212 = vpop.f32.mrf.mxu0
        %2213 = vdwg.mxu0
        %2214 = vmatpush.bf16.msra.mxu0 %v2152
        %2215 = vmatpush.bf16.msra.mxu0 %v2151
        %2216 = vmatpush.bf16.msra.mxu0 %v2150
        %2217 = vmatpush.bf16.msra.mxu0 %v2149
        %2218 = vmatpush.bf16.msra.mxu0 %v2148
        %2219 = vmatpush.bf16.msra.mxu0 %v2147
        %2220 = vmatpush.bf16.msra.mxu0 %v2146
        %2221 = vmatpush.bf16.msra.mxu0 %v2145
        %2222 = vmatmul.bf16.gmra.mxu0 %v2002
        %v2223 = vpop.f32.mrf.mxu0
        %v2224 = vadd.f32 %v2211, %v2223
        %v2225 = vpop.f32.mrf.mxu0
        %2226 = vdwg.mxu0
        %2227 = vmatpush.bf16.msra.mxu0 %v2160
        %2228 = vmatpush.bf16.msra.mxu0 %v2159
        %2229 = vmatpush.bf16.msra.mxu0 %v2158
        %2230 = vmatpush.bf16.msra.mxu0 %v2157
        %2231 = vmatpush.bf16.msra.mxu0 %v2156
        %2232 = vmatpush.bf16.msra.mxu0 %v2155
        %2233 = vmatpush.bf16.msra.mxu0 %v2154
        %2234 = vmatpush.bf16.msra.mxu0 %v2153
        %2235 = vmatmul.bf16.gmra.mxu0 %v2003
        %v2236 = vpop.f32.mrf.mxu0
        %v2237 = vadd.f32 %v2224, %v2236
        %v2238 = vpop.f32.mrf.mxu0
        %2239 = vdwg.mxu0
        %2240 = vmatpush.bf16.msra.mxu0 %v2168
        %2241 = vmatpush.bf16.msra.mxu0 %v2167
        %2242 = vmatpush.bf16.msra.mxu0 %v2166
        %2243 = vmatpush.bf16.msra.mxu0 %v2165
        %2244 = vmatpush.bf16.msra.mxu0 %v2164
        %2245 = vmatpush.bf16.msra.mxu0 %v2163
        %2246 = vmatpush.bf16.msra.mxu0 %v2162
        %2247 = vmatpush.bf16.msra.mxu0 %v2161
        %2248 = vmatmul.bf16.gmra.mxu0 %v2004
        %v2249 = vpop.f32.mrf.mxu0
        %v2250 = vadd.f32 %v2237, %v2249
        %v2251 = vpop.f32.mrf.mxu0
        %2252 = vdwg.mxu0
        %v2321 = vunpack.c.l.b16 %v1862
        %v2322 = vunpack.c.l.b16 %v1863
        %v2323 = vunpack.c.l.b16 %v1864
        %v2324 = vunpack.c.l.b16 %v1865
        %v2325 = vunpack.c.l.b16 %v1866
        %v2326 = vunpack.c.l.b16 %v1867
        %v2327 = vunpack.c.l.b16 %v1868
        %v2328 = vunpack.c.l.b16 %v1869
        %v2329 = vunpack.c.l.b16 %v1870
        %v2330 = vunpack.c.l.b16 %v1871
        %v2331 = vunpack.c.l.b16 %v1872
        %v2332 = vunpack.c.l.b16 %v1873
        %v2333 = vunpack.c.l.b16 %v1874
        %v2334 = vunpack.c.l.b16 %v1875
        %v2335 = vunpack.c.l.b16 %v1876
        %v2336 = vunpack.c.l.b16 %v1877
        %v2337 = vunpack.c.l.b16 %v1878
        %v2338 = vunpack.c.l.b16 %v1879
        %v2339 = vunpack.c.l.b16 %v1880
        %v2340 = vunpack.c.l.b16 %v1881
        %v2341 = vunpack.c.l.b16 %v1882
        %v2342 = vunpack.c.l.b16 %v1883
        %v2343 = vunpack.c.l.b16 %v1884
        %v2344 = vunpack.c.l.b16 %v1885
        %v2345 = vunpack.c.l.b16 %v1886
        %v2346 = vunpack.c.l.b16 %v1887
        %v2347 = vunpack.c.l.b16 %v1888
        %v2348 = vunpack.c.l.b16 %v1889
        %v2349 = vunpack.c.l.b16 %v1890
        %v2350 = vunpack.c.l.b16 %v1891
        %v2351 = vunpack.c.l.b16 %v1892
        %v2352 = vunpack.c.l.b16 %v1893
        %v2353 = vunpack.c.l.b16 %v1894
        %v2354 = vunpack.c.l.b16 %v1895
        %v2355 = vunpack.c.l.b16 %v1896
        %v2356 = vunpack.c.l.b16 %v1897
        %v2357 = vunpack.c.l.b16 %v1898
        %v2358 = vunpack.c.l.b16 %v1899
        %v2359 = vunpack.c.l.b16 %v1900
        %v2360 = vunpack.c.l.b16 %v1901
        %v2361 = vunpack.c.l.b16 %v1902
        %v2362 = vunpack.c.l.b16 %v1903
        %v2363 = vunpack.c.l.b16 %v1904
        %v2364 = vunpack.c.l.b16 %v1905
        %v2365 = vunpack.c.l.b16 %v1906
        %v2366 = vunpack.c.l.b16 %v1907
        %v2367 = vunpack.c.l.b16 %v1908
        %v2368 = vunpack.c.l.b16 %v1909
        %v2369 = vunpack.c.l.b16 %v1910
        %v2370 = vunpack.c.l.b16 %v1911
        %v2371 = vunpack.c.l.b16 %v1912
        %v2372 = vunpack.c.l.b16 %v1913
        %v2373 = vunpack.c.l.b16 %v1914
        %v2374 = vunpack.c.l.b16 %v1915
        %v2375 = vunpack.c.l.b16 %v1916
        %v2376 = vunpack.c.l.b16 %v1917
        %v2377 = vunpack.c.l.b16 %v1918
        %v2378 = vunpack.c.l.b16 %v1919
        %v2379 = vunpack.c.l.b16 %v1920
        %v2380 = vunpack.c.l.b16 %v1921
        %v2381 = vunpack.c.l.b16 %v1922
        %v2382 = vunpack.c.l.b16 %v1923
        %v2383 = vunpack.c.l.b16 %v1924
        %v2384 = vunpack.c.l.b16 %v1925
        %v2385 = vpack.c.b16 %v2322, %v2321
        %v2386 = vpack.c.b16 %v2324, %v2323
        %v2387 = vpack.c.b16 %v2326, %v2325
        %v2388 = vpack.c.b16 %v2328, %v2327
        %v2389 = vpack.c.b16 %v2330, %v2329
        %v2390 = vpack.c.b16 %v2332, %v2331
        %v2391 = vpack.c.b16 %v2334, %v2333
        %v2392 = vpack.c.b16 %v2336, %v2335
        %v2393 = vpack.c.b16 %v2338, %v2337
        %v2394 = vpack.c.b16 %v2340, %v2339
        %v2395 = vpack.c.b16 %v2342, %v2341
        %v2396 = vpack.c.b16 %v2344, %v2343
        %v2397 = vpack.c.b16 %v2346, %v2345
        %v2398 = vpack.c.b16 %v2348, %v2347
        %v2399 = vpack.c.b16 %v2350, %v2349
        %v2400 = vpack.c.b16 %v2352, %v2351
        %v2401 = vpack.c.b16 %v2354, %v2353
        %v2402 = vpack.c.b16 %v2356, %v2355
        %v2403 = vpack.c.b16 %v2358, %v2357
        %v2404 = vpack.c.b16 %v2360, %v2359
        %v2405 = vpack.c.b16 %v2362, %v2361
        %v2406 = vpack.c.b16 %v2364, %v2363
        %v2407 = vpack.c.b16 %v2366, %v2365
        %v2408 = vpack.c.b16 %v2368, %v2367
        %v2409 = vpack.c.b16 %v2370, %v2369
        %v2410 = vpack.c.b16 %v2372, %v2371
        %v2411 = vpack.c.b16 %v2374, %v2373
        %v2412 = vpack.c.b16 %v2376, %v2375
        %v2413 = vpack.c.b16 %v2378, %v2377
        %v2414 = vpack.c.b16 %v2380, %v2379
        %v2415 = vpack.c.b16 %v2382, %v2381
        %v2416 = vpack.c.b16 %v2384, %v2383
        %2449 = vmatpush.bf16.msra.mxu0 %v2392
        %2450 = vmatpush.bf16.msra.mxu0 %v2391
        %2451 = vmatpush.bf16.msra.mxu0 %v2390
        %2452 = vmatpush.bf16.msra.mxu0 %v2389
        %2453 = vmatpush.bf16.msra.mxu0 %v2388
        %2454 = vmatpush.bf16.msra.mxu0 %v2387
        %2455 = vmatpush.bf16.msra.mxu0 %v2386
        %2456 = vmatpush.bf16.msra.mxu0 %v2385
        %2457 = vmatmul.bf16.gmra.mxu0 %v1997
        %v2458 = vpop.f32.mrf.mxu0
        %v2459 = vadd.f32 %v2250, %v2458
        %v2460 = vpop.f32.mrf.mxu0
        %2461 = vdwg.mxu0
        %2462 = vmatpush.bf16.msra.mxu0 %v2400
        %2463 = vmatpush.bf16.msra.mxu0 %v2399
        %2464 = vmatpush.bf16.msra.mxu0 %v2398
        %2465 = vmatpush.bf16.msra.mxu0 %v2397
        %2466 = vmatpush.bf16.msra.mxu0 %v2396
        %2467 = vmatpush.bf16.msra.mxu0 %v2395
        %2468 = vmatpush.bf16.msra.mxu0 %v2394
        %2469 = vmatpush.bf16.msra.mxu0 %v2393
        %2470 = vmatmul.bf16.gmra.mxu0 %v1998
        %v2471 = vpop.f32.mrf.mxu0
        %v2472 = vadd.f32 %v2459, %v2471
        %v2473 = vpop.f32.mrf.mxu0
        %2474 = vdwg.mxu0
        %2475 = vmatpush.bf16.msra.mxu0 %v2408
        %2476 = vmatpush.bf16.msra.mxu0 %v2407
        %2477 = vmatpush.bf16.msra.mxu0 %v2406
        %2478 = vmatpush.bf16.msra.mxu0 %v2405
        %2479 = vmatpush.bf16.msra.mxu0 %v2404
        %2480 = vmatpush.bf16.msra.mxu0 %v2403
        %2481 = vmatpush.bf16.msra.mxu0 %v2402
        %2482 = vmatpush.bf16.msra.mxu0 %v2401
        %2483 = vmatmul.bf16.gmra.mxu0 %v1999
        %v2484 = vpop.f32.mrf.mxu0
        %v2485 = vadd.f32 %v2472, %v2484
        %v2486 = vpop.f32.mrf.mxu0
        %2487 = vdwg.mxu0
        %2488 = vmatpush.bf16.msra.mxu0 %v2416
        %2489 = vmatpush.bf16.msra.mxu0 %v2415
        %2490 = vmatpush.bf16.msra.mxu0 %v2414
        %2491 = vmatpush.bf16.msra.mxu0 %v2413
        %2492 = vmatpush.bf16.msra.mxu0 %v2412
        %2493 = vmatpush.bf16.msra.mxu0 %v2411
        %2494 = vmatpush.bf16.msra.mxu0 %v2410
        %2495 = vmatpush.bf16.msra.mxu0 %v2409
        %2496 = vmatmul.bf16.gmra.mxu0 %v2000
        %v2497 = vpop.f32.mrf.mxu0
        %v2498 = vadd.f32 %v2485, %v2497
        %v2499 = vpop.f32.mrf.mxu0
        %2500 = vdwg.mxu0
        %s2501 = scalar_lea.vmem %s4, 512
        %v2502 = vld [vmem:[%s2501] sm:$0xf]
        %v2503 = vld [vmem:[%s2501 + $0x4] sm:$0xf]
        %v2504 = vld [vmem:[%s2501 + $0x8] sm:$0xf]
        %v2505 = vld [vmem:[%s2501 + $0xc] sm:$0xf]
        %v2506 = vld [vmem:[%s2501 + $0x10] sm:$0xf]
        %v2507 = vld [vmem:[%s2501 + $0x14] sm:$0xf]
        %v2508 = vld [vmem:[%s2501 + $0x18] sm:$0xf]
        %v2509 = vld [vmem:[%s2501 + $0x1c] sm:$0xf]
        %v2510 = vld [vmem:[%s2501 + $0x20] sm:$0xf]
        %v2511 = vld [vmem:[%s2501 + $0x24] sm:$0xf]
        %v2512 = vld [vmem:[%s2501 + $0x28] sm:$0xf]
        %v2513 = vld [vmem:[%s2501 + $0x2c] sm:$0xf]
        %v2514 = vld [vmem:[%s2501 + $0x30] sm:$0xf]
        %v2515 = vld [vmem:[%s2501 + $0x34] sm:$0xf]
        %v2516 = vld [vmem:[%s2501 + $0x38] sm:$0xf]
        %v2517 = vld [vmem:[%s2501 + $0x3c] sm:$0xf]
        %v2518 = vld [vmem:[%s2501 + $0x40] sm:$0xf]
        %v2519 = vld [vmem:[%s2501 + $0x44] sm:$0xf]
        %v2520 = vld [vmem:[%s2501 + $0x48] sm:$0xf]
        %v2521 = vld [vmem:[%s2501 + $0x4c] sm:$0xf]
        %v2522 = vld [vmem:[%s2501 + $0x50] sm:$0xf]
        %v2523 = vld [vmem:[%s2501 + $0x54] sm:$0xf]
        %v2524 = vld [vmem:[%s2501 + $0x58] sm:$0xf]
        %v2525 = vld [vmem:[%s2501 + $0x5c] sm:$0xf]
        %v2526 = vld [vmem:[%s2501 + $0x60] sm:$0xf]
        %v2527 = vld [vmem:[%s2501 + $0x64] sm:$0xf]
        %v2528 = vld [vmem:[%s2501 + $0x68] sm:$0xf]
        %v2529 = vld [vmem:[%s2501 + $0x6c] sm:$0xf]
        %v2530 = vld [vmem:[%s2501 + $0x70] sm:$0xf]
        %v2531 = vld [vmem:[%s2501 + $0x74] sm:$0xf]
        %v2532 = vld [vmem:[%s2501 + $0x78] sm:$0xf]
        %v2533 = vld [vmem:[%s2501 + $0x7c] sm:$0xf]
        %v2534 = vld [vmem:[%s2501 + $0x80] sm:$0xf]
        %v2535 = vld [vmem:[%s2501 + $0x84] sm:$0xf]
        %v2536 = vld [vmem:[%s2501 + $0x88] sm:$0xf]
        %v2537 = vld [vmem:[%s2501 + $0x8c] sm:$0xf]
        %v2538 = vld [vmem:[%s2501 + $0x90] sm:$0xf]
        %v2539 = vld [vmem:[%s2501 + $0x94] sm:$0xf]
        %v2540 = vld [vmem:[%s2501 + $0x98] sm:$0xf]
        %v2541 = vld [vmem:[%s2501 + $0x9c] sm:$0xf]
        %v2542 = vld [vmem:[%s2501 + $0xa0] sm:$0xf]
        %v2543 = vld [vmem:[%s2501 + $0xa4] sm:$0xf]
        %v2544 = vld [vmem:[%s2501 + $0xa8] sm:$0xf]
        %v2545 = vld [vmem:[%s2501 + $0xac] sm:$0xf]
        %v2546 = vld [vmem:[%s2501 + $0xb0] sm:$0xf]
        %v2547 = vld [vmem:[%s2501 + $0xb4] sm:$0xf]
        %v2548 = vld [vmem:[%s2501 + $0xb8] sm:$0xf]
        %v2549 = vld [vmem:[%s2501 + $0xbc] sm:$0xf]
        %v2550 = vld [vmem:[%s2501 + $0xc0] sm:$0xf]
        %v2551 = vld [vmem:[%s2501 + $0xc4] sm:$0xf]
        %v2552 = vld [vmem:[%s2501 + $0xc8] sm:$0xf]
        %v2553 = vld [vmem:[%s2501 + $0xcc] sm:$0xf]
        %v2554 = vld [vmem:[%s2501 + $0xd0] sm:$0xf]
        %v2555 = vld [vmem:[%s2501 + $0xd4] sm:$0xf]
        %v2556 = vld [vmem:[%s2501 + $0xd8] sm:$0xf]
        %v2557 = vld [vmem:[%s2501 + $0xdc] sm:$0xf]
        %v2558 = vld [vmem:[%s2501 + $0xe0] sm:$0xf]
        %v2559 = vld [vmem:[%s2501 + $0xe4] sm:$0xf]
        %v2560 = vld [vmem:[%s2501 + $0xe8] sm:$0xf]
        %v2561 = vld [vmem:[%s2501 + $0xec] sm:$0xf]
        %v2562 = vld [vmem:[%s2501 + $0xf0] sm:$0xf]
        %v2563 = vld [vmem:[%s2501 + $0xf4] sm:$0xf]
        %v2564 = vld [vmem:[%s2501 + $0xf8] sm:$0xf]
        %v2565 = vld [vmem:[%s2501 + $0xfc] sm:$0xf]
        %v2568 = vunpack.c.l.b16 %v1848
        %v2569 = vunpack.c.h.b16 %v1848
        %v2570 = vunpack.c.l.b16 %v1849
        %v2571 = vunpack.c.h.b16 %v1849
        %v2572 = vpack.c.b16 %v2568, %v2568
        %v2573 = vpack.c.b16 %v2569, %v2569
        %v2574 = vpack.c.b16 %v2570, %v2570
        %v2575 = vpack.c.b16 %v2571, %v2571
        %v2644 = vunpack.c.l.b16 %v2502
        %v2645 = vunpack.c.l.b16 %v2503
        %v2646 = vunpack.c.l.b16 %v2504
        %v2647 = vunpack.c.l.b16 %v2505
        %v2648 = vunpack.c.l.b16 %v2506
        %v2649 = vunpack.c.l.b16 %v2507
        %v2650 = vunpack.c.l.b16 %v2508
        %v2651 = vunpack.c.l.b16 %v2509
        %v2652 = vunpack.c.l.b16 %v2510
        %v2653 = vunpack.c.l.b16 %v2511
        %v2654 = vunpack.c.l.b16 %v2512
        %v2655 = vunpack.c.l.b16 %v2513
        %v2656 = vunpack.c.l.b16 %v2514
        %v2657 = vunpack.c.l.b16 %v2515
        %v2658 = vunpack.c.l.b16 %v2516
        %v2659 = vunpack.c.l.b16 %v2517
        %v2660 = vunpack.c.l.b16 %v2518
        %v2661 = vunpack.c.l.b16 %v2519
        %v2662 = vunpack.c.l.b16 %v2520
        %v2663 = vunpack.c.l.b16 %v2521
        %v2664 = vunpack.c.l.b16 %v2522
        %v2665 = vunpack.c.l.b16 %v2523
        %v2666 = vunpack.c.l.b16 %v2524
        %v2667 = vunpack.c.l.b16 %v2525
        %v2668 = vunpack.c.l.b16 %v2526
        %v2669 = vunpack.c.l.b16 %v2527
        %v2670 = vunpack.c.l.b16 %v2528
        %v2671 = vunpack.c.l.b16 %v2529
        %v2672 = vunpack.c.l.b16 %v2530
        %v2673 = vunpack.c.l.b16 %v2531
        %v2674 = vunpack.c.l.b16 %v2532
        %v2675 = vunpack.c.l.b16 %v2533
        %v2676 = vunpack.c.l.b16 %v2534
        %v2677 = vunpack.c.l.b16 %v2535
        %v2678 = vunpack.c.l.b16 %v2536
        %v2679 = vunpack.c.l.b16 %v2537
        %v2680 = vunpack.c.l.b16 %v2538
        %v2681 = vunpack.c.l.b16 %v2539
        %v2682 = vunpack.c.l.b16 %v2540
        %v2683 = vunpack.c.l.b16 %v2541
        %v2684 = vunpack.c.l.b16 %v2542
        %v2685 = vunpack.c.l.b16 %v2543
        %v2686 = vunpack.c.l.b16 %v2544
        %v2687 = vunpack.c.l.b16 %v2545
        %v2688 = vunpack.c.l.b16 %v2546
        %v2689 = vunpack.c.l.b16 %v2547
        %v2690 = vunpack.c.l.b16 %v2548
        %v2691 = vunpack.c.l.b16 %v2549
        %v2692 = vunpack.c.l.b16 %v2550
        %v2693 = vunpack.c.l.b16 %v2551
        %v2694 = vunpack.c.l.b16 %v2552
        %v2695 = vunpack.c.l.b16 %v2553
        %v2696 = vunpack.c.l.b16 %v2554
        %v2697 = vunpack.c.l.b16 %v2555
        %v2698 = vunpack.c.l.b16 %v2556
        %v2699 = vunpack.c.l.b16 %v2557
        %v2700 = vunpack.c.l.b16 %v2558
        %v2701 = vunpack.c.l.b16 %v2559
        %v2702 = vunpack.c.l.b16 %v2560
        %v2703 = vunpack.c.l.b16 %v2561
        %v2704 = vunpack.c.l.b16 %v2562
        %v2705 = vunpack.c.l.b16 %v2563
        %v2706 = vunpack.c.l.b16 %v2564
        %v2707 = vunpack.c.l.b16 %v2565
        %v2708 = vpack.c.b16 %v2645, %v2644
        %v2709 = vpack.c.b16 %v2647, %v2646
        %v2710 = vpack.c.b16 %v2649, %v2648
        %v2711 = vpack.c.b16 %v2651, %v2650
        %v2712 = vpack.c.b16 %v2653, %v2652
        %v2713 = vpack.c.b16 %v2655, %v2654
        %v2714 = vpack.c.b16 %v2657, %v2656
        %v2715 = vpack.c.b16 %v2659, %v2658
        %v2716 = vpack.c.b16 %v2661, %v2660
        %v2717 = vpack.c.b16 %v2663, %v2662
        %v2718 = vpack.c.b16 %v2665, %v2664
        %v2719 = vpack.c.b16 %v2667, %v2666
        %v2720 = vpack.c.b16 %v2669, %v2668
        %v2721 = vpack.c.b16 %v2671, %v2670
        %v2722 = vpack.c.b16 %v2673, %v2672
        %v2723 = vpack.c.b16 %v2675, %v2674
        %v2724 = vpack.c.b16 %v2677, %v2676
        %v2725 = vpack.c.b16 %v2679, %v2678
        %v2726 = vpack.c.b16 %v2681, %v2680
        %v2727 = vpack.c.b16 %v2683, %v2682
        %v2728 = vpack.c.b16 %v2685, %v2684
        %v2729 = vpack.c.b16 %v2687, %v2686
        %v2730 = vpack.c.b16 %v2689, %v2688
        %v2731 = vpack.c.b16 %v2691, %v2690
        %v2732 = vpack.c.b16 %v2693, %v2692
        %v2733 = vpack.c.b16 %v2695, %v2694
        %v2734 = vpack.c.b16 %v2697, %v2696
        %v2735 = vpack.c.b16 %v2699, %v2698
        %v2736 = vpack.c.b16 %v2701, %v2700
        %v2737 = vpack.c.b16 %v2703, %v2702
        %v2738 = vpack.c.b16 %v2705, %v2704
        %v2739 = vpack.c.b16 %v2707, %v2706
        %2772 = vmatpush.bf16.msra.mxu0 %v2715
        %2773 = vmatpush.bf16.msra.mxu0 %v2714
        %2774 = vmatpush.bf16.msra.mxu0 %v2713
        %2775 = vmatpush.bf16.msra.mxu0 %v2712
        %2776 = vmatpush.bf16.msra.mxu0 %v2711
        %2777 = vmatpush.bf16.msra.mxu0 %v2710
        %2778 = vmatpush.bf16.msra.mxu0 %v2709
        %2779 = vmatpush.bf16.msra.mxu0 %v2708
        %2780 = vmatmul.bf16.gmra.mxu0 %v2572
        %v2781 = vpop.f32.mrf.mxu0
        %v2782 = vadd.f32 0.0, %v2781
        %v2783 = vpop.f32.mrf.mxu0
        %2784 = vdwg.mxu0
        %2785 = vmatpush.bf16.msra.mxu0 %v2723
        %2786 = vmatpush.bf16.msra.mxu0 %v2722
        %2787 = vmatpush.bf16.msra.mxu0 %v2721
        %2788 = vmatpush.bf16.msra.mxu0 %v2720
        %2789 = vmatpush.bf16.msra.mxu0 %v2719
        %2790 = vmatpush.bf16.msra.mxu0 %v2718
        %2791 = vmatpush.bf16.msra.mxu0 %v2717
        %2792 = vmatpush.bf16.msra.mxu0 %v2716
        %2793 = vmatmul.bf16.gmra.mxu0 %v2573
        %v2794 = vpop.f32.mrf.mxu0
        %v2795 = vadd.f32 %v2782, %v2794
        %v2796 = vpop.f32.mrf.mxu0
        %2797 = vdwg.mxu0
        %2798 = vmatpush.bf16.msra.mxu0 %v2731
        %2799 = vmatpush.bf16.msra.mxu0 %v2730
        %2800 = vmatpush.bf16.msra.mxu0 %v2729
        %2801 = vmatpush.bf16.msra.mxu0 %v2728
        %2802 = vmatpush.bf16.msra.mxu0 %v2727
        %2803 = vmatpush.bf16.msra.mxu0 %v2726
        %2804 = vmatpush.bf16.msra.mxu0 %v2725
        %2805 = vmatpush.bf16.msra.mxu0 %v2724
        %2806 = vmatmul.bf16.gmra.mxu0 %v2574
        %v2807 = vpop.f32.mrf.mxu0
        %v2808 = vadd.f32 %v2795, %v2807
        %v2809 = vpop.f32.mrf.mxu0
        %2810 = vdwg.mxu0
        %2811 = vmatpush.bf16.msra.mxu0 %v2739
        %2812 = vmatpush.bf16.msra.mxu0 %v2738
        %2813 = vmatpush.bf16.msra.mxu0 %v2737
        %2814 = vmatpush.bf16.msra.mxu0 %v2736
        %2815 = vmatpush.bf16.msra.mxu0 %v2735
        %2816 = vmatpush.bf16.msra.mxu0 %v2734
        %2817 = vmatpush.bf16.msra.mxu0 %v2733
        %2818 = vmatpush.bf16.msra.mxu0 %v2732
        %2819 = vmatmul.bf16.gmra.mxu0 %v2575
        %v2820 = vpop.f32.mrf.mxu0
        %v2821 = vadd.f32 %v2808, %v2820
        %v2822 = vpop.f32.mrf.mxu0
        %2823 = vdwg.mxu0
        %v2824 = vadd.f32 %v2498, %v2821
        %s2825 = scalar_lea.vmem %s4, 768
        %v2826 = vld [vmem:[%s2825] sm:$0xf]
        %v2827 = vld [vmem:[%s2825 + $0x4] sm:$0xf]
        %v2828 = vld [vmem:[%s2825 + $0x8] sm:$0xf]
        %v2829 = vld [vmem:[%s2825 + $0xc] sm:$0xf]
        %v2830 = vld [vmem:[%s2825 + $0x10] sm:$0xf]
        %v2831 = vld [vmem:[%s2825 + $0x14] sm:$0xf]
        %v2832 = vld [vmem:[%s2825 + $0x18] sm:$0xf]
        %v2833 = vld [vmem:[%s2825 + $0x1c] sm:$0xf]
        %v2834 = vld [vmem:[%s2825 + $0x20] sm:$0xf]
        %v2835 = vld [vmem:[%s2825 + $0x24] sm:$0xf]
        %v2836 = vld [vmem:[%s2825 + $0x28] sm:$0xf]
        %v2837 = vld [vmem:[%s2825 + $0x2c] sm:$0xf]
        %v2838 = vld [vmem:[%s2825 + $0x30] sm:$0xf]
        %v2839 = vld [vmem:[%s2825 + $0x34] sm:$0xf]
        %v2840 = vld [vmem:[%s2825 + $0x38] sm:$0xf]
        %v2841 = vld [vmem:[%s2825 + $0x3c] sm:$0xf]
        %v2842 = vld [vmem:[%s2825 + $0x40] sm:$0xf]
        %v2843 = vld [vmem:[%s2825 + $0x44] sm:$0xf]
        %v2844 = vld [vmem:[%s2825 + $0x48] sm:$0xf]
        %v2845 = vld [vmem:[%s2825 + $0x4c] sm:$0xf]
        %v2846 = vld [vmem:[%s2825 + $0x50] sm:$0xf]
        %v2847 = vld [vmem:[%s2825 + $0x54] sm:$0xf]
        %v2848 = vld [vmem:[%s2825 + $0x58] sm:$0xf]
        %v2849 = vld [vmem:[%s2825 + $0x5c] sm:$0xf]
        %v2850 = vld [vmem:[%s2825 + $0x60] sm:$0xf]
        %v2851 = vld [vmem:[%s2825 + $0x64] sm:$0xf]
        %v2852 = vld [vmem:[%s2825 + $0x68] sm:$0xf]
        %v2853 = vld [vmem:[%s2825 + $0x6c] sm:$0xf]
        %v2854 = vld [vmem:[%s2825 + $0x70] sm:$0xf]
        %v2855 = vld [vmem:[%s2825 + $0x74] sm:$0xf]
        %v2856 = vld [vmem:[%s2825 + $0x78] sm:$0xf]
        %v2857 = vld [vmem:[%s2825 + $0x7c] sm:$0xf]
        %v2858 = vld [vmem:[%s2825 + $0x80] sm:$0xf]
        %v2859 = vld [vmem:[%s2825 + $0x84] sm:$0xf]
        %v2860 = vld [vmem:[%s2825 + $0x88] sm:$0xf]
        %v2861 = vld [vmem:[%s2825 + $0x8c] sm:$0xf]
        %v2862 = vld [vmem:[%s2825 + $0x90] sm:$0xf]
        %v2863 = vld [vmem:[%s2825 + $0x94] sm:$0xf]
        %v2864 = vld [vmem:[%s2825 + $0x98] sm:$0xf]
        %v2865 = vld [vmem:[%s2825 + $0x9c] sm:$0xf]
        %v2866 = vld [vmem:[%s2825 + $0xa0] sm:$0xf]
        %v2867 = vld [vmem:[%s2825 + $0xa4] sm:$0xf]
        %v2868 = vld [vmem:[%s2825 + $0xa8] sm:$0xf]
        %v2869 = vld [vmem:[%s2825 + $0xac] sm:$0xf]
        %v2870 = vld [vmem:[%s2825 + $0xb0] sm:$0xf]
        %v2871 = vld [vmem:[%s2825 + $0xb4] sm:$0xf]
        %v2872 = vld [vmem:[%s2825 + $0xb8] sm:$0xf]
        %v2873 = vld [vmem:[%s2825 + $0xbc] sm:$0xf]
        %v2874 = vld [vmem:[%s2825 + $0xc0] sm:$0xf]
        %v2875 = vld [vmem:[%s2825 + $0xc4] sm:$0xf]
        %v2876 = vld [vmem:[%s2825 + $0xc8] sm:$0xf]
        %v2877 = vld [vmem:[%s2825 + $0xcc] sm:$0xf]
        %v2878 = vld [vmem:[%s2825 + $0xd0] sm:$0xf]
        %v2879 = vld [vmem:[%s2825 + $0xd4] sm:$0xf]
        %v2880 = vld [vmem:[%s2825 + $0xd8] sm:$0xf]
        %v2881 = vld [vmem:[%s2825 + $0xdc] sm:$0xf]
        %v2882 = vld [vmem:[%s2825 + $0xe0] sm:$0xf]
        %v2883 = vld [vmem:[%s2825 + $0xe4] sm:$0xf]
        %v2884 = vld [vmem:[%s2825 + $0xe8] sm:$0xf]
        %v2885 = vld [vmem:[%s2825 + $0xec] sm:$0xf]
        %v2886 = vld [vmem:[%s2825 + $0xf0] sm:$0xf]
        %v2887 = vld [vmem:[%s2825 + $0xf4] sm:$0xf]
        %v2888 = vld [vmem:[%s2825 + $0xf8] sm:$0xf]
        %v2889 = vld [vmem:[%s2825 + $0xfc] sm:$0xf]
        %v2890 = vrot.slane %v2572, 2
        %v2891 = vrot.slane %v2573, 2
        %v2892 = vrot.slane %v2574, 2
        %v2893 = vrot.slane %v2575, 2
        %v2962 = vunpack.c.l.b16 %v2826
        %v2963 = vunpack.c.l.b16 %v2827
        %v2964 = vunpack.c.l.b16 %v2828
        %v2965 = vunpack.c.l.b16 %v2829
        %v2966 = vunpack.c.l.b16 %v2830
        %v2967 = vunpack.c.l.b16 %v2831
        %v2968 = vunpack.c.l.b16 %v2832
        %v2969 = vunpack.c.l.b16 %v2833
        %v2970 = vunpack.c.l.b16 %v2834
        %v2971 = vunpack.c.l.b16 %v2835
        %v2972 = vunpack.c.l.b16 %v2836
        %v2973 = vunpack.c.l.b16 %v2837
        %v2974 = vunpack.c.l.b16 %v2838
        %v2975 = vunpack.c.l.b16 %v2839
        %v2976 = vunpack.c.l.b16 %v2840
        %v2977 = vunpack.c.l.b16 %v2841
        %v2978 = vunpack.c.l.b16 %v2842
        %v2979 = vunpack.c.l.b16 %v2843
        %v2980 = vunpack.c.l.b16 %v2844
        %v2981 = vunpack.c.l.b16 %v2845
        %v2982 = vunpack.c.l.b16 %v2846
        %v2983 = vunpack.c.l.b16 %v2847
        %v2984 = vunpack.c.l.b16 %v2848
        %v2985 = vunpack.c.l.b16 %v2849
        %v2986 = vunpack.c.l.b16 %v2850
        %v2987 = vunpack.c.l.b16 %v2851
        %v2988 = vunpack.c.l.b16 %v2852
        %v2989 = vunpack.c.l.b16 %v2853
        %v2990 = vunpack.c.l.b16 %v2854
        %v2991 = vunpack.c.l.b16 %v2855
        %v2992 = vunpack.c.l.b16 %v2856
        %v2993 = vunpack.c.l.b16 %v2857
        %v2994 = vunpack.c.l.b16 %v2858
        %v2995 = vunpack.c.l.b16 %v2859
        %v2996 = vunpack.c.l.b16 %v2860
        %v2997 = vunpack.c.l.b16 %v2861
        %v2998 = vunpack.c.l.b16 %v2862
        %v2999 = vunpack.c.l.b16 %v2863
        %v3000 = vunpack.c.l.b16 %v2864
        %v3001 = vunpack.c.l.b16 %v2865
        %v3002 = vunpack.c.l.b16 %v2866
        %v3003 = vunpack.c.l.b16 %v2867
        %v3004 = vunpack.c.l.b16 %v2868
        %v3005 = vunpack.c.l.b16 %v2869
        %v3006 = vunpack.c.l.b16 %v2870
        %v3007 = vunpack.c.l.b16 %v2871
        %v3008 = vunpack.c.l.b16 %v2872
        %v3009 = vunpack.c.l.b16 %v2873
        %v3010 = vunpack.c.l.b16 %v2874
        %v3011 = vunpack.c.l.b16 %v2875
        %v3012 = vunpack.c.l.b16 %v2876
        %v3013 = vunpack.c.l.b16 %v2877
        %v3014 = vunpack.c.l.b16 %v2878
        %v3015 = vunpack.c.l.b16 %v2879
        %v3016 = vunpack.c.l.b16 %v2880
        %v3017 = vunpack.c.l.b16 %v2881
        %v3018 = vunpack.c.l.b16 %v2882
        %v3019 = vunpack.c.l.b16 %v2883
        %v3020 = vunpack.c.l.b16 %v2884
        %v3021 = vunpack.c.l.b16 %v2885
        %v3022 = vunpack.c.l.b16 %v2886
        %v3023 = vunpack.c.l.b16 %v2887
        %v3024 = vunpack.c.l.b16 %v2888
        %v3025 = vunpack.c.l.b16 %v2889
        %v3026 = vpack.c.b16 %v2963, %v2962
        %v3027 = vpack.c.b16 %v2965, %v2964
        %v3028 = vpack.c.b16 %v2967, %v2966
        %v3029 = vpack.c.b16 %v2969, %v2968
        %v3030 = vpack.c.b16 %v2971, %v2970
        %v3031 = vpack.c.b16 %v2973, %v2972
        %v3032 = vpack.c.b16 %v2975, %v2974
        %v3033 = vpack.c.b16 %v2977, %v2976
        %v3034 = vpack.c.b16 %v2979, %v2978
        %v3035 = vpack.c.b16 %v2981, %v2980
        %v3036 = vpack.c.b16 %v2983, %v2982
        %v3037 = vpack.c.b16 %v2985, %v2984
        %v3038 = vpack.c.b16 %v2987, %v2986
        %v3039 = vpack.c.b16 %v2989, %v2988
        %v3040 = vpack.c.b16 %v2991, %v2990
        %v3041 = vpack.c.b16 %v2993, %v2992
        %v3042 = vpack.c.b16 %v2995, %v2994
        %v3043 = vpack.c.b16 %v2997, %v2996
        %v3044 = vpack.c.b16 %v2999, %v2998
        %v3045 = vpack.c.b16 %v3001, %v3000
        %v3046 = vpack.c.b16 %v3003, %v3002
        %v3047 = vpack.c.b16 %v3005, %v3004
        %v3048 = vpack.c.b16 %v3007, %v3006
        %v3049 = vpack.c.b16 %v3009, %v3008
        %v3050 = vpack.c.b16 %v3011, %v3010
        %v3051 = vpack.c.b16 %v3013, %v3012
        %v3052 = vpack.c.b16 %v3015, %v3014
        %v3053 = vpack.c.b16 %v3017, %v3016
        %v3054 = vpack.c.b16 %v3019, %v3018
        %v3055 = vpack.c.b16 %v3021, %v3020
        %v3056 = vpack.c.b16 %v3023, %v3022
        %v3057 = vpack.c.b16 %v3025, %v3024
        %3090 = vmatpush.bf16.msra.mxu0 %v3033
        %3091 = vmatpush.bf16.msra.mxu0 %v3032
        %3092 = vmatpush.bf16.msra.mxu0 %v3031
        %3093 = vmatpush.bf16.msra.mxu0 %v3030
        %3094 = vmatpush.bf16.msra.mxu0 %v3029
        %3095 = vmatpush.bf16.msra.mxu0 %v3028
        %3096 = vmatpush.bf16.msra.mxu0 %v3027
        %3097 = vmatpush.bf16.msra.mxu0 %v3026
        %3098 = vmatmul.bf16.gmra.mxu0 %v2890
        %v3099 = vpop.f32.mrf.mxu0
        %v3100 = vadd.f32 0.0, %v3099
        %v3101 = vpop.f32.mrf.mxu0
        %3102 = vdwg.mxu0
        %3103 = vmatpush.bf16.msra.mxu0 %v3041
        %3104 = vmatpush.bf16.msra.mxu0 %v3040
        %3105 = vmatpush.bf16.msra.mxu0 %v3039
        %3106 = vmatpush.bf16.msra.mxu0 %v3038
        %3107 = vmatpush.bf16.msra.mxu0 %v3037
        %3108 = vmatpush.bf16.msra.mxu0 %v3036
        %3109 = vmatpush.bf16.msra.mxu0 %v3035
        %3110 = vmatpush.bf16.msra.mxu0 %v3034
        %3111 = vmatmul.bf16.gmra.mxu0 %v2891
        %v3112 = vpop.f32.mrf.mxu0
        %v3113 = vadd.f32 %v3100, %v3112
        %v3114 = vpop.f32.mrf.mxu0
        %3115 = vdwg.mxu0
        %3116 = vmatpush.bf16.msra.mxu0 %v3049
        %3117 = vmatpush.bf16.msra.mxu0 %v3048
        %3118 = vmatpush.bf16.msra.mxu0 %v3047
        %3119 = vmatpush.bf16.msra.mxu0 %v3046
        %3120 = vmatpush.bf16.msra.mxu0 %v3045
        %3121 = vmatpush.bf16.msra.mxu0 %v3044
        %3122 = vmatpush.bf16.msra.mxu0 %v3043
        %3123 = vmatpush.bf16.msra.mxu0 %v3042
        %3124 = vmatmul.bf16.gmra.mxu0 %v2892
        %v3125 = vpop.f32.mrf.mxu0
        %v3126 = vadd.f32 %v3113, %v3125
        %v3127 = vpop.f32.mrf.mxu0
        %3128 = vdwg.mxu0
        %3129 = vmatpush.bf16.msra.mxu0 %v3057
        %3130 = vmatpush.bf16.msra.mxu0 %v3056
        %3131 = vmatpush.bf16.msra.mxu0 %v3055
        %3132 = vmatpush.bf16.msra.mxu0 %v3054
        %3133 = vmatpush.bf16.msra.mxu0 %v3053
        %3134 = vmatpush.bf16.msra.mxu0 %v3052
        %3135 = vmatpush.bf16.msra.mxu0 %v3051
        %3136 = vmatpush.bf16.msra.mxu0 %v3050
        %3137 = vmatmul.bf16.gmra.mxu0 %v2893
        %v3138 = vpop.f32.mrf.mxu0
        %v3139 = vadd.f32 %v3126, %v3138
        %v3140 = vpop.f32.mrf.mxu0
        %3141 = vdwg.mxu0
        %v3142 = vadd.f32 %v2824, %v3139
        %s3143 = scalar_lea.vmem %s4, 1024
        %v3144 = vld [vmem:[%s3143] sm:$0xf]
        %v3145 = vld [vmem:[%s3143 + $0x4] sm:$0xf]
        %v3146 = vld [vmem:[%s3143 + $0x8] sm:$0xf]
        %v3147 = vld [vmem:[%s3143 + $0xc] sm:$0xf]
        %v3148 = vld [vmem:[%s3143 + $0x10] sm:$0xf]
        %v3149 = vld [vmem:[%s3143 + $0x14] sm:$0xf]
        %v3150 = vld [vmem:[%s3143 + $0x18] sm:$0xf]
        %v3151 = vld [vmem:[%s3143 + $0x1c] sm:$0xf]
        %v3152 = vld [vmem:[%s3143 + $0x20] sm:$0xf]
        %v3153 = vld [vmem:[%s3143 + $0x24] sm:$0xf]
        %v3154 = vld [vmem:[%s3143 + $0x28] sm:$0xf]
        %v3155 = vld [vmem:[%s3143 + $0x2c] sm:$0xf]
        %v3156 = vld [vmem:[%s3143 + $0x30] sm:$0xf]
        %v3157 = vld [vmem:[%s3143 + $0x34] sm:$0xf]
        %v3158 = vld [vmem:[%s3143 + $0x38] sm:$0xf]
        %v3159 = vld [vmem:[%s3143 + $0x3c] sm:$0xf]
        %v3160 = vld [vmem:[%s3143 + $0x40] sm:$0xf]
        %v3161 = vld [vmem:[%s3143 + $0x44] sm:$0xf]
        %v3162 = vld [vmem:[%s3143 + $0x48] sm:$0xf]
        %v3163 = vld [vmem:[%s3143 + $0x4c] sm:$0xf]
        %v3164 = vld [vmem:[%s3143 + $0x50] sm:$0xf]
        %v3165 = vld [vmem:[%s3143 + $0x54] sm:$0xf]
        %v3166 = vld [vmem:[%s3143 + $0x58] sm:$0xf]
        %v3167 = vld [vmem:[%s3143 + $0x5c] sm:$0xf]
        %v3168 = vld [vmem:[%s3143 + $0x60] sm:$0xf]
        %v3169 = vld [vmem:[%s3143 + $0x64] sm:$0xf]
        %v3170 = vld [vmem:[%s3143 + $0x68] sm:$0xf]
        %v3171 = vld [vmem:[%s3143 + $0x6c] sm:$0xf]
        %v3172 = vld [vmem:[%s3143 + $0x70] sm:$0xf]
        %v3173 = vld [vmem:[%s3143 + $0x74] sm:$0xf]
        %v3174 = vld [vmem:[%s3143 + $0x78] sm:$0xf]
        %v3175 = vld [vmem:[%s3143 + $0x7c] sm:$0xf]
        %v3176 = vld [vmem:[%s3143 + $0x80] sm:$0xf]
        %v3177 = vld [vmem:[%s3143 + $0x84] sm:$0xf]
        %v3178 = vld [vmem:[%s3143 + $0x88] sm:$0xf]
        %v3179 = vld [vmem:[%s3143 + $0x8c] sm:$0xf]
        %v3180 = vld [vmem:[%s3143 + $0x90] sm:$0xf]
        %v3181 = vld [vmem:[%s3143 + $0x94] sm:$0xf]
        %v3182 = vld [vmem:[%s3143 + $0x98] sm:$0xf]
        %v3183 = vld [vmem:[%s3143 + $0x9c] sm:$0xf]
        %v3184 = vld [vmem:[%s3143 + $0xa0] sm:$0xf]
        %v3185 = vld [vmem:[%s3143 + $0xa4] sm:$0xf]
        %v3186 = vld [vmem:[%s3143 + $0xa8] sm:$0xf]
        %v3187 = vld [vmem:[%s3143 + $0xac] sm:$0xf]
        %v3188 = vld [vmem:[%s3143 + $0xb0] sm:$0xf]
        %v3189 = vld [vmem:[%s3143 + $0xb4] sm:$0xf]
        %v3190 = vld [vmem:[%s3143 + $0xb8] sm:$0xf]
        %v3191 = vld [vmem:[%s3143 + $0xbc] sm:$0xf]
        %v3192 = vld [vmem:[%s3143 + $0xc0] sm:$0xf]
        %v3193 = vld [vmem:[%s3143 + $0xc4] sm:$0xf]
        %v3194 = vld [vmem:[%s3143 + $0xc8] sm:$0xf]
        %v3195 = vld [vmem:[%s3143 + $0xcc] sm:$0xf]
        %v3196 = vld [vmem:[%s3143 + $0xd0] sm:$0xf]
        %v3197 = vld [vmem:[%s3143 + $0xd4] sm:$0xf]
        %v3198 = vld [vmem:[%s3143 + $0xd8] sm:$0xf]
        %v3199 = vld [vmem:[%s3143 + $0xdc] sm:$0xf]
        %v3200 = vld [vmem:[%s3143 + $0xe0] sm:$0xf]
        %v3201 = vld [vmem:[%s3143 + $0xe4] sm:$0xf]
        %v3202 = vld [vmem:[%s3143 + $0xe8] sm:$0xf]
        %v3203 = vld [vmem:[%s3143 + $0xec] sm:$0xf]
        %v3204 = vld [vmem:[%s3143 + $0xf0] sm:$0xf]
        %v3205 = vld [vmem:[%s3143 + $0xf4] sm:$0xf]
        %v3206 = vld [vmem:[%s3143 + $0xf8] sm:$0xf]
        %v3207 = vld [vmem:[%s3143 + $0xfc] sm:$0xf]
        %v3210 = vunpack.c.l.b16 %v1850
        %v3211 = vunpack.c.h.b16 %v1850
        %v3212 = vunpack.c.l.b16 %v1851
        %v3213 = vunpack.c.h.b16 %v1851
        %v3214 = vpack.c.b16 %v3210, %v3210
        %v3215 = vpack.c.b16 %v3211, %v3211
        %v3216 = vpack.c.b16 %v3212, %v3212
        %v3217 = vpack.c.b16 %v3213, %v3213
        %v3286 = vunpack.c.l.b16 %v3144
        %v3287 = vunpack.c.l.b16 %v3145
        %v3288 = vunpack.c.l.b16 %v3146
        %v3289 = vunpack.c.l.b16 %v3147
        %v3290 = vunpack.c.l.b16 %v3148
        %v3291 = vunpack.c.l.b16 %v3149
        %v3292 = vunpack.c.l.b16 %v3150
        %v3293 = vunpack.c.l.b16 %v3151
        %v3294 = vunpack.c.l.b16 %v3152
        %v3295 = vunpack.c.l.b16 %v3153
        %v3296 = vunpack.c.l.b16 %v3154
        %v3297 = vunpack.c.l.b16 %v3155
        %v3298 = vunpack.c.l.b16 %v3156
        %v3299 = vunpack.c.l.b16 %v3157
        %v3300 = vunpack.c.l.b16 %v3158
        %v3301 = vunpack.c.l.b16 %v3159
        %v3302 = vunpack.c.l.b16 %v3160
        %v3303 = vunpack.c.l.b16 %v3161
        %v3304 = vunpack.c.l.b16 %v3162
        %v3305 = vunpack.c.l.b16 %v3163
        %v3306 = vunpack.c.l.b16 %v3164
        %v3307 = vunpack.c.l.b16 %v3165
        %v3308 = vunpack.c.l.b16 %v3166
        %v3309 = vunpack.c.l.b16 %v3167
        %v3310 = vunpack.c.l.b16 %v3168
        %v3311 = vunpack.c.l.b16 %v3169
        %v3312 = vunpack.c.l.b16 %v3170
        %v3313 = vunpack.c.l.b16 %v3171
        %v3314 = vunpack.c.l.b16 %v3172
        %v3315 = vunpack.c.l.b16 %v3173
        %v3316 = vunpack.c.l.b16 %v3174
        %v3317 = vunpack.c.l.b16 %v3175
        %v3318 = vunpack.c.l.b16 %v3176
        %v3319 = vunpack.c.l.b16 %v3177
        %v3320 = vunpack.c.l.b16 %v3178
        %v3321 = vunpack.c.l.b16 %v3179
        %v3322 = vunpack.c.l.b16 %v3180
        %v3323 = vunpack.c.l.b16 %v3181
        %v3324 = vunpack.c.l.b16 %v3182
        %v3325 = vunpack.c.l.b16 %v3183
        %v3326 = vunpack.c.l.b16 %v3184
        %v3327 = vunpack.c.l.b16 %v3185
        %v3328 = vunpack.c.l.b16 %v3186
        %v3329 = vunpack.c.l.b16 %v3187
        %v3330 = vunpack.c.l.b16 %v3188
        %v3331 = vunpack.c.l.b16 %v3189
        %v3332 = vunpack.c.l.b16 %v3190
        %v3333 = vunpack.c.l.b16 %v3191
        %v3334 = vunpack.c.l.b16 %v3192
        %v3335 = vunpack.c.l.b16 %v3193
        %v3336 = vunpack.c.l.b16 %v3194
        %v3337 = vunpack.c.l.b16 %v3195
        %v3338 = vunpack.c.l.b16 %v3196
        %v3339 = vunpack.c.l.b16 %v3197
        %v3340 = vunpack.c.l.b16 %v3198
        %v3341 = vunpack.c.l.b16 %v3199
        %v3342 = vunpack.c.l.b16 %v3200
        %v3343 = vunpack.c.l.b16 %v3201
        %v3344 = vunpack.c.l.b16 %v3202
        %v3345 = vunpack.c.l.b16 %v3203
        %v3346 = vunpack.c.l.b16 %v3204
        %v3347 = vunpack.c.l.b16 %v3205
        %v3348 = vunpack.c.l.b16 %v3206
        %v3349 = vunpack.c.l.b16 %v3207
        %v3350 = vpack.c.b16 %v3287, %v3286
        %v3351 = vpack.c.b16 %v3289, %v3288
        %v3352 = vpack.c.b16 %v3291, %v3290
        %v3353 = vpack.c.b16 %v3293, %v3292
        %v3354 = vpack.c.b16 %v3295, %v3294
        %v3355 = vpack.c.b16 %v3297, %v3296
        %v3356 = vpack.c.b16 %v3299, %v3298
        %v3357 = vpack.c.b16 %v3301, %v3300
        %v3358 = vpack.c.b16 %v3303, %v3302
        %v3359 = vpack.c.b16 %v3305, %v3304
        %v3360 = vpack.c.b16 %v3307, %v3306
        %v3361 = vpack.c.b16 %v3309, %v3308
        %v3362 = vpack.c.b16 %v3311, %v3310
        %v3363 = vpack.c.b16 %v3313, %v3312
        %v3364 = vpack.c.b16 %v3315, %v3314
        %v3365 = vpack.c.b16 %v3317, %v3316
        %v3366 = vpack.c.b16 %v3319, %v3318
        %v3367 = vpack.c.b16 %v3321, %v3320
        %v3368 = vpack.c.b16 %v3323, %v3322
        %v3369 = vpack.c.b16 %v3325, %v3324
        %v3370 = vpack.c.b16 %v3327, %v3326
        %v3371 = vpack.c.b16 %v3329, %v3328
        %v3372 = vpack.c.b16 %v3331, %v3330
        %v3373 = vpack.c.b16 %v3333, %v3332
        %v3374 = vpack.c.b16 %v3335, %v3334
        %v3375 = vpack.c.b16 %v3337, %v3336
        %v3376 = vpack.c.b16 %v3339, %v3338
        %v3377 = vpack.c.b16 %v3341, %v3340
        %v3378 = vpack.c.b16 %v3343, %v3342
        %v3379 = vpack.c.b16 %v3345, %v3344
        %v3380 = vpack.c.b16 %v3347, %v3346
        %v3381 = vpack.c.b16 %v3349, %v3348
        %3414 = vmatpush.bf16.msra.mxu0 %v3357
        %3415 = vmatpush.bf16.msra.mxu0 %v3356
        %3416 = vmatpush.bf16.msra.mxu0 %v3355
        %3417 = vmatpush.bf16.msra.mxu0 %v3354
        %3418 = vmatpush.bf16.msra.mxu0 %v3353
        %3419 = vmatpush.bf16.msra.mxu0 %v3352
        %3420 = vmatpush.bf16.msra.mxu0 %v3351
        %3421 = vmatpush.bf16.msra.mxu0 %v3350
        %3422 = vmatmul.bf16.gmra.mxu0 %v3214
        %v3423 = vpop.f32.mrf.mxu0
        %v3424 = vadd.f32 0.0, %v3423
        %v3425 = vpop.f32.mrf.mxu0
        %3426 = vdwg.mxu0
        %3427 = vmatpush.bf16.msra.mxu0 %v3365
        %3428 = vmatpush.bf16.msra.mxu0 %v3364
        %3429 = vmatpush.bf16.msra.mxu0 %v3363
        %3430 = vmatpush.bf16.msra.mxu0 %v3362
        %3431 = vmatpush.bf16.msra.mxu0 %v3361
        %3432 = vmatpush.bf16.msra.mxu0 %v3360
        %3433 = vmatpush.bf16.msra.mxu0 %v3359
        %3434 = vmatpush.bf16.msra.mxu0 %v3358
        %3435 = vmatmul.bf16.gmra.mxu0 %v3215
        %v3436 = vpop.f32.mrf.mxu0
        %v3437 = vadd.f32 %v3424, %v3436
        %v3438 = vpop.f32.mrf.mxu0
        %3439 = vdwg.mxu0
        %3440 = vmatpush.bf16.msra.mxu0 %v3373
        %3441 = vmatpush.bf16.msra.mxu0 %v3372
        %3442 = vmatpush.bf16.msra.mxu0 %v3371
        %3443 = vmatpush.bf16.msra.mxu0 %v3370
        %3444 = vmatpush.bf16.msra.mxu0 %v3369
        %3445 = vmatpush.bf16.msra.mxu0 %v3368
        %3446 = vmatpush.bf16.msra.mxu0 %v3367
        %3447 = vmatpush.bf16.msra.mxu0 %v3366
        %3448 = vmatmul.bf16.gmra.mxu0 %v3216
        %v3449 = vpop.f32.mrf.mxu0
        %v3450 = vadd.f32 %v3437, %v3449
        %v3451 = vpop.f32.mrf.mxu0
        %3452 = vdwg.mxu0
        %3453 = vmatpush.bf16.msra.mxu0 %v3381
        %3454 = vmatpush.bf16.msra.mxu0 %v3380
        %3455 = vmatpush.bf16.msra.mxu0 %v3379
        %3456 = vmatpush.bf16.msra.mxu0 %v3378
        %3457 = vmatpush.bf16.msra.mxu0 %v3377
        %3458 = vmatpush.bf16.msra.mxu0 %v3376
        %3459 = vmatpush.bf16.msra.mxu0 %v3375
        %3460 = vmatpush.bf16.msra.mxu0 %v3374
        %3461 = vmatmul.bf16.gmra.mxu0 %v3217
        %v3462 = vpop.f32.mrf.mxu0
        %v3463 = vadd.f32 %v3450, %v3462
        %v3464 = vpop.f32.mrf.mxu0
        %3465 = vdwg.mxu0
        %v3466 = vadd.f32 %v3142, %v3463
        %s3467 = scalar_lea.vmem %s4, 1280
        %v3468 = vld [vmem:[%s3467] sm:$0xf]
        %v3469 = vld [vmem:[%s3467 + $0x4] sm:$0xf]
        %v3470 = vld [vmem:[%s3467 + $0x8] sm:$0xf]
        %v3471 = vld [vmem:[%s3467 + $0xc] sm:$0xf]
        %v3472 = vld [vmem:[%s3467 + $0x10] sm:$0xf]
        %v3473 = vld [vmem:[%s3467 + $0x14] sm:$0xf]
        %v3474 = vld [vmem:[%s3467 + $0x18] sm:$0xf]
        %v3475 = vld [vmem:[%s3467 + $0x1c] sm:$0xf]
        %v3476 = vld [vmem:[%s3467 + $0x20] sm:$0xf]
        %v3477 = vld [vmem:[%s3467 + $0x24] sm:$0xf]
        %v3478 = vld [vmem:[%s3467 + $0x28] sm:$0xf]
        %v3479 = vld [vmem:[%s3467 + $0x2c] sm:$0xf]
        %v3480 = vld [vmem:[%s3467 + $0x30] sm:$0xf]
        %v3481 = vld [vmem:[%s3467 + $0x34] sm:$0xf]
        %v3482 = vld [vmem:[%s3467 + $0x38] sm:$0xf]
        %v3483 = vld [vmem:[%s3467 + $0x3c] sm:$0xf]
        %v3484 = vld [vmem:[%s3467 + $0x40] sm:$0xf]
        %v3485 = vld [vmem:[%s3467 + $0x44] sm:$0xf]
        %v3486 = vld [vmem:[%s3467 + $0x48] sm:$0xf]
        %v3487 = vld [vmem:[%s3467 + $0x4c] sm:$0xf]
        %v3488 = vld [vmem:[%s3467 + $0x50] sm:$0xf]
        %v3489 = vld [vmem:[%s3467 + $0x54] sm:$0xf]
        %v3490 = vld [vmem:[%s3467 + $0x58] sm:$0xf]
        %v3491 = vld [vmem:[%s3467 + $0x5c] sm:$0xf]
        %v3492 = vld [vmem:[%s3467 + $0x60] sm:$0xf]
        %v3493 = vld [vmem:[%s3467 + $0x64] sm:$0xf]
        %v3494 = vld [vmem:[%s3467 + $0x68] sm:$0xf]
        %v3495 = vld [vmem:[%s3467 + $0x6c] sm:$0xf]
        %v3496 = vld [vmem:[%s3467 + $0x70] sm:$0xf]
        %v3497 = vld [vmem:[%s3467 + $0x74] sm:$0xf]
        %v3498 = vld [vmem:[%s3467 + $0x78] sm:$0xf]
        %v3499 = vld [vmem:[%s3467 + $0x7c] sm:$0xf]
        %v3500 = vld [vmem:[%s3467 + $0x80] sm:$0xf]
        %v3501 = vld [vmem:[%s3467 + $0x84] sm:$0xf]
        %v3502 = vld [vmem:[%s3467 + $0x88] sm:$0xf]
        %v3503 = vld [vmem:[%s3467 + $0x8c] sm:$0xf]
        %v3504 = vld [vmem:[%s3467 + $0x90] sm:$0xf]
        %v3505 = vld [vmem:[%s3467 + $0x94] sm:$0xf]
        %v3506 = vld [vmem:[%s3467 + $0x98] sm:$0xf]
        %v3507 = vld [vmem:[%s3467 + $0x9c] sm:$0xf]
        %v3508 = vld [vmem:[%s3467 + $0xa0] sm:$0xf]
        %v3509 = vld [vmem:[%s3467 + $0xa4] sm:$0xf]
        %v3510 = vld [vmem:[%s3467 + $0xa8] sm:$0xf]
        %v3511 = vld [vmem:[%s3467 + $0xac] sm:$0xf]
        %v3512 = vld [vmem:[%s3467 + $0xb0] sm:$0xf]
        %v3513 = vld [vmem:[%s3467 + $0xb4] sm:$0xf]
        %v3514 = vld [vmem:[%s3467 + $0xb8] sm:$0xf]
        %v3515 = vld [vmem:[%s3467 + $0xbc] sm:$0xf]
        %v3516 = vld [vmem:[%s3467 + $0xc0] sm:$0xf]
        %v3517 = vld [vmem:[%s3467 + $0xc4] sm:$0xf]
        %v3518 = vld [vmem:[%s3467 + $0xc8] sm:$0xf]
        %v3519 = vld [vmem:[%s3467 + $0xcc] sm:$0xf]
        %v3520 = vld [vmem:[%s3467 + $0xd0] sm:$0xf]
        %v3521 = vld [vmem:[%s3467 + $0xd4] sm:$0xf]
        %v3522 = vld [vmem:[%s3467 + $0xd8] sm:$0xf]
        %v3523 = vld [vmem:[%s3467 + $0xdc] sm:$0xf]
        %v3524 = vld [vmem:[%s3467 + $0xe0] sm:$0xf]
        %v3525 = vld [vmem:[%s3467 + $0xe4] sm:$0xf]
        %v3526 = vld [vmem:[%s3467 + $0xe8] sm:$0xf]
        %v3527 = vld [vmem:[%s3467 + $0xec] sm:$0xf]
        %v3528 = vld [vmem:[%s3467 + $0xf0] sm:$0xf]
        %v3529 = vld [vmem:[%s3467 + $0xf4] sm:$0xf]
        %v3530 = vld [vmem:[%s3467 + $0xf8] sm:$0xf]
        %v3531 = vld [vmem:[%s3467 + $0xfc] sm:$0xf]
        %v3532 = vrot.slane %v3214, 2
        %v3533 = vrot.slane %v3215, 2
        %v3534 = vrot.slane %v3216, 2
        %v3535 = vrot.slane %v3217, 2
        %v3604 = vunpack.c.l.b16 %v3468
        %v3605 = vunpack.c.l.b16 %v3469
        %v3606 = vunpack.c.l.b16 %v3470
        %v3607 = vunpack.c.l.b16 %v3471
        %v3608 = vunpack.c.l.b16 %v3472
        %v3609 = vunpack.c.l.b16 %v3473
        %v3610 = vunpack.c.l.b16 %v3474
        %v3611 = vunpack.c.l.b16 %v3475
        %v3612 = vunpack.c.l.b16 %v3476
        %v3613 = vunpack.c.l.b16 %v3477
        %v3614 = vunpack.c.l.b16 %v3478
        %v3615 = vunpack.c.l.b16 %v3479
        %v3616 = vunpack.c.l.b16 %v3480
        %v3617 = vunpack.c.l.b16 %v3481
        %v3618 = vunpack.c.l.b16 %v3482
        %v3619 = vunpack.c.l.b16 %v3483
        %v3620 = vunpack.c.l.b16 %v3484
        %v3621 = vunpack.c.l.b16 %v3485
        %v3622 = vunpack.c.l.b16 %v3486
        %v3623 = vunpack.c.l.b16 %v3487
        %v3624 = vunpack.c.l.b16 %v3488
        %v3625 = vunpack.c.l.b16 %v3489
        %v3626 = vunpack.c.l.b16 %v3490
        %v3627 = vunpack.c.l.b16 %v3491
        %v3628 = vunpack.c.l.b16 %v3492
        %v3629 = vunpack.c.l.b16 %v3493
        %v3630 = vunpack.c.l.b16 %v3494
        %v3631 = vunpack.c.l.b16 %v3495
        %v3632 = vunpack.c.l.b16 %v3496
        %v3633 = vunpack.c.l.b16 %v3497
        %v3634 = vunpack.c.l.b16 %v3498
        %v3635 = vunpack.c.l.b16 %v3499
        %v3636 = vunpack.c.l.b16 %v3500
        %v3637 = vunpack.c.l.b16 %v3501
        %v3638 = vunpack.c.l.b16 %v3502
        %v3639 = vunpack.c.l.b16 %v3503
        %v3640 = vunpack.c.l.b16 %v3504
        %v3641 = vunpack.c.l.b16 %v3505
        %v3642 = vunpack.c.l.b16 %v3506
        %v3643 = vunpack.c.l.b16 %v3507
        %v3644 = vunpack.c.l.b16 %v3508
        %v3645 = vunpack.c.l.b16 %v3509
        %v3646 = vunpack.c.l.b16 %v3510
        %v3647 = vunpack.c.l.b16 %v3511
        %v3648 = vunpack.c.l.b16 %v3512
        %v3649 = vunpack.c.l.b16 %v3513
        %v3650 = vunpack.c.l.b16 %v3514
        %v3651 = vunpack.c.l.b16 %v3515
        %v3652 = vunpack.c.l.b16 %v3516
        %v3653 = vunpack.c.l.b16 %v3517
        %v3654 = vunpack.c.l.b16 %v3518
        %v3655 = vunpack.c.l.b16 %v3519
        %v3656 = vunpack.c.l.b16 %v3520
        %v3657 = vunpack.c.l.b16 %v3521
        %v3658 = vunpack.c.l.b16 %v3522
        %v3659 = vunpack.c.l.b16 %v3523
        %v3660 = vunpack.c.l.b16 %v3524
        %v3661 = vunpack.c.l.b16 %v3525
        %v3662 = vunpack.c.l.b16 %v3526
        %v3663 = vunpack.c.l.b16 %v3527
        %v3664 = vunpack.c.l.b16 %v3528
        %v3665 = vunpack.c.l.b16 %v3529
        %v3666 = vunpack.c.l.b16 %v3530
        %v3667 = vunpack.c.l.b16 %v3531
        %v3668 = vpack.c.b16 %v3605, %v3604
        %v3669 = vpack.c.b16 %v3607, %v3606
        %v3670 = vpack.c.b16 %v3609, %v3608
        %v3671 = vpack.c.b16 %v3611, %v3610
        %v3672 = vpack.c.b16 %v3613, %v3612
        %v3673 = vpack.c.b16 %v3615, %v3614
        %v3674 = vpack.c.b16 %v3617, %v3616
        %v3675 = vpack.c.b16 %v3619, %v3618
        %v3676 = vpack.c.b16 %v3621, %v3620
        %v3677 = vpack.c.b16 %v3623, %v3622
        %v3678 = vpack.c.b16 %v3625, %v3624
        %v3679 = vpack.c.b16 %v3627, %v3626
        %v3680 = vpack.c.b16 %v3629, %v3628
        %v3681 = vpack.c.b16 %v3631, %v3630
        %v3682 = vpack.c.b16 %v3633, %v3632
        %v3683 = vpack.c.b16 %v3635, %v3634
        %v3684 = vpack.c.b16 %v3637, %v3636
        %v3685 = vpack.c.b16 %v3639, %v3638
        %v3686 = vpack.c.b16 %v3641, %v3640
        %v3687 = vpack.c.b16 %v3643, %v3642
        %v3688 = vpack.c.b16 %v3645, %v3644
        %v3689 = vpack.c.b16 %v3647, %v3646
        %v3690 = vpack.c.b16 %v3649, %v3648
        %v3691 = vpack.c.b16 %v3651, %v3650
        %v3692 = vpack.c.b16 %v3653, %v3652
        %v3693 = vpack.c.b16 %v3655, %v3654
        %v3694 = vpack.c.b16 %v3657, %v3656
        %v3695 = vpack.c.b16 %v3659, %v3658
        %v3696 = vpack.c.b16 %v3661, %v3660
        %v3697 = vpack.c.b16 %v3663, %v3662
        %v3698 = vpack.c.b16 %v3665, %v3664
        %v3699 = vpack.c.b16 %v3667, %v3666
        %3732 = vmatpush.bf16.msra.mxu0 %v3675
        %3733 = vmatpush.bf16.msra.mxu0 %v3674
        %3734 = vmatpush.bf16.msra.mxu0 %v3673
        %3735 = vmatpush.bf16.msra.mxu0 %v3672
        %3736 = vmatpush.bf16.msra.mxu0 %v3671
        %3737 = vmatpush.bf16.msra.mxu0 %v3670
        %3738 = vmatpush.bf16.msra.mxu0 %v3669
        %3739 = vmatpush.bf16.msra.mxu0 %v3668
        %3740 = vmatmul.bf16.gmra.mxu0 %v3532
        %v3741 = vpop.f32.mrf.mxu0
        %v3742 = vadd.f32 0.0, %v3741
        %v3743 = vpop.f32.mrf.mxu0
        %3744 = vdwg.mxu0
        %3745 = vmatpush.bf16.msra.mxu0 %v3683
        %3746 = vmatpush.bf16.msra.mxu0 %v3682
        %3747 = vmatpush.bf16.msra.mxu0 %v3681
        %3748 = vmatpush.bf16.msra.mxu0 %v3680
        %3749 = vmatpush.bf16.msra.mxu0 %v3679
        %3750 = vmatpush.bf16.msra.mxu0 %v3678
        %3751 = vmatpush.bf16.msra.mxu0 %v3677
        %3752 = vmatpush.bf16.msra.mxu0 %v3676
        %3753 = vmatmul.bf16.gmra.mxu0 %v3533
        %v3754 = vpop.f32.mrf.mxu0
        %v3755 = vadd.f32 %v3742, %v3754
        %v3756 = vpop.f32.mrf.mxu0
        %3757 = vdwg.mxu0
        %3758 = vmatpush.bf16.msra.mxu0 %v3691
        %3759 = vmatpush.bf16.msra.mxu0 %v3690
        %3760 = vmatpush.bf16.msra.mxu0 %v3689
        %3761 = vmatpush.bf16.msra.mxu0 %v3688
        %3762 = vmatpush.bf16.msra.mxu0 %v3687
        %3763 = vmatpush.bf16.msra.mxu0 %v3686
        %3764 = vmatpush.bf16.msra.mxu0 %v3685
        %3765 = vmatpush.bf16.msra.mxu0 %v3684
        %3766 = vmatmul.bf16.gmra.mxu0 %v3534
        %v3767 = vpop.f32.mrf.mxu0
        %v3768 = vadd.f32 %v3755, %v3767
        %v3769 = vpop.f32.mrf.mxu0
        %3770 = vdwg.mxu0
        %3771 = vmatpush.bf16.msra.mxu0 %v3699
        %3772 = vmatpush.bf16.msra.mxu0 %v3698
        %3773 = vmatpush.bf16.msra.mxu0 %v3697
        %3774 = vmatpush.bf16.msra.mxu0 %v3696
        %3775 = vmatpush.bf16.msra.mxu0 %v3695
        %3776 = vmatpush.bf16.msra.mxu0 %v3694
        %3777 = vmatpush.bf16.msra.mxu0 %v3693
        %3778 = vmatpush.bf16.msra.mxu0 %v3692
        %3779 = vmatmul.bf16.gmra.mxu0 %v3535
        %v3780 = vpop.f32.mrf.mxu0
        %v3781 = vadd.f32 %v3768, %v3780
        %v3782 = vpop.f32.mrf.mxu0
        %3783 = vdwg.mxu0
        %v3784 = vadd.f32 %v3466, %v3781
        %s3785 = scalar_lea.vmem %s4, 1536
        %v3786 = vld [vmem:[%s3785] sm:$0xf]
        %v3787 = vld [vmem:[%s3785 + $0x4] sm:$0xf]
        %v3788 = vld [vmem:[%s3785 + $0x8] sm:$0xf]
        %v3789 = vld [vmem:[%s3785 + $0xc] sm:$0xf]
        %v3790 = vld [vmem:[%s3785 + $0x10] sm:$0xf]
        %v3791 = vld [vmem:[%s3785 + $0x14] sm:$0xf]
        %v3792 = vld [vmem:[%s3785 + $0x18] sm:$0xf]
        %v3793 = vld [vmem:[%s3785 + $0x1c] sm:$0xf]
        %v3794 = vld [vmem:[%s3785 + $0x20] sm:$0xf]
        %v3795 = vld [vmem:[%s3785 + $0x24] sm:$0xf]
        %v3796 = vld [vmem:[%s3785 + $0x28] sm:$0xf]
        %v3797 = vld [vmem:[%s3785 + $0x2c] sm:$0xf]
        %v3798 = vld [vmem:[%s3785 + $0x30] sm:$0xf]
        %v3799 = vld [vmem:[%s3785 + $0x34] sm:$0xf]
        %v3800 = vld [vmem:[%s3785 + $0x38] sm:$0xf]
        %v3801 = vld [vmem:[%s3785 + $0x3c] sm:$0xf]
        %v3802 = vld [vmem:[%s3785 + $0x40] sm:$0xf]
        %v3803 = vld [vmem:[%s3785 + $0x44] sm:$0xf]
        %v3804 = vld [vmem:[%s3785 + $0x48] sm:$0xf]
        %v3805 = vld [vmem:[%s3785 + $0x4c] sm:$0xf]
        %v3806 = vld [vmem:[%s3785 + $0x50] sm:$0xf]
        %v3807 = vld [vmem:[%s3785 + $0x54] sm:$0xf]
        %v3808 = vld [vmem:[%s3785 + $0x58] sm:$0xf]
        %v3809 = vld [vmem:[%s3785 + $0x5c] sm:$0xf]
        %v3810 = vld [vmem:[%s3785 + $0x60] sm:$0xf]
        %v3811 = vld [vmem:[%s3785 + $0x64] sm:$0xf]
        %v3812 = vld [vmem:[%s3785 + $0x68] sm:$0xf]
        %v3813 = vld [vmem:[%s3785 + $0x6c] sm:$0xf]
        %v3814 = vld [vmem:[%s3785 + $0x70] sm:$0xf]
        %v3815 = vld [vmem:[%s3785 + $0x74] sm:$0xf]
        %v3816 = vld [vmem:[%s3785 + $0x78] sm:$0xf]
        %v3817 = vld [vmem:[%s3785 + $0x7c] sm:$0xf]
        %v3818 = vld [vmem:[%s3785 + $0x80] sm:$0xf]
        %v3819 = vld [vmem:[%s3785 + $0x84] sm:$0xf]
        %v3820 = vld [vmem:[%s3785 + $0x88] sm:$0xf]
        %v3821 = vld [vmem:[%s3785 + $0x8c] sm:$0xf]
        %v3822 = vld [vmem:[%s3785 + $0x90] sm:$0xf]
        %v3823 = vld [vmem:[%s3785 + $0x94] sm:$0xf]
        %v3824 = vld [vmem:[%s3785 + $0x98] sm:$0xf]
        %v3825 = vld [vmem:[%s3785 + $0x9c] sm:$0xf]
        %v3826 = vld [vmem:[%s3785 + $0xa0] sm:$0xf]
        %v3827 = vld [vmem:[%s3785 + $0xa4] sm:$0xf]
        %v3828 = vld [vmem:[%s3785 + $0xa8] sm:$0xf]
        %v3829 = vld [vmem:[%s3785 + $0xac] sm:$0xf]
        %v3830 = vld [vmem:[%s3785 + $0xb0] sm:$0xf]
        %v3831 = vld [vmem:[%s3785 + $0xb4] sm:$0xf]
        %v3832 = vld [vmem:[%s3785 + $0xb8] sm:$0xf]
        %v3833 = vld [vmem:[%s3785 + $0xbc] sm:$0xf]
        %v3834 = vld [vmem:[%s3785 + $0xc0] sm:$0xf]
        %v3835 = vld [vmem:[%s3785 + $0xc4] sm:$0xf]
        %v3836 = vld [vmem:[%s3785 + $0xc8] sm:$0xf]
        %v3837 = vld [vmem:[%s3785 + $0xcc] sm:$0xf]
        %v3838 = vld [vmem:[%s3785 + $0xd0] sm:$0xf]
        %v3839 = vld [vmem:[%s3785 + $0xd4] sm:$0xf]
        %v3840 = vld [vmem:[%s3785 + $0xd8] sm:$0xf]
        %v3841 = vld [vmem:[%s3785 + $0xdc] sm:$0xf]
        %v3842 = vld [vmem:[%s3785 + $0xe0] sm:$0xf]
        %v3843 = vld [vmem:[%s3785 + $0xe4] sm:$0xf]
        %v3844 = vld [vmem:[%s3785 + $0xe8] sm:$0xf]
        %v3845 = vld [vmem:[%s3785 + $0xec] sm:$0xf]
        %v3846 = vld [vmem:[%s3785 + $0xf0] sm:$0xf]
        %v3847 = vld [vmem:[%s3785 + $0xf4] sm:$0xf]
        %v3848 = vld [vmem:[%s3785 + $0xf8] sm:$0xf]
        %v3849 = vld [vmem:[%s3785 + $0xfc] sm:$0xf]
        %v3852 = vunpack.c.l.b16 %v1852
        %v3853 = vunpack.c.h.b16 %v1852
        %v3854 = vunpack.c.l.b16 %v1853
        %v3855 = vunpack.c.h.b16 %v1853
        %v3856 = vpack.c.b16 %v3852, %v3852
        %v3857 = vpack.c.b16 %v3853, %v3853
        %v3858 = vpack.c.b16 %v3854, %v3854
        %v3859 = vpack.c.b16 %v3855, %v3855
        %v3928 = vunpack.c.l.b16 %v3786
        %v3929 = vunpack.c.l.b16 %v3787
        %v3930 = vunpack.c.l.b16 %v3788
        %v3931 = vunpack.c.l.b16 %v3789
        %v3932 = vunpack.c.l.b16 %v3790
        %v3933 = vunpack.c.l.b16 %v3791
        %v3934 = vunpack.c.l.b16 %v3792
        %v3935 = vunpack.c.l.b16 %v3793
        %v3936 = vunpack.c.l.b16 %v3794
        %v3937 = vunpack.c.l.b16 %v3795
        %v3938 = vunpack.c.l.b16 %v3796
        %v3939 = vunpack.c.l.b16 %v3797
        %v3940 = vunpack.c.l.b16 %v3798
        %v3941 = vunpack.c.l.b16 %v3799
        %v3942 = vunpack.c.l.b16 %v3800
        %v3943 = vunpack.c.l.b16 %v3801
        %v3944 = vunpack.c.l.b16 %v3802
        %v3945 = vunpack.c.l.b16 %v3803
        %v3946 = vunpack.c.l.b16 %v3804
        %v3947 = vunpack.c.l.b16 %v3805
        %v3948 = vunpack.c.l.b16 %v3806
        %v3949 = vunpack.c.l.b16 %v3807
        %v3950 = vunpack.c.l.b16 %v3808
        %v3951 = vunpack.c.l.b16 %v3809
        %v3952 = vunpack.c.l.b16 %v3810
        %v3953 = vunpack.c.l.b16 %v3811
        %v3954 = vunpack.c.l.b16 %v3812
        %v3955 = vunpack.c.l.b16 %v3813
        %v3956 = vunpack.c.l.b16 %v3814
        %v3957 = vunpack.c.l.b16 %v3815
        %v3958 = vunpack.c.l.b16 %v3816
        %v3959 = vunpack.c.l.b16 %v3817
        %v3960 = vunpack.c.l.b16 %v3818
        %v3961 = vunpack.c.l.b16 %v3819
        %v3962 = vunpack.c.l.b16 %v3820
        %v3963 = vunpack.c.l.b16 %v3821
        %v3964 = vunpack.c.l.b16 %v3822
        %v3965 = vunpack.c.l.b16 %v3823
        %v3966 = vunpack.c.l.b16 %v3824
        %v3967 = vunpack.c.l.b16 %v3825
        %v3968 = vunpack.c.l.b16 %v3826
        %v3969 = vunpack.c.l.b16 %v3827
        %v3970 = vunpack.c.l.b16 %v3828
        %v3971 = vunpack.c.l.b16 %v3829
        %v3972 = vunpack.c.l.b16 %v3830
        %v3973 = vunpack.c.l.b16 %v3831
        %v3974 = vunpack.c.l.b16 %v3832
        %v3975 = vunpack.c.l.b16 %v3833
        %v3976 = vunpack.c.l.b16 %v3834
        %v3977 = vunpack.c.l.b16 %v3835
        %v3978 = vunpack.c.l.b16 %v3836
        %v3979 = vunpack.c.l.b16 %v3837
        %v3980 = vunpack.c.l.b16 %v3838
        %v3981 = vunpack.c.l.b16 %v3839
        %v3982 = vunpack.c.l.b16 %v3840
        %v3983 = vunpack.c.l.b16 %v3841
        %v3984 = vunpack.c.l.b16 %v3842
        %v3985 = vunpack.c.l.b16 %v3843
        %v3986 = vunpack.c.l.b16 %v3844
        %v3987 = vunpack.c.l.b16 %v3845
        %v3988 = vunpack.c.l.b16 %v3846
        %v3989 = vunpack.c.l.b16 %v3847
        %v3990 = vunpack.c.l.b16 %v3848
        %v3991 = vunpack.c.l.b16 %v3849
        %v3992 = vpack.c.b16 %v3929, %v3928
        %v3993 = vpack.c.b16 %v3931, %v3930
        %v3994 = vpack.c.b16 %v3933, %v3932
        %v3995 = vpack.c.b16 %v3935, %v3934
        %v3996 = vpack.c.b16 %v3937, %v3936
        %v3997 = vpack.c.b16 %v3939, %v3938
        %v3998 = vpack.c.b16 %v3941, %v3940
        %v3999 = vpack.c.b16 %v3943, %v3942
        %v4000 = vpack.c.b16 %v3945, %v3944
        %v4001 = vpack.c.b16 %v3947, %v3946
        %v4002 = vpack.c.b16 %v3949, %v3948
        %v4003 = vpack.c.b16 %v3951, %v3950
        %v4004 = vpack.c.b16 %v3953, %v3952
        %v4005 = vpack.c.b16 %v3955, %v3954
        %v4006 = vpack.c.b16 %v3957, %v3956
        %v4007 = vpack.c.b16 %v3959, %v3958
        %v4008 = vpack.c.b16 %v3961, %v3960
        %v4009 = vpack.c.b16 %v3963, %v3962
        %v4010 = vpack.c.b16 %v3965, %v3964
        %v4011 = vpack.c.b16 %v3967, %v3966
        %v4012 = vpack.c.b16 %v3969, %v3968
        %v4013 = vpack.c.b16 %v3971, %v3970
        %v4014 = vpack.c.b16 %v3973, %v3972
        %v4015 = vpack.c.b16 %v3975, %v3974
        %v4016 = vpack.c.b16 %v3977, %v3976
        %v4017 = vpack.c.b16 %v3979, %v3978
        %v4018 = vpack.c.b16 %v3981, %v3980
        %v4019 = vpack.c.b16 %v3983, %v3982
        %v4020 = vpack.c.b16 %v3985, %v3984
        %v4021 = vpack.c.b16 %v3987, %v3986
        %v4022 = vpack.c.b16 %v3989, %v3988
        %v4023 = vpack.c.b16 %v3991, %v3990
        %4056 = vmatpush.bf16.msra.mxu0 %v3999
        %4057 = vmatpush.bf16.msra.mxu0 %v3998
        %4058 = vmatpush.bf16.msra.mxu0 %v3997
        %4059 = vmatpush.bf16.msra.mxu0 %v3996
        %4060 = vmatpush.bf16.msra.mxu0 %v3995
        %4061 = vmatpush.bf16.msra.mxu0 %v3994
        %4062 = vmatpush.bf16.msra.mxu0 %v3993
        %4063 = vmatpush.bf16.msra.mxu0 %v3992
        %4064 = vmatmul.bf16.gmra.mxu0 %v3856
        %v4065 = vpop.f32.mrf.mxu0
        %v4066 = vadd.f32 0.0, %v4065
        %v4067 = vpop.f32.mrf.mxu0
        %4068 = vdwg.mxu0
        %4069 = vmatpush.bf16.msra.mxu0 %v4007
        %4070 = vmatpush.bf16.msra.mxu0 %v4006
        %4071 = vmatpush.bf16.msra.mxu0 %v4005
        %4072 = vmatpush.bf16.msra.mxu0 %v4004
        %4073 = vmatpush.bf16.msra.mxu0 %v4003
        %4074 = vmatpush.bf16.msra.mxu0 %v4002
        %4075 = vmatpush.bf16.msra.mxu0 %v4001
        %4076 = vmatpush.bf16.msra.mxu0 %v4000
        %4077 = vmatmul.bf16.gmra.mxu0 %v3857
        %v4078 = vpop.f32.mrf.mxu0
        %v4079 = vadd.f32 %v4066, %v4078
        %v4080 = vpop.f32.mrf.mxu0
        %4081 = vdwg.mxu0
        %4082 = vmatpush.bf16.msra.mxu0 %v4015
        %4083 = vmatpush.bf16.msra.mxu0 %v4014
        %4084 = vmatpush.bf16.msra.mxu0 %v4013
        %4085 = vmatpush.bf16.msra.mxu0 %v4012
        %4086 = vmatpush.bf16.msra.mxu0 %v4011
        %4087 = vmatpush.bf16.msra.mxu0 %v4010
        %4088 = vmatpush.bf16.msra.mxu0 %v4009
        %4089 = vmatpush.bf16.msra.mxu0 %v4008
        %4090 = vmatmul.bf16.gmra.mxu0 %v3858
        %v4091 = vpop.f32.mrf.mxu0
        %v4092 = vadd.f32 %v4079, %v4091
        %v4093 = vpop.f32.mrf.mxu0
        %4094 = vdwg.mxu0
        %4095 = vmatpush.bf16.msra.mxu0 %v4023
        %4096 = vmatpush.bf16.msra.mxu0 %v4022
        %4097 = vmatpush.bf16.msra.mxu0 %v4021
        %4098 = vmatpush.bf16.msra.mxu0 %v4020
        %4099 = vmatpush.bf16.msra.mxu0 %v4019
        %4100 = vmatpush.bf16.msra.mxu0 %v4018
        %4101 = vmatpush.bf16.msra.mxu0 %v4017
        %4102 = vmatpush.bf16.msra.mxu0 %v4016
        %4103 = vmatmul.bf16.gmra.mxu0 %v3859
        %v4104 = vpop.f32.mrf.mxu0
        %v4105 = vadd.f32 %v4092, %v4104
        %v4106 = vpop.f32.mrf.mxu0
        %4107 = vdwg.mxu0
        %v4108 = vadd.f32 %v3784, %v4105
        %s4109 = scalar_lea.vmem %s4, 1792
        %v4110 = vld [vmem:[%s4109] sm:$0xf]
        %v4111 = vld [vmem:[%s4109 + $0x4] sm:$0xf]
        %v4112 = vld [vmem:[%s4109 + $0x8] sm:$0xf]
        %v4113 = vld [vmem:[%s4109 + $0xc] sm:$0xf]
        %v4114 = vld [vmem:[%s4109 + $0x10] sm:$0xf]
        %v4115 = vld [vmem:[%s4109 + $0x14] sm:$0xf]
        %v4116 = vld [vmem:[%s4109 + $0x18] sm:$0xf]
        %v4117 = vld [vmem:[%s4109 + $0x1c] sm:$0xf]
        %v4118 = vld [vmem:[%s4109 + $0x20] sm:$0xf]
        %v4119 = vld [vmem:[%s4109 + $0x24] sm:$0xf]
        %v4120 = vld [vmem:[%s4109 + $0x28] sm:$0xf]
        %v4121 = vld [vmem:[%s4109 + $0x2c] sm:$0xf]
        %v4122 = vld [vmem:[%s4109 + $0x30] sm:$0xf]
        %v4123 = vld [vmem:[%s4109 + $0x34] sm:$0xf]
        %v4124 = vld [vmem:[%s4109 + $0x38] sm:$0xf]
        %v4125 = vld [vmem:[%s4109 + $0x3c] sm:$0xf]
        %v4126 = vld [vmem:[%s4109 + $0x40] sm:$0xf]
        %v4127 = vld [vmem:[%s4109 + $0x44] sm:$0xf]
        %v4128 = vld [vmem:[%s4109 + $0x48] sm:$0xf]
        %v4129 = vld [vmem:[%s4109 + $0x4c] sm:$0xf]
        %v4130 = vld [vmem:[%s4109 + $0x50] sm:$0xf]
        %v4131 = vld [vmem:[%s4109 + $0x54] sm:$0xf]
        %v4132 = vld [vmem:[%s4109 + $0x58] sm:$0xf]
        %v4133 = vld [vmem:[%s4109 + $0x5c] sm:$0xf]
        %v4134 = vld [vmem:[%s4109 + $0x60] sm:$0xf]
        %v4135 = vld [vmem:[%s4109 + $0x64] sm:$0xf]
        %v4136 = vld [vmem:[%s4109 + $0x68] sm:$0xf]
        %v4137 = vld [vmem:[%s4109 + $0x6c] sm:$0xf]
        %v4138 = vld [vmem:[%s4109 + $0x70] sm:$0xf]
        %v4139 = vld [vmem:[%s4109 + $0x74] sm:$0xf]
        %v4140 = vld [vmem:[%s4109 + $0x78] sm:$0xf]
        %v4141 = vld [vmem:[%s4109 + $0x7c] sm:$0xf]
        %v4142 = vld [vmem:[%s4109 + $0x80] sm:$0xf]
        %v4143 = vld [vmem:[%s4109 + $0x84] sm:$0xf]
        %v4144 = vld [vmem:[%s4109 + $0x88] sm:$0xf]
        %v4145 = vld [vmem:[%s4109 + $0x8c] sm:$0xf]
        %v4146 = vld [vmem:[%s4109 + $0x90] sm:$0xf]
        %v4147 = vld [vmem:[%s4109 + $0x94] sm:$0xf]
        %v4148 = vld [vmem:[%s4109 + $0x98] sm:$0xf]
        %v4149 = vld [vmem:[%s4109 + $0x9c] sm:$0xf]
        %v4150 = vld [vmem:[%s4109 + $0xa0] sm:$0xf]
        %v4151 = vld [vmem:[%s4109 + $0xa4] sm:$0xf]
        %v4152 = vld [vmem:[%s4109 + $0xa8] sm:$0xf]
        %v4153 = vld [vmem:[%s4109 + $0xac] sm:$0xf]
        %v4154 = vld [vmem:[%s4109 + $0xb0] sm:$0xf]
        %v4155 = vld [vmem:[%s4109 + $0xb4] sm:$0xf]
        %v4156 = vld [vmem:[%s4109 + $0xb8] sm:$0xf]
        %v4157 = vld [vmem:[%s4109 + $0xbc] sm:$0xf]
        %v4158 = vld [vmem:[%s4109 + $0xc0] sm:$0xf]
        %v4159 = vld [vmem:[%s4109 + $0xc4] sm:$0xf]
        %v4160 = vld [vmem:[%s4109 + $0xc8] sm:$0xf]
        %v4161 = vld [vmem:[%s4109 + $0xcc] sm:$0xf]
        %v4162 = vld [vmem:[%s4109 + $0xd0] sm:$0xf]
        %v4163 = vld [vmem:[%s4109 + $0xd4] sm:$0xf]
        %v4164 = vld [vmem:[%s4109 + $0xd8] sm:$0xf]
        %v4165 = vld [vmem:[%s4109 + $0xdc] sm:$0xf]
        %v4166 = vld [vmem:[%s4109 + $0xe0] sm:$0xf]
        %v4167 = vld [vmem:[%s4109 + $0xe4] sm:$0xf]
        %v4168 = vld [vmem:[%s4109 + $0xe8] sm:$0xf]
        %v4169 = vld [vmem:[%s4109 + $0xec] sm:$0xf]
        %v4170 = vld [vmem:[%s4109 + $0xf0] sm:$0xf]
        %v4171 = vld [vmem:[%s4109 + $0xf4] sm:$0xf]
        %v4172 = vld [vmem:[%s4109 + $0xf8] sm:$0xf]
        %v4173 = vld [vmem:[%s4109 + $0xfc] sm:$0xf]
        %v4174 = vrot.slane %v3856, 2
        %v4175 = vrot.slane %v3857, 2
        %v4176 = vrot.slane %v3858, 2
        %v4177 = vrot.slane %v3859, 2
        %v4246 = vunpack.c.l.b16 %v4110
        %v4247 = vunpack.c.l.b16 %v4111
        %v4248 = vunpack.c.l.b16 %v4112
        %v4249 = vunpack.c.l.b16 %v4113
        %v4250 = vunpack.c.l.b16 %v4114
        %v4251 = vunpack.c.l.b16 %v4115
        %v4252 = vunpack.c.l.b16 %v4116
        %v4253 = vunpack.c.l.b16 %v4117
        %v4254 = vunpack.c.l.b16 %v4118
        %v4255 = vunpack.c.l.b16 %v4119
        %v4256 = vunpack.c.l.b16 %v4120
        %v4257 = vunpack.c.l.b16 %v4121
        %v4258 = vunpack.c.l.b16 %v4122
        %v4259 = vunpack.c.l.b16 %v4123
        %v4260 = vunpack.c.l.b16 %v4124
        %v4261 = vunpack.c.l.b16 %v4125
        %v4262 = vunpack.c.l.b16 %v4126
        %v4263 = vunpack.c.l.b16 %v4127
        %v4264 = vunpack.c.l.b16 %v4128
        %v4265 = vunpack.c.l.b16 %v4129
        %v4266 = vunpack.c.l.b16 %v4130
        %v4267 = vunpack.c.l.b16 %v4131
        %v4268 = vunpack.c.l.b16 %v4132
        %v4269 = vunpack.c.l.b16 %v4133
        %v4270 = vunpack.c.l.b16 %v4134
        %v4271 = vunpack.c.l.b16 %v4135
        %v4272 = vunpack.c.l.b16 %v4136
        %v4273 = vunpack.c.l.b16 %v4137
        %v4274 = vunpack.c.l.b16 %v4138
        %v4275 = vunpack.c.l.b16 %v4139
        %v4276 = vunpack.c.l.b16 %v4140
        %v4277 = vunpack.c.l.b16 %v4141
        %v4278 = vunpack.c.l.b16 %v4142
        %v4279 = vunpack.c.l.b16 %v4143
        %v4280 = vunpack.c.l.b16 %v4144
        %v4281 = vunpack.c.l.b16 %v4145
        %v4282 = vunpack.c.l.b16 %v4146
        %v4283 = vunpack.c.l.b16 %v4147
        %v4284 = vunpack.c.l.b16 %v4148
        %v4285 = vunpack.c.l.b16 %v4149
        %v4286 = vunpack.c.l.b16 %v4150
        %v4287 = vunpack.c.l.b16 %v4151
        %v4288 = vunpack.c.l.b16 %v4152
        %v4289 = vunpack.c.l.b16 %v4153
        %v4290 = vunpack.c.l.b16 %v4154
        %v4291 = vunpack.c.l.b16 %v4155
        %v4292 = vunpack.c.l.b16 %v4156
        %v4293 = vunpack.c.l.b16 %v4157
        %v4294 = vunpack.c.l.b16 %v4158
        %v4295 = vunpack.c.l.b16 %v4159
        %v4296 = vunpack.c.l.b16 %v4160
        %v4297 = vunpack.c.l.b16 %v4161
        %v4298 = vunpack.c.l.b16 %v4162
        %v4299 = vunpack.c.l.b16 %v4163
        %v4300 = vunpack.c.l.b16 %v4164
        %v4301 = vunpack.c.l.b16 %v4165
        %v4302 = vunpack.c.l.b16 %v4166
        %v4303 = vunpack.c.l.b16 %v4167
        %v4304 = vunpack.c.l.b16 %v4168
        %v4305 = vunpack.c.l.b16 %v4169
        %v4306 = vunpack.c.l.b16 %v4170
        %v4307 = vunpack.c.l.b16 %v4171
        %v4308 = vunpack.c.l.b16 %v4172
        %v4309 = vunpack.c.l.b16 %v4173
        %v4310 = vpack.c.b16 %v4247, %v4246
        %v4311 = vpack.c.b16 %v4249, %v4248
        %v4312 = vpack.c.b16 %v4251, %v4250
        %v4313 = vpack.c.b16 %v4253, %v4252
        %v4314 = vpack.c.b16 %v4255, %v4254
        %v4315 = vpack.c.b16 %v4257, %v4256
        %v4316 = vpack.c.b16 %v4259, %v4258
        %v4317 = vpack.c.b16 %v4261, %v4260
        %v4318 = vpack.c.b16 %v4263, %v4262
        %v4319 = vpack.c.b16 %v4265, %v4264
        %v4320 = vpack.c.b16 %v4267, %v4266
        %v4321 = vpack.c.b16 %v4269, %v4268
        %v4322 = vpack.c.b16 %v4271, %v4270
        %v4323 = vpack.c.b16 %v4273, %v4272
        %v4324 = vpack.c.b16 %v4275, %v4274
        %v4325 = vpack.c.b16 %v4277, %v4276
        %v4326 = vpack.c.b16 %v4279, %v4278
        %v4327 = vpack.c.b16 %v4281, %v4280
        %v4328 = vpack.c.b16 %v4283, %v4282
        %v4329 = vpack.c.b16 %v4285, %v4284
        %v4330 = vpack.c.b16 %v4287, %v4286
        %v4331 = vpack.c.b16 %v4289, %v4288
        %v4332 = vpack.c.b16 %v4291, %v4290
        %v4333 = vpack.c.b16 %v4293, %v4292
        %v4334 = vpack.c.b16 %v4295, %v4294
        %v4335 = vpack.c.b16 %v4297, %v4296
        %v4336 = vpack.c.b16 %v4299, %v4298
        %v4337 = vpack.c.b16 %v4301, %v4300
        %v4338 = vpack.c.b16 %v4303, %v4302
        %v4339 = vpack.c.b16 %v4305, %v4304
        %v4340 = vpack.c.b16 %v4307, %v4306
        %v4341 = vpack.c.b16 %v4309, %v4308
        %4374 = vmatpush.bf16.msra.mxu0 %v4317
        %4375 = vmatpush.bf16.msra.mxu0 %v4316
        %4376 = vmatpush.bf16.msra.mxu0 %v4315
        %4377 = vmatpush.bf16.msra.mxu0 %v4314
        %4378 = vmatpush.bf16.msra.mxu0 %v4313
        %4379 = vmatpush.bf16.msra.mxu0 %v4312
        %4380 = vmatpush.bf16.msra.mxu0 %v4311
        %4381 = vmatpush.bf16.msra.mxu0 %v4310
        %4382 = vmatmul.bf16.gmra.mxu0 %v4174
        %v4383 = vpop.f32.mrf.mxu0
        %v4384 = vadd.f32 0.0, %v4383
        %v4385 = vpop.f32.mrf.mxu0
        %4386 = vdwg.mxu0
        %4387 = vmatpush.bf16.msra.mxu0 %v4325
        %4388 = vmatpush.bf16.msra.mxu0 %v4324
        %4389 = vmatpush.bf16.msra.mxu0 %v4323
        %4390 = vmatpush.bf16.msra.mxu0 %v4322
        %4391 = vmatpush.bf16.msra.mxu0 %v4321
        %4392 = vmatpush.bf16.msra.mxu0 %v4320
        %4393 = vmatpush.bf16.msra.mxu0 %v4319
        %4394 = vmatpush.bf16.msra.mxu0 %v4318
        %4395 = vmatmul.bf16.gmra.mxu0 %v4175
        %v4396 = vpop.f32.mrf.mxu0
        %v4397 = vadd.f32 %v4384, %v4396
        %v4398 = vpop.f32.mrf.mxu0
        %4399 = vdwg.mxu0
        %4400 = vmatpush.bf16.msra.mxu0 %v4333
        %4401 = vmatpush.bf16.msra.mxu0 %v4332
        %4402 = vmatpush.bf16.msra.mxu0 %v4331
        %4403 = vmatpush.bf16.msra.mxu0 %v4330
        %4404 = vmatpush.bf16.msra.mxu0 %v4329
        %4405 = vmatpush.bf16.msra.mxu0 %v4328
        %4406 = vmatpush.bf16.msra.mxu0 %v4327
        %4407 = vmatpush.bf16.msra.mxu0 %v4326
        %4408 = vmatmul.bf16.gmra.mxu0 %v4176
        %v4409 = vpop.f32.mrf.mxu0
        %v4410 = vadd.f32 %v4397, %v4409
        %v4411 = vpop.f32.mrf.mxu0
        %4412 = vdwg.mxu0
        %4413 = vmatpush.bf16.msra.mxu0 %v4341
        %4414 = vmatpush.bf16.msra.mxu0 %v4340
        %4415 = vmatpush.bf16.msra.mxu0 %v4339
        %4416 = vmatpush.bf16.msra.mxu0 %v4338
        %4417 = vmatpush.bf16.msra.mxu0 %v4337
        %4418 = vmatpush.bf16.msra.mxu0 %v4336
        %4419 = vmatpush.bf16.msra.mxu0 %v4335
        %4420 = vmatpush.bf16.msra.mxu0 %v4334
        %4421 = vmatmul.bf16.gmra.mxu0 %v4177
        %v4422 = vpop.f32.mrf.mxu0
        %v4423 = vadd.f32 %v4410, %v4422
        %v4424 = vpop.f32.mrf.mxu0
        %4425 = vdwg.mxu0
        %v4426 = vadd.f32 %v4108, %v4423
        %s4427 = scalar_lea.vmem %s4, 2048
        %v4428 = vld [vmem:[%s4427] sm:$0xf]
        %v4429 = vld [vmem:[%s4427 + $0x4] sm:$0xf]
        %v4430 = vld [vmem:[%s4427 + $0x8] sm:$0xf]
        %v4431 = vld [vmem:[%s4427 + $0xc] sm:$0xf]
        %v4432 = vld [vmem:[%s4427 + $0x10] sm:$0xf]
        %v4433 = vld [vmem:[%s4427 + $0x14] sm:$0xf]
        %v4434 = vld [vmem:[%s4427 + $0x18] sm:$0xf]
        %v4435 = vld [vmem:[%s4427 + $0x1c] sm:$0xf]
        %v4436 = vld [vmem:[%s4427 + $0x20] sm:$0xf]
        %v4437 = vld [vmem:[%s4427 + $0x24] sm:$0xf]
        %v4438 = vld [vmem:[%s4427 + $0x28] sm:$0xf]
        %v4439 = vld [vmem:[%s4427 + $0x2c] sm:$0xf]
        %v4440 = vld [vmem:[%s4427 + $0x30] sm:$0xf]
        %v4441 = vld [vmem:[%s4427 + $0x34] sm:$0xf]
        %v4442 = vld [vmem:[%s4427 + $0x38] sm:$0xf]
        %v4443 = vld [vmem:[%s4427 + $0x3c] sm:$0xf]
        %v4444 = vld [vmem:[%s4427 + $0x40] sm:$0xf]
        %v4445 = vld [vmem:[%s4427 + $0x44] sm:$0xf]
        %v4446 = vld [vmem:[%s4427 + $0x48] sm:$0xf]
        %v4447 = vld [vmem:[%s4427 + $0x4c] sm:$0xf]
        %v4448 = vld [vmem:[%s4427 + $0x50] sm:$0xf]
        %v4449 = vld [vmem:[%s4427 + $0x54] sm:$0xf]
        %v4450 = vld [vmem:[%s4427 + $0x58] sm:$0xf]
        %v4451 = vld [vmem:[%s4427 + $0x5c] sm:$0xf]
        %v4452 = vld [vmem:[%s4427 + $0x60] sm:$0xf]
        %v4453 = vld [vmem:[%s4427 + $0x64] sm:$0xf]
        %v4454 = vld [vmem:[%s4427 + $0x68] sm:$0xf]
        %v4455 = vld [vmem:[%s4427 + $0x6c] sm:$0xf]
        %v4456 = vld [vmem:[%s4427 + $0x70] sm:$0xf]
        %v4457 = vld [vmem:[%s4427 + $0x74] sm:$0xf]
        %v4458 = vld [vmem:[%s4427 + $0x78] sm:$0xf]
        %v4459 = vld [vmem:[%s4427 + $0x7c] sm:$0xf]
        %v4460 = vld [vmem:[%s4427 + $0x80] sm:$0xf]
        %v4461 = vld [vmem:[%s4427 + $0x84] sm:$0xf]
        %v4462 = vld [vmem:[%s4427 + $0x88] sm:$0xf]
        %v4463 = vld [vmem:[%s4427 + $0x8c] sm:$0xf]
        %v4464 = vld [vmem:[%s4427 + $0x90] sm:$0xf]
        %v4465 = vld [vmem:[%s4427 + $0x94] sm:$0xf]
        %v4466 = vld [vmem:[%s4427 + $0x98] sm:$0xf]
        %v4467 = vld [vmem:[%s4427 + $0x9c] sm:$0xf]
        %v4468 = vld [vmem:[%s4427 + $0xa0] sm:$0xf]
        %v4469 = vld [vmem:[%s4427 + $0xa4] sm:$0xf]
        %v4470 = vld [vmem:[%s4427 + $0xa8] sm:$0xf]
        %v4471 = vld [vmem:[%s4427 + $0xac] sm:$0xf]
        %v4472 = vld [vmem:[%s4427 + $0xb0] sm:$0xf]
        %v4473 = vld [vmem:[%s4427 + $0xb4] sm:$0xf]
        %v4474 = vld [vmem:[%s4427 + $0xb8] sm:$0xf]
        %v4475 = vld [vmem:[%s4427 + $0xbc] sm:$0xf]
        %v4476 = vld [vmem:[%s4427 + $0xc0] sm:$0xf]
        %v4477 = vld [vmem:[%s4427 + $0xc4] sm:$0xf]
        %v4478 = vld [vmem:[%s4427 + $0xc8] sm:$0xf]
        %v4479 = vld [vmem:[%s4427 + $0xcc] sm:$0xf]
        %v4480 = vld [vmem:[%s4427 + $0xd0] sm:$0xf]
        %v4481 = vld [vmem:[%s4427 + $0xd4] sm:$0xf]
        %v4482 = vld [vmem:[%s4427 + $0xd8] sm:$0xf]
        %v4483 = vld [vmem:[%s4427 + $0xdc] sm:$0xf]
        %v4484 = vld [vmem:[%s4427 + $0xe0] sm:$0xf]
        %v4485 = vld [vmem:[%s4427 + $0xe4] sm:$0xf]
        %v4486 = vld [vmem:[%s4427 + $0xe8] sm:$0xf]
        %v4487 = vld [vmem:[%s4427 + $0xec] sm:$0xf]
        %v4488 = vld [vmem:[%s4427 + $0xf0] sm:$0xf]
        %v4489 = vld [vmem:[%s4427 + $0xf4] sm:$0xf]
        %v4490 = vld [vmem:[%s4427 + $0xf8] sm:$0xf]
        %v4491 = vld [vmem:[%s4427 + $0xfc] sm:$0xf]
        %v4494 = vunpack.c.l.b16 %v1854
        %v4495 = vunpack.c.h.b16 %v1854
        %v4496 = vunpack.c.l.b16 %v1855
        %v4497 = vunpack.c.h.b16 %v1855
        %v4498 = vpack.c.b16 %v4494, %v4494
        %v4499 = vpack.c.b16 %v4495, %v4495
        %v4500 = vpack.c.b16 %v4496, %v4496
        %v4501 = vpack.c.b16 %v4497, %v4497
        %v4570 = vunpack.c.l.b16 %v4428
        %v4571 = vunpack.c.l.b16 %v4429
        %v4572 = vunpack.c.l.b16 %v4430
        %v4573 = vunpack.c.l.b16 %v4431
        %v4574 = vunpack.c.l.b16 %v4432
        %v4575 = vunpack.c.l.b16 %v4433
        %v4576 = vunpack.c.l.b16 %v4434
        %v4577 = vunpack.c.l.b16 %v4435
        %v4578 = vunpack.c.l.b16 %v4436
        %v4579 = vunpack.c.l.b16 %v4437
        %v4580 = vunpack.c.l.b16 %v4438
        %v4581 = vunpack.c.l.b16 %v4439
        %v4582 = vunpack.c.l.b16 %v4440
        %v4583 = vunpack.c.l.b16 %v4441
        %v4584 = vunpack.c.l.b16 %v4442
        %v4585 = vunpack.c.l.b16 %v4443
        %v4586 = vunpack.c.l.b16 %v4444
        %v4587 = vunpack.c.l.b16 %v4445
        %v4588 = vunpack.c.l.b16 %v4446
        %v4589 = vunpack.c.l.b16 %v4447
        %v4590 = vunpack.c.l.b16 %v4448
        %v4591 = vunpack.c.l.b16 %v4449
        %v4592 = vunpack.c.l.b16 %v4450
        %v4593 = vunpack.c.l.b16 %v4451
        %v4594 = vunpack.c.l.b16 %v4452
        %v4595 = vunpack.c.l.b16 %v4453
        %v4596 = vunpack.c.l.b16 %v4454
        %v4597 = vunpack.c.l.b16 %v4455
        %v4598 = vunpack.c.l.b16 %v4456
        %v4599 = vunpack.c.l.b16 %v4457
        %v4600 = vunpack.c.l.b16 %v4458
        %v4601 = vunpack.c.l.b16 %v4459
        %v4602 = vunpack.c.l.b16 %v4460
        %v4603 = vunpack.c.l.b16 %v4461
        %v4604 = vunpack.c.l.b16 %v4462
        %v4605 = vunpack.c.l.b16 %v4463
        %v4606 = vunpack.c.l.b16 %v4464
        %v4607 = vunpack.c.l.b16 %v4465
        %v4608 = vunpack.c.l.b16 %v4466
        %v4609 = vunpack.c.l.b16 %v4467
        %v4610 = vunpack.c.l.b16 %v4468
        %v4611 = vunpack.c.l.b16 %v4469
        %v4612 = vunpack.c.l.b16 %v4470
        %v4613 = vunpack.c.l.b16 %v4471
        %v4614 = vunpack.c.l.b16 %v4472
        %v4615 = vunpack.c.l.b16 %v4473
        %v4616 = vunpack.c.l.b16 %v4474
        %v4617 = vunpack.c.l.b16 %v4475
        %v4618 = vunpack.c.l.b16 %v4476
        %v4619 = vunpack.c.l.b16 %v4477
        %v4620 = vunpack.c.l.b16 %v4478
        %v4621 = vunpack.c.l.b16 %v4479
        %v4622 = vunpack.c.l.b16 %v4480
        %v4623 = vunpack.c.l.b16 %v4481
        %v4624 = vunpack.c.l.b16 %v4482
        %v4625 = vunpack.c.l.b16 %v4483
        %v4626 = vunpack.c.l.b16 %v4484
        %v4627 = vunpack.c.l.b16 %v4485
        %v4628 = vunpack.c.l.b16 %v4486
        %v4629 = vunpack.c.l.b16 %v4487
        %v4630 = vunpack.c.l.b16 %v4488
        %v4631 = vunpack.c.l.b16 %v4489
        %v4632 = vunpack.c.l.b16 %v4490
        %v4633 = vunpack.c.l.b16 %v4491
        %v4634 = vpack.c.b16 %v4571, %v4570
        %v4635 = vpack.c.b16 %v4573, %v4572
        %v4636 = vpack.c.b16 %v4575, %v4574
        %v4637 = vpack.c.b16 %v4577, %v4576
        %v4638 = vpack.c.b16 %v4579, %v4578
        %v4639 = vpack.c.b16 %v4581, %v4580
        %v4640 = vpack.c.b16 %v4583, %v4582
        %v4641 = vpack.c.b16 %v4585, %v4584
        %v4642 = vpack.c.b16 %v4587, %v4586
        %v4643 = vpack.c.b16 %v4589, %v4588
        %v4644 = vpack.c.b16 %v4591, %v4590
        %v4645 = vpack.c.b16 %v4593, %v4592
        %v4646 = vpack.c.b16 %v4595, %v4594
        %v4647 = vpack.c.b16 %v4597, %v4596
        %v4648 = vpack.c.b16 %v4599, %v4598
        %v4649 = vpack.c.b16 %v4601, %v4600
        %v4650 = vpack.c.b16 %v4603, %v4602
        %v4651 = vpack.c.b16 %v4605, %v4604
        %v4652 = vpack.c.b16 %v4607, %v4606
        %v4653 = vpack.c.b16 %v4609, %v4608
        %v4654 = vpack.c.b16 %v4611, %v4610
        %v4655 = vpack.c.b16 %v4613, %v4612
        %v4656 = vpack.c.b16 %v4615, %v4614
        %v4657 = vpack.c.b16 %v4617, %v4616
        %v4658 = vpack.c.b16 %v4619, %v4618
        %v4659 = vpack.c.b16 %v4621, %v4620
        %v4660 = vpack.c.b16 %v4623, %v4622
        %v4661 = vpack.c.b16 %v4625, %v4624
        %v4662 = vpack.c.b16 %v4627, %v4626
        %v4663 = vpack.c.b16 %v4629, %v4628
        %v4664 = vpack.c.b16 %v4631, %v4630
        %v4665 = vpack.c.b16 %v4633, %v4632
        %4698 = vmatpush.bf16.msra.mxu0 %v4641
        %4699 = vmatpush.bf16.msra.mxu0 %v4640
        %4700 = vmatpush.bf16.msra.mxu0 %v4639
        %4701 = vmatpush.bf16.msra.mxu0 %v4638
        %4702 = vmatpush.bf16.msra.mxu0 %v4637
        %4703 = vmatpush.bf16.msra.mxu0 %v4636
        %4704 = vmatpush.bf16.msra.mxu0 %v4635
        %4705 = vmatpush.bf16.msra.mxu0 %v4634
        %4706 = vmatmul.bf16.gmra.mxu0 %v4498
        %v4707 = vpop.f32.mrf.mxu0
        %v4708 = vadd.f32 0.0, %v4707
        %v4709 = vpop.f32.mrf.mxu0
        %4710 = vdwg.mxu0
        %4711 = vmatpush.bf16.msra.mxu0 %v4649
        %4712 = vmatpush.bf16.msra.mxu0 %v4648
        %4713 = vmatpush.bf16.msra.mxu0 %v4647
        %4714 = vmatpush.bf16.msra.mxu0 %v4646
        %4715 = vmatpush.bf16.msra.mxu0 %v4645
        %4716 = vmatpush.bf16.msra.mxu0 %v4644
        %4717 = vmatpush.bf16.msra.mxu0 %v4643
        %4718 = vmatpush.bf16.msra.mxu0 %v4642
        %4719 = vmatmul.bf16.gmra.mxu0 %v4499
        %v4720 = vpop.f32.mrf.mxu0
        %v4721 = vadd.f32 %v4708, %v4720
        %v4722 = vpop.f32.mrf.mxu0
        %4723 = vdwg.mxu0
        %4724 = vmatpush.bf16.msra.mxu0 %v4657
        %4725 = vmatpush.bf16.msra.mxu0 %v4656
        %4726 = vmatpush.bf16.msra.mxu0 %v4655
        %4727 = vmatpush.bf16.msra.mxu0 %v4654
        %4728 = vmatpush.bf16.msra.mxu0 %v4653
        %4729 = vmatpush.bf16.msra.mxu0 %v4652
        %4730 = vmatpush.bf16.msra.mxu0 %v4651
        %4731 = vmatpush.bf16.msra.mxu0 %v4650
        %4732 = vmatmul.bf16.gmra.mxu0 %v4500
        %v4733 = vpop.f32.mrf.mxu0
        %v4734 = vadd.f32 %v4721, %v4733
        %v4735 = vpop.f32.mrf.mxu0
        %4736 = vdwg.mxu0
        %4737 = vmatpush.bf16.msra.mxu0 %v4665
        %4738 = vmatpush.bf16.msra.mxu0 %v4664
        %4739 = vmatpush.bf16.msra.mxu0 %v4663
        %4740 = vmatpush.bf16.msra.mxu0 %v4662
        %4741 = vmatpush.bf16.msra.mxu0 %v4661
        %4742 = vmatpush.bf16.msra.mxu0 %v4660
        %4743 = vmatpush.bf16.msra.mxu0 %v4659
        %4744 = vmatpush.bf16.msra.mxu0 %v4658
        %4745 = vmatmul.bf16.gmra.mxu0 %v4501
        %v4746 = vpop.f32.mrf.mxu0
        %v4747 = vadd.f32 %v4734, %v4746
        %v4748 = vpop.f32.mrf.mxu0
        %4749 = vdwg.mxu0
        %v4750 = vadd.f32 %v4426, %v4747
        %s4751 = scalar_lea.vmem %s4, 2304
        %v4752 = vld [vmem:[%s4751] sm:$0xf]
        %v4753 = vld [vmem:[%s4751 + $0x4] sm:$0xf]
        %v4754 = vld [vmem:[%s4751 + $0x8] sm:$0xf]
        %v4755 = vld [vmem:[%s4751 + $0xc] sm:$0xf]
        %v4756 = vld [vmem:[%s4751 + $0x10] sm:$0xf]
        %v4757 = vld [vmem:[%s4751 + $0x14] sm:$0xf]
        %v4758 = vld [vmem:[%s4751 + $0x18] sm:$0xf]
        %v4759 = vld [vmem:[%s4751 + $0x1c] sm:$0xf]
        %v4760 = vld [vmem:[%s4751 + $0x20] sm:$0xf]
        %v4761 = vld [vmem:[%s4751 + $0x24] sm:$0xf]
        %v4762 = vld [vmem:[%s4751 + $0x28] sm:$0xf]
        %v4763 = vld [vmem:[%s4751 + $0x2c] sm:$0xf]
        %v4764 = vld [vmem:[%s4751 + $0x30] sm:$0xf]
        %v4765 = vld [vmem:[%s4751 + $0x34] sm:$0xf]
        %v4766 = vld [vmem:[%s4751 + $0x38] sm:$0xf]
        %v4767 = vld [vmem:[%s4751 + $0x3c] sm:$0xf]
        %v4768 = vld [vmem:[%s4751 + $0x40] sm:$0xf]
        %v4769 = vld [vmem:[%s4751 + $0x44] sm:$0xf]
        %v4770 = vld [vmem:[%s4751 + $0x48] sm:$0xf]
        %v4771 = vld [vmem:[%s4751 + $0x4c] sm:$0xf]
        %v4772 = vld [vmem:[%s4751 + $0x50] sm:$0xf]
        %v4773 = vld [vmem:[%s4751 + $0x54] sm:$0xf]
        %v4774 = vld [vmem:[%s4751 + $0x58] sm:$0xf]
        %v4775 = vld [vmem:[%s4751 + $0x5c] sm:$0xf]
        %v4776 = vld [vmem:[%s4751 + $0x60] sm:$0xf]
        %v4777 = vld [vmem:[%s4751 + $0x64] sm:$0xf]
        %v4778 = vld [vmem:[%s4751 + $0x68] sm:$0xf]
        %v4779 = vld [vmem:[%s4751 + $0x6c] sm:$0xf]
        %v4780 = vld [vmem:[%s4751 + $0x70] sm:$0xf]
        %v4781 = vld [vmem:[%s4751 + $0x74] sm:$0xf]
        %v4782 = vld [vmem:[%s4751 + $0x78] sm:$0xf]
        %v4783 = vld [vmem:[%s4751 + $0x7c] sm:$0xf]
        %v4784 = vld [vmem:[%s4751 + $0x80] sm:$0xf]
        %v4785 = vld [vmem:[%s4751 + $0x84] sm:$0xf]
        %v4786 = vld [vmem:[%s4751 + $0x88] sm:$0xf]
        %v4787 = vld [vmem:[%s4751 + $0x8c] sm:$0xf]
        %v4788 = vld [vmem:[%s4751 + $0x90] sm:$0xf]
        %v4789 = vld [vmem:[%s4751 + $0x94] sm:$0xf]
        %v4790 = vld [vmem:[%s4751 + $0x98] sm:$0xf]
        %v4791 = vld [vmem:[%s4751 + $0x9c] sm:$0xf]
        %v4792 = vld [vmem:[%s4751 + $0xa0] sm:$0xf]
        %v4793 = vld [vmem:[%s4751 + $0xa4] sm:$0xf]
        %v4794 = vld [vmem:[%s4751 + $0xa8] sm:$0xf]
        %v4795 = vld [vmem:[%s4751 + $0xac] sm:$0xf]
        %v4796 = vld [vmem:[%s4751 + $0xb0] sm:$0xf]
        %v4797 = vld [vmem:[%s4751 + $0xb4] sm:$0xf]
        %v4798 = vld [vmem:[%s4751 + $0xb8] sm:$0xf]
        %v4799 = vld [vmem:[%s4751 + $0xbc] sm:$0xf]
        %v4800 = vld [vmem:[%s4751 + $0xc0] sm:$0xf]
        %v4801 = vld [vmem:[%s4751 + $0xc4] sm:$0xf]
        %v4802 = vld [vmem:[%s4751 + $0xc8] sm:$0xf]
        %v4803 = vld [vmem:[%s4751 + $0xcc] sm:$0xf]
        %v4804 = vld [vmem:[%s4751 + $0xd0] sm:$0xf]
        %v4805 = vld [vmem:[%s4751 + $0xd4] sm:$0xf]
        %v4806 = vld [vmem:[%s4751 + $0xd8] sm:$0xf]
        %v4807 = vld [vmem:[%s4751 + $0xdc] sm:$0xf]
        %v4808 = vld [vmem:[%s4751 + $0xe0] sm:$0xf]
        %v4809 = vld [vmem:[%s4751 + $0xe4] sm:$0xf]
        %v4810 = vld [vmem:[%s4751 + $0xe8] sm:$0xf]
        %v4811 = vld [vmem:[%s4751 + $0xec] sm:$0xf]
        %v4812 = vld [vmem:[%s4751 + $0xf0] sm:$0xf]
        %v4813 = vld [vmem:[%s4751 + $0xf4] sm:$0xf]
        %v4814 = vld [vmem:[%s4751 + $0xf8] sm:$0xf]
        %v4815 = vld [vmem:[%s4751 + $0xfc] sm:$0xf]
        %v4816 = vrot.slane %v4498, 2
        %v4817 = vrot.slane %v4499, 2
        %v4818 = vrot.slane %v4500, 2
        %v4819 = vrot.slane %v4501, 2
        %v4888 = vunpack.c.l.b16 %v4752
        %v4889 = vunpack.c.l.b16 %v4753
        %v4890 = vunpack.c.l.b16 %v4754
        %v4891 = vunpack.c.l.b16 %v4755
        %v4892 = vunpack.c.l.b16 %v4756
        %v4893 = vunpack.c.l.b16 %v4757
        %v4894 = vunpack.c.l.b16 %v4758
        %v4895 = vunpack.c.l.b16 %v4759
        %v4896 = vunpack.c.l.b16 %v4760
        %v4897 = vunpack.c.l.b16 %v4761
        %v4898 = vunpack.c.l.b16 %v4762
        %v4899 = vunpack.c.l.b16 %v4763
        %v4900 = vunpack.c.l.b16 %v4764
        %v4901 = vunpack.c.l.b16 %v4765
        %v4902 = vunpack.c.l.b16 %v4766
        %v4903 = vunpack.c.l.b16 %v4767
        %v4904 = vunpack.c.l.b16 %v4768
        %v4905 = vunpack.c.l.b16 %v4769
        %v4906 = vunpack.c.l.b16 %v4770
        %v4907 = vunpack.c.l.b16 %v4771
        %v4908 = vunpack.c.l.b16 %v4772
        %v4909 = vunpack.c.l.b16 %v4773
        %v4910 = vunpack.c.l.b16 %v4774
        %v4911 = vunpack.c.l.b16 %v4775
        %v4912 = vunpack.c.l.b16 %v4776
        %v4913 = vunpack.c.l.b16 %v4777
        %v4914 = vunpack.c.l.b16 %v4778
        %v4915 = vunpack.c.l.b16 %v4779
        %v4916 = vunpack.c.l.b16 %v4780
        %v4917 = vunpack.c.l.b16 %v4781
        %v4918 = vunpack.c.l.b16 %v4782
        %v4919 = vunpack.c.l.b16 %v4783
        %v4920 = vunpack.c.l.b16 %v4784
        %v4921 = vunpack.c.l.b16 %v4785
        %v4922 = vunpack.c.l.b16 %v4786
        %v4923 = vunpack.c.l.b16 %v4787
        %v4924 = vunpack.c.l.b16 %v4788
        %v4925 = vunpack.c.l.b16 %v4789
        %v4926 = vunpack.c.l.b16 %v4790
        %v4927 = vunpack.c.l.b16 %v4791
        %v4928 = vunpack.c.l.b16 %v4792
        %v4929 = vunpack.c.l.b16 %v4793
        %v4930 = vunpack.c.l.b16 %v4794
        %v4931 = vunpack.c.l.b16 %v4795
        %v4932 = vunpack.c.l.b16 %v4796
        %v4933 = vunpack.c.l.b16 %v4797
        %v4934 = vunpack.c.l.b16 %v4798
        %v4935 = vunpack.c.l.b16 %v4799
        %v4936 = vunpack.c.l.b16 %v4800
        %v4937 = vunpack.c.l.b16 %v4801
        %v4938 = vunpack.c.l.b16 %v4802
        %v4939 = vunpack.c.l.b16 %v4803
        %v4940 = vunpack.c.l.b16 %v4804
        %v4941 = vunpack.c.l.b16 %v4805
        %v4942 = vunpack.c.l.b16 %v4806
        %v4943 = vunpack.c.l.b16 %v4807
        %v4944 = vunpack.c.l.b16 %v4808
        %v4945 = vunpack.c.l.b16 %v4809
        %v4946 = vunpack.c.l.b16 %v4810
        %v4947 = vunpack.c.l.b16 %v4811
        %v4948 = vunpack.c.l.b16 %v4812
        %v4949 = vunpack.c.l.b16 %v4813
        %v4950 = vunpack.c.l.b16 %v4814
        %v4951 = vunpack.c.l.b16 %v4815
        %v4952 = vpack.c.b16 %v4889, %v4888
        %v4953 = vpack.c.b16 %v4891, %v4890
        %v4954 = vpack.c.b16 %v4893, %v4892
        %v4955 = vpack.c.b16 %v4895, %v4894
        %v4956 = vpack.c.b16 %v4897, %v4896
        %v4957 = vpack.c.b16 %v4899, %v4898
        %v4958 = vpack.c.b16 %v4901, %v4900
        %v4959 = vpack.c.b16 %v4903, %v4902
        %v4960 = vpack.c.b16 %v4905, %v4904
        %v4961 = vpack.c.b16 %v4907, %v4906
        %v4962 = vpack.c.b16 %v4909, %v4908
        %v4963 = vpack.c.b16 %v4911, %v4910
        %v4964 = vpack.c.b16 %v4913, %v4912
        %v4965 = vpack.c.b16 %v4915, %v4914
        %v4966 = vpack.c.b16 %v4917, %v4916
        %v4967 = vpack.c.b16 %v4919, %v4918
        %v4968 = vpack.c.b16 %v4921, %v4920
        %v4969 = vpack.c.b16 %v4923, %v4922
        %v4970 = vpack.c.b16 %v4925, %v4924
        %v4971 = vpack.c.b16 %v4927, %v4926
        %v4972 = vpack.c.b16 %v4929, %v4928
        %v4973 = vpack.c.b16 %v4931, %v4930
        %v4974 = vpack.c.b16 %v4933, %v4932
        %v4975 = vpack.c.b16 %v4935, %v4934
        %v4976 = vpack.c.b16 %v4937, %v4936
        %v4977 = vpack.c.b16 %v4939, %v4938
        %v4978 = vpack.c.b16 %v4941, %v4940
        %v4979 = vpack.c.b16 %v4943, %v4942
        %v4980 = vpack.c.b16 %v4945, %v4944
        %v4981 = vpack.c.b16 %v4947, %v4946
        %v4982 = vpack.c.b16 %v4949, %v4948
        %v4983 = vpack.c.b16 %v4951, %v4950
        %5016 = vmatpush.bf16.msra.mxu0 %v4959
        %5017 = vmatpush.bf16.msra.mxu0 %v4958
        %5018 = vmatpush.bf16.msra.mxu0 %v4957
        %5019 = vmatpush.bf16.msra.mxu0 %v4956
        %5020 = vmatpush.bf16.msra.mxu0 %v4955
        %5021 = vmatpush.bf16.msra.mxu0 %v4954
        %5022 = vmatpush.bf16.msra.mxu0 %v4953
        %5023 = vmatpush.bf16.msra.mxu0 %v4952
        %5024 = vmatmul.bf16.gmra.mxu0 %v4816
        %v5025 = vpop.f32.mrf.mxu0
        %v5026 = vadd.f32 0.0, %v5025
        %v5027 = vpop.f32.mrf.mxu0
        %5028 = vdwg.mxu0
        %5029 = vmatpush.bf16.msra.mxu0 %v4967
        %5030 = vmatpush.bf16.msra.mxu0 %v4966
        %5031 = vmatpush.bf16.msra.mxu0 %v4965
        %5032 = vmatpush.bf16.msra.mxu0 %v4964
        %5033 = vmatpush.bf16.msra.mxu0 %v4963
        %5034 = vmatpush.bf16.msra.mxu0 %v4962
        %5035 = vmatpush.bf16.msra.mxu0 %v4961
        %5036 = vmatpush.bf16.msra.mxu0 %v4960
        %5037 = vmatmul.bf16.gmra.mxu0 %v4817
        %v5038 = vpop.f32.mrf.mxu0
        %v5039 = vadd.f32 %v5026, %v5038
        %v5040 = vpop.f32.mrf.mxu0
        %5041 = vdwg.mxu0
        %5042 = vmatpush.bf16.msra.mxu0 %v4975
        %5043 = vmatpush.bf16.msra.mxu0 %v4974
        %5044 = vmatpush.bf16.msra.mxu0 %v4973
        %5045 = vmatpush.bf16.msra.mxu0 %v4972
        %5046 = vmatpush.bf16.msra.mxu0 %v4971
        %5047 = vmatpush.bf16.msra.mxu0 %v4970
        %5048 = vmatpush.bf16.msra.mxu0 %v4969
        %5049 = vmatpush.bf16.msra.mxu0 %v4968
        %5050 = vmatmul.bf16.gmra.mxu0 %v4818
        %v5051 = vpop.f32.mrf.mxu0
        %v5052 = vadd.f32 %v5039, %v5051
        %v5053 = vpop.f32.mrf.mxu0
        %5054 = vdwg.mxu0
        %5055 = vmatpush.bf16.msra.mxu0 %v4983
        %5056 = vmatpush.bf16.msra.mxu0 %v4982
        %5057 = vmatpush.bf16.msra.mxu0 %v4981
        %5058 = vmatpush.bf16.msra.mxu0 %v4980
        %5059 = vmatpush.bf16.msra.mxu0 %v4979
        %5060 = vmatpush.bf16.msra.mxu0 %v4978
        %5061 = vmatpush.bf16.msra.mxu0 %v4977
        %5062 = vmatpush.bf16.msra.mxu0 %v4976
        %5063 = vmatmul.bf16.gmra.mxu0 %v4819
        %v5064 = vpop.f32.mrf.mxu0
        %v5065 = vadd.f32 %v5052, %v5064
        %v5066 = vpop.f32.mrf.mxu0
        %5067 = vdwg.mxu0
        %v5068 = vadd.f32 %v4750, %v5065
        %s5069 = scalar_lea.vmem %s4, 2560
        %v5070 = vld [vmem:[%s5069] sm:$0xf]
        %v5071 = vld [vmem:[%s5069 + $0x4] sm:$0xf]
        %v5072 = vld [vmem:[%s5069 + $0x8] sm:$0xf]
        %v5073 = vld [vmem:[%s5069 + $0xc] sm:$0xf]
        %v5074 = vld [vmem:[%s5069 + $0x10] sm:$0xf]
        %v5075 = vld [vmem:[%s5069 + $0x14] sm:$0xf]
        %v5076 = vld [vmem:[%s5069 + $0x18] sm:$0xf]
        %v5077 = vld [vmem:[%s5069 + $0x1c] sm:$0xf]
        %v5078 = vld [vmem:[%s5069 + $0x20] sm:$0xf]
        %v5079 = vld [vmem:[%s5069 + $0x24] sm:$0xf]
        %v5080 = vld [vmem:[%s5069 + $0x28] sm:$0xf]
        %v5081 = vld [vmem:[%s5069 + $0x2c] sm:$0xf]
        %v5082 = vld [vmem:[%s5069 + $0x30] sm:$0xf]
        %v5083 = vld [vmem:[%s5069 + $0x34] sm:$0xf]
        %v5084 = vld [vmem:[%s5069 + $0x38] sm:$0xf]
        %v5085 = vld [vmem:[%s5069 + $0x3c] sm:$0xf]
        %v5086 = vld [vmem:[%s5069 + $0x40] sm:$0xf]
        %v5087 = vld [vmem:[%s5069 + $0x44] sm:$0xf]
        %v5088 = vld [vmem:[%s5069 + $0x48] sm:$0xf]
        %v5089 = vld [vmem:[%s5069 + $0x4c] sm:$0xf]
        %v5090 = vld [vmem:[%s5069 + $0x50] sm:$0xf]
        %v5091 = vld [vmem:[%s5069 + $0x54] sm:$0xf]
        %v5092 = vld [vmem:[%s5069 + $0x58] sm:$0xf]
        %v5093 = vld [vmem:[%s5069 + $0x5c] sm:$0xf]
        %v5094 = vld [vmem:[%s5069 + $0x60] sm:$0xf]
        %v5095 = vld [vmem:[%s5069 + $0x64] sm:$0xf]
        %v5096 = vld [vmem:[%s5069 + $0x68] sm:$0xf]
        %v5097 = vld [vmem:[%s5069 + $0x6c] sm:$0xf]
        %v5098 = vld [vmem:[%s5069 + $0x70] sm:$0xf]
        %v5099 = vld [vmem:[%s5069 + $0x74] sm:$0xf]
        %v5100 = vld [vmem:[%s5069 + $0x78] sm:$0xf]
        %v5101 = vld [vmem:[%s5069 + $0x7c] sm:$0xf]
        %v5102 = vld [vmem:[%s5069 + $0x80] sm:$0xf]
        %v5103 = vld [vmem:[%s5069 + $0x84] sm:$0xf]
        %v5104 = vld [vmem:[%s5069 + $0x88] sm:$0xf]
        %v5105 = vld [vmem:[%s5069 + $0x8c] sm:$0xf]
        %v5106 = vld [vmem:[%s5069 + $0x90] sm:$0xf]
        %v5107 = vld [vmem:[%s5069 + $0x94] sm:$0xf]
        %v5108 = vld [vmem:[%s5069 + $0x98] sm:$0xf]
        %v5109 = vld [vmem:[%s5069 + $0x9c] sm:$0xf]
        %v5110 = vld [vmem:[%s5069 + $0xa0] sm:$0xf]
        %v5111 = vld [vmem:[%s5069 + $0xa4] sm:$0xf]
        %v5112 = vld [vmem:[%s5069 + $0xa8] sm:$0xf]
        %v5113 = vld [vmem:[%s5069 + $0xac] sm:$0xf]
        %v5114 = vld [vmem:[%s5069 + $0xb0] sm:$0xf]
        %v5115 = vld [vmem:[%s5069 + $0xb4] sm:$0xf]
        %v5116 = vld [vmem:[%s5069 + $0xb8] sm:$0xf]
        %v5117 = vld [vmem:[%s5069 + $0xbc] sm:$0xf]
        %v5118 = vld [vmem:[%s5069 + $0xc0] sm:$0xf]
        %v5119 = vld [vmem:[%s5069 + $0xc4] sm:$0xf]
        %v5120 = vld [vmem:[%s5069 + $0xc8] sm:$0xf]
        %v5121 = vld [vmem:[%s5069 + $0xcc] sm:$0xf]
        %v5122 = vld [vmem:[%s5069 + $0xd0] sm:$0xf]
        %v5123 = vld [vmem:[%s5069 + $0xd4] sm:$0xf]
        %v5124 = vld [vmem:[%s5069 + $0xd8] sm:$0xf]
        %v5125 = vld [vmem:[%s5069 + $0xdc] sm:$0xf]
        %v5126 = vld [vmem:[%s5069 + $0xe0] sm:$0xf]
        %v5127 = vld [vmem:[%s5069 + $0xe4] sm:$0xf]
        %v5128 = vld [vmem:[%s5069 + $0xe8] sm:$0xf]
        %v5129 = vld [vmem:[%s5069 + $0xec] sm:$0xf]
        %v5130 = vld [vmem:[%s5069 + $0xf0] sm:$0xf]
        %v5131 = vld [vmem:[%s5069 + $0xf4] sm:$0xf]
        %v5132 = vld [vmem:[%s5069 + $0xf8] sm:$0xf]
        %v5133 = vld [vmem:[%s5069 + $0xfc] sm:$0xf]
        %v5136 = vunpack.c.l.b16 %v1856
        %v5137 = vunpack.c.h.b16 %v1856
        %v5138 = vunpack.c.l.b16 %v1857
        %v5139 = vunpack.c.h.b16 %v1857
        %v5140 = vpack.c.b16 %v5136, %v5136
        %v5141 = vpack.c.b16 %v5137, %v5137
        %v5142 = vpack.c.b16 %v5138, %v5138
        %v5143 = vpack.c.b16 %v5139, %v5139
        %v5212 = vunpack.c.l.b16 %v5070
        %v5213 = vunpack.c.l.b16 %v5071
        %v5214 = vunpack.c.l.b16 %v5072
        %v5215 = vunpack.c.l.b16 %v5073
        %v5216 = vunpack.c.l.b16 %v5074
        %v5217 = vunpack.c.l.b16 %v5075
        %v5218 = vunpack.c.l.b16 %v5076
        %v5219 = vunpack.c.l.b16 %v5077
        %v5220 = vunpack.c.l.b16 %v5078
        %v5221 = vunpack.c.l.b16 %v5079
        %v5222 = vunpack.c.l.b16 %v5080
        %v5223 = vunpack.c.l.b16 %v5081
        %v5224 = vunpack.c.l.b16 %v5082
        %v5225 = vunpack.c.l.b16 %v5083
        %v5226 = vunpack.c.l.b16 %v5084
        %v5227 = vunpack.c.l.b16 %v5085
        %v5228 = vunpack.c.l.b16 %v5086
        %v5229 = vunpack.c.l.b16 %v5087
        %v5230 = vunpack.c.l.b16 %v5088
        %v5231 = vunpack.c.l.b16 %v5089
        %v5232 = vunpack.c.l.b16 %v5090
        %v5233 = vunpack.c.l.b16 %v5091
        %v5234 = vunpack.c.l.b16 %v5092
        %v5235 = vunpack.c.l.b16 %v5093
        %v5236 = vunpack.c.l.b16 %v5094
        %v5237 = vunpack.c.l.b16 %v5095
        %v5238 = vunpack.c.l.b16 %v5096
        %v5239 = vunpack.c.l.b16 %v5097
        %v5240 = vunpack.c.l.b16 %v5098
        %v5241 = vunpack.c.l.b16 %v5099
        %v5242 = vunpack.c.l.b16 %v5100
        %v5243 = vunpack.c.l.b16 %v5101
        %v5244 = vunpack.c.l.b16 %v5102
        %v5245 = vunpack.c.l.b16 %v5103
        %v5246 = vunpack.c.l.b16 %v5104
        %v5247 = vunpack.c.l.b16 %v5105
        %v5248 = vunpack.c.l.b16 %v5106
        %v5249 = vunpack.c.l.b16 %v5107
        %v5250 = vunpack.c.l.b16 %v5108
        %v5251 = vunpack.c.l.b16 %v5109
        %v5252 = vunpack.c.l.b16 %v5110
        %v5253 = vunpack.c.l.b16 %v5111
        %v5254 = vunpack.c.l.b16 %v5112
        %v5255 = vunpack.c.l.b16 %v5113
        %v5256 = vunpack.c.l.b16 %v5114
        %v5257 = vunpack.c.l.b16 %v5115
        %v5258 = vunpack.c.l.b16 %v5116
        %v5259 = vunpack.c.l.b16 %v5117
        %v5260 = vunpack.c.l.b16 %v5118
        %v5261 = vunpack.c.l.b16 %v5119
        %v5262 = vunpack.c.l.b16 %v5120
        %v5263 = vunpack.c.l.b16 %v5121
        %v5264 = vunpack.c.l.b16 %v5122
        %v5265 = vunpack.c.l.b16 %v5123
        %v5266 = vunpack.c.l.b16 %v5124
        %v5267 = vunpack.c.l.b16 %v5125
        %v5268 = vunpack.c.l.b16 %v5126
        %v5269 = vunpack.c.l.b16 %v5127
        %v5270 = vunpack.c.l.b16 %v5128
        %v5271 = vunpack.c.l.b16 %v5129
        %v5272 = vunpack.c.l.b16 %v5130
        %v5273 = vunpack.c.l.b16 %v5131
        %v5274 = vunpack.c.l.b16 %v5132
        %v5275 = vunpack.c.l.b16 %v5133
        %v5276 = vpack.c.b16 %v5213, %v5212
        %v5277 = vpack.c.b16 %v5215, %v5214
        %v5278 = vpack.c.b16 %v5217, %v5216
        %v5279 = vpack.c.b16 %v5219, %v5218
        %v5280 = vpack.c.b16 %v5221, %v5220
        %v5281 = vpack.c.b16 %v5223, %v5222
        %v5282 = vpack.c.b16 %v5225, %v5224
        %v5283 = vpack.c.b16 %v5227, %v5226
        %v5284 = vpack.c.b16 %v5229, %v5228
        %v5285 = vpack.c.b16 %v5231, %v5230
        %v5286 = vpack.c.b16 %v5233, %v5232
        %v5287 = vpack.c.b16 %v5235, %v5234
        %v5288 = vpack.c.b16 %v5237, %v5236
        %v5289 = vpack.c.b16 %v5239, %v5238
        %v5290 = vpack.c.b16 %v5241, %v5240
        %v5291 = vpack.c.b16 %v5243, %v5242
        %v5292 = vpack.c.b16 %v5245, %v5244
        %v5293 = vpack.c.b16 %v5247, %v5246
        %v5294 = vpack.c.b16 %v5249, %v5248
        %v5295 = vpack.c.b16 %v5251, %v5250
        %v5296 = vpack.c.b16 %v5253, %v5252
        %v5297 = vpack.c.b16 %v5255, %v5254
        %v5298 = vpack.c.b16 %v5257, %v5256
        %v5299 = vpack.c.b16 %v5259, %v5258
        %v5300 = vpack.c.b16 %v5261, %v5260
        %v5301 = vpack.c.b16 %v5263, %v5262
        %v5302 = vpack.c.b16 %v5265, %v5264
        %v5303 = vpack.c.b16 %v5267, %v5266
        %v5304 = vpack.c.b16 %v5269, %v5268
        %v5305 = vpack.c.b16 %v5271, %v5270
        %v5306 = vpack.c.b16 %v5273, %v5272
        %v5307 = vpack.c.b16 %v5275, %v5274
        %5340 = vmatpush.bf16.msra.mxu0 %v5283
        %5341 = vmatpush.bf16.msra.mxu0 %v5282
        %5342 = vmatpush.bf16.msra.mxu0 %v5281
        %5343 = vmatpush.bf16.msra.mxu0 %v5280
        %5344 = vmatpush.bf16.msra.mxu0 %v5279
        %5345 = vmatpush.bf16.msra.mxu0 %v5278
        %5346 = vmatpush.bf16.msra.mxu0 %v5277
        %5347 = vmatpush.bf16.msra.mxu0 %v5276
        %5348 = vmatmul.bf16.gmra.mxu0 %v5140
        %v5349 = vpop.f32.mrf.mxu0
        %v5350 = vadd.f32 0.0, %v5349
        %v5351 = vpop.f32.mrf.mxu0
        %5352 = vdwg.mxu0
        %5353 = vmatpush.bf16.msra.mxu0 %v5291
        %5354 = vmatpush.bf16.msra.mxu0 %v5290
        %5355 = vmatpush.bf16.msra.mxu0 %v5289
        %5356 = vmatpush.bf16.msra.mxu0 %v5288
        %5357 = vmatpush.bf16.msra.mxu0 %v5287
        %5358 = vmatpush.bf16.msra.mxu0 %v5286
        %5359 = vmatpush.bf16.msra.mxu0 %v5285
        %5360 = vmatpush.bf16.msra.mxu0 %v5284
        %5361 = vmatmul.bf16.gmra.mxu0 %v5141
        %v5362 = vpop.f32.mrf.mxu0
        %v5363 = vadd.f32 %v5350, %v5362
        %v5364 = vpop.f32.mrf.mxu0
        %5365 = vdwg.mxu0
        %5366 = vmatpush.bf16.msra.mxu0 %v5299
        %5367 = vmatpush.bf16.msra.mxu0 %v5298
        %5368 = vmatpush.bf16.msra.mxu0 %v5297
        %5369 = vmatpush.bf16.msra.mxu0 %v5296
        %5370 = vmatpush.bf16.msra.mxu0 %v5295
        %5371 = vmatpush.bf16.msra.mxu0 %v5294
        %5372 = vmatpush.bf16.msra.mxu0 %v5293
        %5373 = vmatpush.bf16.msra.mxu0 %v5292
        %5374 = vmatmul.bf16.gmra.mxu0 %v5142
        %v5375 = vpop.f32.mrf.mxu0
        %v5376 = vadd.f32 %v5363, %v5375
        %v5377 = vpop.f32.mrf.mxu0
        %5378 = vdwg.mxu0
        %5379 = vmatpush.bf16.msra.mxu0 %v5307
        %5380 = vmatpush.bf16.msra.mxu0 %v5306
        %5381 = vmatpush.bf16.msra.mxu0 %v5305
        %5382 = vmatpush.bf16.msra.mxu0 %v5304
        %5383 = vmatpush.bf16.msra.mxu0 %v5303
        %5384 = vmatpush.bf16.msra.mxu0 %v5302
        %5385 = vmatpush.bf16.msra.mxu0 %v5301
        %5386 = vmatpush.bf16.msra.mxu0 %v5300
        %5387 = vmatmul.bf16.gmra.mxu0 %v5143
        %v5388 = vpop.f32.mrf.mxu0
        %v5389 = vadd.f32 %v5376, %v5388
        %v5390 = vpop.f32.mrf.mxu0
        %5391 = vdwg.mxu0
        %v5392 = vadd.f32 %v5068, %v5389
        %s5393 = scalar_lea.vmem %s4, 2816
        %v5394 = vld [vmem:[%s5393] sm:$0xf]
        %v5395 = vld [vmem:[%s5393 + $0x4] sm:$0xf]
        %v5396 = vld [vmem:[%s5393 + $0x8] sm:$0xf]
        %v5397 = vld [vmem:[%s5393 + $0xc] sm:$0xf]
        %v5398 = vld [vmem:[%s5393 + $0x10] sm:$0xf]
        %v5399 = vld [vmem:[%s5393 + $0x14] sm:$0xf]
        %v5400 = vld [vmem:[%s5393 + $0x18] sm:$0xf]
        %v5401 = vld [vmem:[%s5393 + $0x1c] sm:$0xf]
        %v5402 = vld [vmem:[%s5393 + $0x20] sm:$0xf]
        %v5403 = vld [vmem:[%s5393 + $0x24] sm:$0xf]
        %v5404 = vld [vmem:[%s5393 + $0x28] sm:$0xf]
        %v5405 = vld [vmem:[%s5393 + $0x2c] sm:$0xf]
        %v5406 = vld [vmem:[%s5393 + $0x30] sm:$0xf]
        %v5407 = vld [vmem:[%s5393 + $0x34] sm:$0xf]
        %v5408 = vld [vmem:[%s5393 + $0x38] sm:$0xf]
        %v5409 = vld [vmem:[%s5393 + $0x3c] sm:$0xf]
        %v5410 = vld [vmem:[%s5393 + $0x40] sm:$0xf]
        %v5411 = vld [vmem:[%s5393 + $0x44] sm:$0xf]
        %v5412 = vld [vmem:[%s5393 + $0x48] sm:$0xf]
        %v5413 = vld [vmem:[%s5393 + $0x4c] sm:$0xf]
        %v5414 = vld [vmem:[%s5393 + $0x50] sm:$0xf]
        %v5415 = vld [vmem:[%s5393 + $0x54] sm:$0xf]
        %v5416 = vld [vmem:[%s5393 + $0x58] sm:$0xf]
        %v5417 = vld [vmem:[%s5393 + $0x5c] sm:$0xf]
        %v5418 = vld [vmem:[%s5393 + $0x60] sm:$0xf]
        %v5419 = vld [vmem:[%s5393 + $0x64] sm:$0xf]
        %v5420 = vld [vmem:[%s5393 + $0x68] sm:$0xf]
        %v5421 = vld [vmem:[%s5393 + $0x6c] sm:$0xf]
        %v5422 = vld [vmem:[%s5393 + $0x70] sm:$0xf]
        %v5423 = vld [vmem:[%s5393 + $0x74] sm:$0xf]
        %v5424 = vld [vmem:[%s5393 + $0x78] sm:$0xf]
        %v5425 = vld [vmem:[%s5393 + $0x7c] sm:$0xf]
        %v5426 = vld [vmem:[%s5393 + $0x80] sm:$0xf]
        %v5427 = vld [vmem:[%s5393 + $0x84] sm:$0xf]
        %v5428 = vld [vmem:[%s5393 + $0x88] sm:$0xf]
        %v5429 = vld [vmem:[%s5393 + $0x8c] sm:$0xf]
        %v5430 = vld [vmem:[%s5393 + $0x90] sm:$0xf]
        %v5431 = vld [vmem:[%s5393 + $0x94] sm:$0xf]
        %v5432 = vld [vmem:[%s5393 + $0x98] sm:$0xf]
        %v5433 = vld [vmem:[%s5393 + $0x9c] sm:$0xf]
        %v5434 = vld [vmem:[%s5393 + $0xa0] sm:$0xf]
        %v5435 = vld [vmem:[%s5393 + $0xa4] sm:$0xf]
        %v5436 = vld [vmem:[%s5393 + $0xa8] sm:$0xf]
        %v5437 = vld [vmem:[%s5393 + $0xac] sm:$0xf]
        %v5438 = vld [vmem:[%s5393 + $0xb0] sm:$0xf]
        %v5439 = vld [vmem:[%s5393 + $0xb4] sm:$0xf]
        %v5440 = vld [vmem:[%s5393 + $0xb8] sm:$0xf]
        %v5441 = vld [vmem:[%s5393 + $0xbc] sm:$0xf]
        %v5442 = vld [vmem:[%s5393 + $0xc0] sm:$0xf]
        %v5443 = vld [vmem:[%s5393 + $0xc4] sm:$0xf]
        %v5444 = vld [vmem:[%s5393 + $0xc8] sm:$0xf]
        %v5445 = vld [vmem:[%s5393 + $0xcc] sm:$0xf]
        %v5446 = vld [vmem:[%s5393 + $0xd0] sm:$0xf]
        %v5447 = vld [vmem:[%s5393 + $0xd4] sm:$0xf]
        %v5448 = vld [vmem:[%s5393 + $0xd8] sm:$0xf]
        %v5449 = vld [vmem:[%s5393 + $0xdc] sm:$0xf]
        %v5450 = vld [vmem:[%s5393 + $0xe0] sm:$0xf]
        %v5451 = vld [vmem:[%s5393 + $0xe4] sm:$0xf]
        %v5452 = vld [vmem:[%s5393 + $0xe8] sm:$0xf]
        %v5453 = vld [vmem:[%s5393 + $0xec] sm:$0xf]
        %v5454 = vld [vmem:[%s5393 + $0xf0] sm:$0xf]
        %v5455 = vld [vmem:[%s5393 + $0xf4] sm:$0xf]
        %v5456 = vld [vmem:[%s5393 + $0xf8] sm:$0xf]
        %v5457 = vld [vmem:[%s5393 + $0xfc] sm:$0xf]
        %v5458 = vrot.slane %v5140, 2
        %v5459 = vrot.slane %v5141, 2
        %v5460 = vrot.slane %v5142, 2
        %v5461 = vrot.slane %v5143, 2
        %v5530 = vunpack.c.l.b16 %v5394
        %v5531 = vunpack.c.l.b16 %v5395
        %v5532 = vunpack.c.l.b16 %v5396
        %v5533 = vunpack.c.l.b16 %v5397
        %v5534 = vunpack.c.l.b16 %v5398
        %v5535 = vunpack.c.l.b16 %v5399
        %v5536 = vunpack.c.l.b16 %v5400
        %v5537 = vunpack.c.l.b16 %v5401
        %v5538 = vunpack.c.l.b16 %v5402
        %v5539 = vunpack.c.l.b16 %v5403
        %v5540 = vunpack.c.l.b16 %v5404
        %v5541 = vunpack.c.l.b16 %v5405
        %v5542 = vunpack.c.l.b16 %v5406
        %v5543 = vunpack.c.l.b16 %v5407
        %v5544 = vunpack.c.l.b16 %v5408
        %v5545 = vunpack.c.l.b16 %v5409
        %v5546 = vunpack.c.l.b16 %v5410
        %v5547 = vunpack.c.l.b16 %v5411
        %v5548 = vunpack.c.l.b16 %v5412
        %v5549 = vunpack.c.l.b16 %v5413
        %v5550 = vunpack.c.l.b16 %v5414
        %v5551 = vunpack.c.l.b16 %v5415
        %v5552 = vunpack.c.l.b16 %v5416
        %v5553 = vunpack.c.l.b16 %v5417
        %v5554 = vunpack.c.l.b16 %v5418
        %v5555 = vunpack.c.l.b16 %v5419
        %v5556 = vunpack.c.l.b16 %v5420
        %v5557 = vunpack.c.l.b16 %v5421
        %v5558 = vunpack.c.l.b16 %v5422
        %v5559 = vunpack.c.l.b16 %v5423
        %v5560 = vunpack.c.l.b16 %v5424
        %v5561 = vunpack.c.l.b16 %v5425
        %v5562 = vunpack.c.l.b16 %v5426
        %v5563 = vunpack.c.l.b16 %v5427
        %v5564 = vunpack.c.l.b16 %v5428
        %v5565 = vunpack.c.l.b16 %v5429
        %v5566 = vunpack.c.l.b16 %v5430
        %v5567 = vunpack.c.l.b16 %v5431
        %v5568 = vunpack.c.l.b16 %v5432
        %v5569 = vunpack.c.l.b16 %v5433
        %v5570 = vunpack.c.l.b16 %v5434
        %v5571 = vunpack.c.l.b16 %v5435
        %v5572 = vunpack.c.l.b16 %v5436
        %v5573 = vunpack.c.l.b16 %v5437
        %v5574 = vunpack.c.l.b16 %v5438
        %v5575 = vunpack.c.l.b16 %v5439
        %v5576 = vunpack.c.l.b16 %v5440
        %v5577 = vunpack.c.l.b16 %v5441
        %v5578 = vunpack.c.l.b16 %v5442
        %v5579 = vunpack.c.l.b16 %v5443
        %v5580 = vunpack.c.l.b16 %v5444
        %v5581 = vunpack.c.l.b16 %v5445
        %v5582 = vunpack.c.l.b16 %v5446
        %v5583 = vunpack.c.l.b16 %v5447
        %v5584 = vunpack.c.l.b16 %v5448
        %v5585 = vunpack.c.l.b16 %v5449
        %v5586 = vunpack.c.l.b16 %v5450
        %v5587 = vunpack.c.l.b16 %v5451
        %v5588 = vunpack.c.l.b16 %v5452
        %v5589 = vunpack.c.l.b16 %v5453
        %v5590 = vunpack.c.l.b16 %v5454
        %v5591 = vunpack.c.l.b16 %v5455
        %v5592 = vunpack.c.l.b16 %v5456
        %v5593 = vunpack.c.l.b16 %v5457
        %v5594 = vpack.c.b16 %v5531, %v5530
        %v5595 = vpack.c.b16 %v5533, %v5532
        %v5596 = vpack.c.b16 %v5535, %v5534
        %v5597 = vpack.c.b16 %v5537, %v5536
        %v5598 = vpack.c.b16 %v5539, %v5538
        %v5599 = vpack.c.b16 %v5541, %v5540
        %v5600 = vpack.c.b16 %v5543, %v5542
        %v5601 = vpack.c.b16 %v5545, %v5544
        %v5602 = vpack.c.b16 %v5547, %v5546
        %v5603 = vpack.c.b16 %v5549, %v5548
        %v5604 = vpack.c.b16 %v5551, %v5550
        %v5605 = vpack.c.b16 %v5553, %v5552
        %v5606 = vpack.c.b16 %v5555, %v5554
        %v5607 = vpack.c.b16 %v5557, %v5556
        %v5608 = vpack.c.b16 %v5559, %v5558
        %v5609 = vpack.c.b16 %v5561, %v5560
        %v5610 = vpack.c.b16 %v5563, %v5562
        %v5611 = vpack.c.b16 %v5565, %v5564
        %v5612 = vpack.c.b16 %v5567, %v5566
        %v5613 = vpack.c.b16 %v5569, %v5568
        %v5614 = vpack.c.b16 %v5571, %v5570
        %v5615 = vpack.c.b16 %v5573, %v5572
        %v5616 = vpack.c.b16 %v5575, %v5574
        %v5617 = vpack.c.b16 %v5577, %v5576
        %v5618 = vpack.c.b16 %v5579, %v5578
        %v5619 = vpack.c.b16 %v5581, %v5580
        %v5620 = vpack.c.b16 %v5583, %v5582
        %v5621 = vpack.c.b16 %v5585, %v5584
        %v5622 = vpack.c.b16 %v5587, %v5586
        %v5623 = vpack.c.b16 %v5589, %v5588
        %v5624 = vpack.c.b16 %v5591, %v5590
        %v5625 = vpack.c.b16 %v5593, %v5592
        %5658 = vmatpush.bf16.msra.mxu0 %v5601
        %5659 = vmatpush.bf16.msra.mxu0 %v5600
        %5660 = vmatpush.bf16.msra.mxu0 %v5599
        %5661 = vmatpush.bf16.msra.mxu0 %v5598
        %5662 = vmatpush.bf16.msra.mxu0 %v5597
        %5663 = vmatpush.bf16.msra.mxu0 %v5596
        %5664 = vmatpush.bf16.msra.mxu0 %v5595
        %5665 = vmatpush.bf16.msra.mxu0 %v5594
        %5666 = vmatmul.bf16.gmra.mxu0 %v5458
        %v5667 = vpop.f32.mrf.mxu0
        %v5668 = vadd.f32 0.0, %v5667
        %v5669 = vpop.f32.mrf.mxu0
        %5670 = vdwg.mxu0
        %5671 = vmatpush.bf16.msra.mxu0 %v5609
        %5672 = vmatpush.bf16.msra.mxu0 %v5608
        %5673 = vmatpush.bf16.msra.mxu0 %v5607
        %5674 = vmatpush.bf16.msra.mxu0 %v5606
        %5675 = vmatpush.bf16.msra.mxu0 %v5605
        %5676 = vmatpush.bf16.msra.mxu0 %v5604
        %5677 = vmatpush.bf16.msra.mxu0 %v5603
        %5678 = vmatpush.bf16.msra.mxu0 %v5602
        %5679 = vmatmul.bf16.gmra.mxu0 %v5459
        %v5680 = vpop.f32.mrf.mxu0
        %v5681 = vadd.f32 %v5668, %v5680
        %v5682 = vpop.f32.mrf.mxu0
        %5683 = vdwg.mxu0
        %5684 = vmatpush.bf16.msra.mxu0 %v5617
        %5685 = vmatpush.bf16.msra.mxu0 %v5616
        %5686 = vmatpush.bf16.msra.mxu0 %v5615
        %5687 = vmatpush.bf16.msra.mxu0 %v5614
        %5688 = vmatpush.bf16.msra.mxu0 %v5613
        %5689 = vmatpush.bf16.msra.mxu0 %v5612
        %5690 = vmatpush.bf16.msra.mxu0 %v5611
        %5691 = vmatpush.bf16.msra.mxu0 %v5610
        %5692 = vmatmul.bf16.gmra.mxu0 %v5460
        %v5693 = vpop.f32.mrf.mxu0
        %v5694 = vadd.f32 %v5681, %v5693
        %v5695 = vpop.f32.mrf.mxu0
        %5696 = vdwg.mxu0
        %5697 = vmatpush.bf16.msra.mxu0 %v5625
        %5698 = vmatpush.bf16.msra.mxu0 %v5624
        %5699 = vmatpush.bf16.msra.mxu0 %v5623
        %5700 = vmatpush.bf16.msra.mxu0 %v5622
        %5701 = vmatpush.bf16.msra.mxu0 %v5621
        %5702 = vmatpush.bf16.msra.mxu0 %v5620
        %5703 = vmatpush.bf16.msra.mxu0 %v5619
        %5704 = vmatpush.bf16.msra.mxu0 %v5618
        %5705 = vmatmul.bf16.gmra.mxu0 %v5461
        %v5706 = vpop.f32.mrf.mxu0
        %v5707 = vadd.f32 %v5694, %v5706
        %v5708 = vpop.f32.mrf.mxu0
        %5709 = vdwg.mxu0
        %v5710 = vadd.f32 %v5392, %v5707
        %s5711 = scalar_lea.vmem %s4, 3072
        %v5712 = vld [vmem:[%s5711] sm:$0xf]
        %v5713 = vld [vmem:[%s5711 + $0x4] sm:$0xf]
        %v5714 = vld [vmem:[%s5711 + $0x8] sm:$0xf]
        %v5715 = vld [vmem:[%s5711 + $0xc] sm:$0xf]
        %v5716 = vld [vmem:[%s5711 + $0x10] sm:$0xf]
        %v5717 = vld [vmem:[%s5711 + $0x14] sm:$0xf]
        %v5718 = vld [vmem:[%s5711 + $0x18] sm:$0xf]
        %v5719 = vld [vmem:[%s5711 + $0x1c] sm:$0xf]
        %v5720 = vld [vmem:[%s5711 + $0x20] sm:$0xf]
        %v5721 = vld [vmem:[%s5711 + $0x24] sm:$0xf]
        %v5722 = vld [vmem:[%s5711 + $0x28] sm:$0xf]
        %v5723 = vld [vmem:[%s5711 + $0x2c] sm:$0xf]
        %v5724 = vld [vmem:[%s5711 + $0x30] sm:$0xf]
        %v5725 = vld [vmem:[%s5711 + $0x34] sm:$0xf]
        %v5726 = vld [vmem:[%s5711 + $0x38] sm:$0xf]
        %v5727 = vld [vmem:[%s5711 + $0x3c] sm:$0xf]
        %v5728 = vld [vmem:[%s5711 + $0x40] sm:$0xf]
        %v5729 = vld [vmem:[%s5711 + $0x44] sm:$0xf]
        %v5730 = vld [vmem:[%s5711 + $0x48] sm:$0xf]
        %v5731 = vld [vmem:[%s5711 + $0x4c] sm:$0xf]
        %v5732 = vld [vmem:[%s5711 + $0x50] sm:$0xf]
        %v5733 = vld [vmem:[%s5711 + $0x54] sm:$0xf]
        %v5734 = vld [vmem:[%s5711 + $0x58] sm:$0xf]
        %v5735 = vld [vmem:[%s5711 + $0x5c] sm:$0xf]
        %v5736 = vld [vmem:[%s5711 + $0x60] sm:$0xf]
        %v5737 = vld [vmem:[%s5711 + $0x64] sm:$0xf]
        %v5738 = vld [vmem:[%s5711 + $0x68] sm:$0xf]
        %v5739 = vld [vmem:[%s5711 + $0x6c] sm:$0xf]
        %v5740 = vld [vmem:[%s5711 + $0x70] sm:$0xf]
        %v5741 = vld [vmem:[%s5711 + $0x74] sm:$0xf]
        %v5742 = vld [vmem:[%s5711 + $0x78] sm:$0xf]
        %v5743 = vld [vmem:[%s5711 + $0x7c] sm:$0xf]
        %v5744 = vld [vmem:[%s5711 + $0x80] sm:$0xf]
        %v5745 = vld [vmem:[%s5711 + $0x84] sm:$0xf]
        %v5746 = vld [vmem:[%s5711 + $0x88] sm:$0xf]
        %v5747 = vld [vmem:[%s5711 + $0x8c] sm:$0xf]
        %v5748 = vld [vmem:[%s5711 + $0x90] sm:$0xf]
        %v5749 = vld [vmem:[%s5711 + $0x94] sm:$0xf]
        %v5750 = vld [vmem:[%s5711 + $0x98] sm:$0xf]
        %v5751 = vld [vmem:[%s5711 + $0x9c] sm:$0xf]
        %v5752 = vld [vmem:[%s5711 + $0xa0] sm:$0xf]
        %v5753 = vld [vmem:[%s5711 + $0xa4] sm:$0xf]
        %v5754 = vld [vmem:[%s5711 + $0xa8] sm:$0xf]
        %v5755 = vld [vmem:[%s5711 + $0xac] sm:$0xf]
        %v5756 = vld [vmem:[%s5711 + $0xb0] sm:$0xf]
        %v5757 = vld [vmem:[%s5711 + $0xb4] sm:$0xf]
        %v5758 = vld [vmem:[%s5711 + $0xb8] sm:$0xf]
        %v5759 = vld [vmem:[%s5711 + $0xbc] sm:$0xf]
        %v5760 = vld [vmem:[%s5711 + $0xc0] sm:$0xf]
        %v5761 = vld [vmem:[%s5711 + $0xc4] sm:$0xf]
        %v5762 = vld [vmem:[%s5711 + $0xc8] sm:$0xf]
        %v5763 = vld [vmem:[%s5711 + $0xcc] sm:$0xf]
        %v5764 = vld [vmem:[%s5711 + $0xd0] sm:$0xf]
        %v5765 = vld [vmem:[%s5711 + $0xd4] sm:$0xf]
        %v5766 = vld [vmem:[%s5711 + $0xd8] sm:$0xf]
        %v5767 = vld [vmem:[%s5711 + $0xdc] sm:$0xf]
        %v5768 = vld [vmem:[%s5711 + $0xe0] sm:$0xf]
        %v5769 = vld [vmem:[%s5711 + $0xe4] sm:$0xf]
        %v5770 = vld [vmem:[%s5711 + $0xe8] sm:$0xf]
        %v5771 = vld [vmem:[%s5711 + $0xec] sm:$0xf]
        %v5772 = vld [vmem:[%s5711 + $0xf0] sm:$0xf]
        %v5773 = vld [vmem:[%s5711 + $0xf4] sm:$0xf]
        %v5774 = vld [vmem:[%s5711 + $0xf8] sm:$0xf]
        %v5775 = vld [vmem:[%s5711 + $0xfc] sm:$0xf]
        %v5778 = vunpack.c.l.b16 %v1858
        %v5779 = vunpack.c.h.b16 %v1858
        %v5780 = vunpack.c.l.b16 %v1859
        %v5781 = vunpack.c.h.b16 %v1859
        %v5782 = vpack.c.b16 %v5778, %v5778
        %v5783 = vpack.c.b16 %v5779, %v5779
        %v5784 = vpack.c.b16 %v5780, %v5780
        %v5785 = vpack.c.b16 %v5781, %v5781
        %v5854 = vunpack.c.l.b16 %v5712
        %v5855 = vunpack.c.l.b16 %v5713
        %v5856 = vunpack.c.l.b16 %v5714
        %v5857 = vunpack.c.l.b16 %v5715
        %v5858 = vunpack.c.l.b16 %v5716
        %v5859 = vunpack.c.l.b16 %v5717
        %v5860 = vunpack.c.l.b16 %v5718
        %v5861 = vunpack.c.l.b16 %v5719
        %v5862 = vunpack.c.l.b16 %v5720
        %v5863 = vunpack.c.l.b16 %v5721
        %v5864 = vunpack.c.l.b16 %v5722
        %v5865 = vunpack.c.l.b16 %v5723
        %v5866 = vunpack.c.l.b16 %v5724
        %v5867 = vunpack.c.l.b16 %v5725
        %v5868 = vunpack.c.l.b16 %v5726
        %v5869 = vunpack.c.l.b16 %v5727
        %v5870 = vunpack.c.l.b16 %v5728
        %v5871 = vunpack.c.l.b16 %v5729
        %v5872 = vunpack.c.l.b16 %v5730
        %v5873 = vunpack.c.l.b16 %v5731
        %v5874 = vunpack.c.l.b16 %v5732
        %v5875 = vunpack.c.l.b16 %v5733
        %v5876 = vunpack.c.l.b16 %v5734
        %v5877 = vunpack.c.l.b16 %v5735
        %v5878 = vunpack.c.l.b16 %v5736
        %v5879 = vunpack.c.l.b16 %v5737
        %v5880 = vunpack.c.l.b16 %v5738
        %v5881 = vunpack.c.l.b16 %v5739
        %v5882 = vunpack.c.l.b16 %v5740
        %v5883 = vunpack.c.l.b16 %v5741
        %v5884 = vunpack.c.l.b16 %v5742
        %v5885 = vunpack.c.l.b16 %v5743
        %v5886 = vunpack.c.l.b16 %v5744
        %v5887 = vunpack.c.l.b16 %v5745
        %v5888 = vunpack.c.l.b16 %v5746
        %v5889 = vunpack.c.l.b16 %v5747
        %v5890 = vunpack.c.l.b16 %v5748
        %v5891 = vunpack.c.l.b16 %v5749
        %v5892 = vunpack.c.l.b16 %v5750
        %v5893 = vunpack.c.l.b16 %v5751
        %v5894 = vunpack.c.l.b16 %v5752
        %v5895 = vunpack.c.l.b16 %v5753
        %v5896 = vunpack.c.l.b16 %v5754
        %v5897 = vunpack.c.l.b16 %v5755
        %v5898 = vunpack.c.l.b16 %v5756
        %v5899 = vunpack.c.l.b16 %v5757
        %v5900 = vunpack.c.l.b16 %v5758
        %v5901 = vunpack.c.l.b16 %v5759
        %v5902 = vunpack.c.l.b16 %v5760
        %v5903 = vunpack.c.l.b16 %v5761
        %v5904 = vunpack.c.l.b16 %v5762
        %v5905 = vunpack.c.l.b16 %v5763
        %v5906 = vunpack.c.l.b16 %v5764
        %v5907 = vunpack.c.l.b16 %v5765
        %v5908 = vunpack.c.l.b16 %v5766
        %v5909 = vunpack.c.l.b16 %v5767
        %v5910 = vunpack.c.l.b16 %v5768
        %v5911 = vunpack.c.l.b16 %v5769
        %v5912 = vunpack.c.l.b16 %v5770
        %v5913 = vunpack.c.l.b16 %v5771
        %v5914 = vunpack.c.l.b16 %v5772
        %v5915 = vunpack.c.l.b16 %v5773
        %v5916 = vunpack.c.l.b16 %v5774
        %v5917 = vunpack.c.l.b16 %v5775
        %v5918 = vpack.c.b16 %v5855, %v5854
        %v5919 = vpack.c.b16 %v5857, %v5856
        %v5920 = vpack.c.b16 %v5859, %v5858
        %v5921 = vpack.c.b16 %v5861, %v5860
        %v5922 = vpack.c.b16 %v5863, %v5862
        %v5923 = vpack.c.b16 %v5865, %v5864
        %v5924 = vpack.c.b16 %v5867, %v5866
        %v5925 = vpack.c.b16 %v5869, %v5868
        %v5926 = vpack.c.b16 %v5871, %v5870
        %v5927 = vpack.c.b16 %v5873, %v5872
        %v5928 = vpack.c.b16 %v5875, %v5874
        %v5929 = vpack.c.b16 %v5877, %v5876
        %v5930 = vpack.c.b16 %v5879, %v5878
        %v5931 = vpack.c.b16 %v5881, %v5880
        %v5932 = vpack.c.b16 %v5883, %v5882
        %v5933 = vpack.c.b16 %v5885, %v5884
        %v5934 = vpack.c.b16 %v5887, %v5886
        %v5935 = vpack.c.b16 %v5889, %v5888
        %v5936 = vpack.c.b16 %v5891, %v5890
        %v5937 = vpack.c.b16 %v5893, %v5892
        %v5938 = vpack.c.b16 %v5895, %v5894
        %v5939 = vpack.c.b16 %v5897, %v5896
        %v5940 = vpack.c.b16 %v5899, %v5898
        %v5941 = vpack.c.b16 %v5901, %v5900
        %v5942 = vpack.c.b16 %v5903, %v5902
        %v5943 = vpack.c.b16 %v5905, %v5904
        %v5944 = vpack.c.b16 %v5907, %v5906
        %v5945 = vpack.c.b16 %v5909, %v5908
        %v5946 = vpack.c.b16 %v5911, %v5910
        %v5947 = vpack.c.b16 %v5913, %v5912
        %v5948 = vpack.c.b16 %v5915, %v5914
        %v5949 = vpack.c.b16 %v5917, %v5916
        %5982 = vmatpush.bf16.msra.mxu0 %v5925
        %5983 = vmatpush.bf16.msra.mxu0 %v5924
        %5984 = vmatpush.bf16.msra.mxu0 %v5923
        %5985 = vmatpush.bf16.msra.mxu0 %v5922
        %5986 = vmatpush.bf16.msra.mxu0 %v5921
        %5987 = vmatpush.bf16.msra.mxu0 %v5920
        %5988 = vmatpush.bf16.msra.mxu0 %v5919
        %5989 = vmatpush.bf16.msra.mxu0 %v5918
        %5990 = vmatmul.bf16.gmra.mxu0 %v5782
        %v5991 = vpop.f32.mrf.mxu0
        %v5992 = vadd.f32 0.0, %v5991
        %v5993 = vpop.f32.mrf.mxu0
        %5994 = vdwg.mxu0
        %5995 = vmatpush.bf16.msra.mxu0 %v5933
        %5996 = vmatpush.bf16.msra.mxu0 %v5932
        %5997 = vmatpush.bf16.msra.mxu0 %v5931
        %5998 = vmatpush.bf16.msra.mxu0 %v5930
        %5999 = vmatpush.bf16.msra.mxu0 %v5929
        %6000 = vmatpush.bf16.msra.mxu0 %v5928
        %6001 = vmatpush.bf16.msra.mxu0 %v5927
        %6002 = vmatpush.bf16.msra.mxu0 %v5926
        %6003 = vmatmul.bf16.gmra.mxu0 %v5783
        %v6004 = vpop.f32.mrf.mxu0
        %v6005 = vadd.f32 %v5992, %v6004
        %v6006 = vpop.f32.mrf.mxu0
        %6007 = vdwg.mxu0
        %6008 = vmatpush.bf16.msra.mxu0 %v5941
        %6009 = vmatpush.bf16.msra.mxu0 %v5940
        %6010 = vmatpush.bf16.msra.mxu0 %v5939
        %6011 = vmatpush.bf16.msra.mxu0 %v5938
        %6012 = vmatpush.bf16.msra.mxu0 %v5937
        %6013 = vmatpush.bf16.msra.mxu0 %v5936
        %6014 = vmatpush.bf16.msra.mxu0 %v5935
        %6015 = vmatpush.bf16.msra.mxu0 %v5934
        %6016 = vmatmul.bf16.gmra.mxu0 %v5784
        %v6017 = vpop.f32.mrf.mxu0
        %v6018 = vadd.f32 %v6005, %v6017
        %v6019 = vpop.f32.mrf.mxu0
        %6020 = vdwg.mxu0
        %6021 = vmatpush.bf16.msra.mxu0 %v5949
        %6022 = vmatpush.bf16.msra.mxu0 %v5948
        %6023 = vmatpush.bf16.msra.mxu0 %v5947
        %6024 = vmatpush.bf16.msra.mxu0 %v5946
        %6025 = vmatpush.bf16.msra.mxu0 %v5945
        %6026 = vmatpush.bf16.msra.mxu0 %v5944
        %6027 = vmatpush.bf16.msra.mxu0 %v5943
        %6028 = vmatpush.bf16.msra.mxu0 %v5942
        %6029 = vmatmul.bf16.gmra.mxu0 %v5785
        %v6030 = vpop.f32.mrf.mxu0
        %v6031 = vadd.f32 %v6018, %v6030
        %v6032 = vpop.f32.mrf.mxu0
        %6033 = vdwg.mxu0
        %v6034 = vadd.f32 %v5710, %v6031
        %s6035 = scalar_lea.vmem %s4, 3328
        %v6036 = vld [vmem:[%s6035] sm:$0xf]
        %v6037 = vld [vmem:[%s6035 + $0x4] sm:$0xf]
        %v6038 = vld [vmem:[%s6035 + $0x8] sm:$0xf]
        %v6039 = vld [vmem:[%s6035 + $0xc] sm:$0xf]
        %v6040 = vld [vmem:[%s6035 + $0x10] sm:$0xf]
        %v6041 = vld [vmem:[%s6035 + $0x14] sm:$0xf]
        %v6042 = vld [vmem:[%s6035 + $0x18] sm:$0xf]
        %v6043 = vld [vmem:[%s6035 + $0x1c] sm:$0xf]
        %v6044 = vld [vmem:[%s6035 + $0x20] sm:$0xf]
        %v6045 = vld [vmem:[%s6035 + $0x24] sm:$0xf]
        %v6046 = vld [vmem:[%s6035 + $0x28] sm:$0xf]
        %v6047 = vld [vmem:[%s6035 + $0x2c] sm:$0xf]
        %v6048 = vld [vmem:[%s6035 + $0x30] sm:$0xf]
        %v6049 = vld [vmem:[%s6035 + $0x34] sm:$0xf]
        %v6050 = vld [vmem:[%s6035 + $0x38] sm:$0xf]
        %v6051 = vld [vmem:[%s6035 + $0x3c] sm:$0xf]
        %v6052 = vld [vmem:[%s6035 + $0x40] sm:$0xf]
        %v6053 = vld [vmem:[%s6035 + $0x44] sm:$0xf]
        %v6054 = vld [vmem:[%s6035 + $0x48] sm:$0xf]
        %v6055 = vld [vmem:[%s6035 + $0x4c] sm:$0xf]
        %v6056 = vld [vmem:[%s6035 + $0x50] sm:$0xf]
        %v6057 = vld [vmem:[%s6035 + $0x54] sm:$0xf]
        %v6058 = vld [vmem:[%s6035 + $0x58] sm:$0xf]
        %v6059 = vld [vmem:[%s6035 + $0x5c] sm:$0xf]
        %v6060 = vld [vmem:[%s6035 + $0x60] sm:$0xf]
        %v6061 = vld [vmem:[%s6035 + $0x64] sm:$0xf]
        %v6062 = vld [vmem:[%s6035 + $0x68] sm:$0xf]
        %v6063 = vld [vmem:[%s6035 + $0x6c] sm:$0xf]
        %v6064 = vld [vmem:[%s6035 + $0x70] sm:$0xf]
        %v6065 = vld [vmem:[%s6035 + $0x74] sm:$0xf]
        %v6066 = vld [vmem:[%s6035 + $0x78] sm:$0xf]
        %v6067 = vld [vmem:[%s6035 + $0x7c] sm:$0xf]
        %v6068 = vld [vmem:[%s6035 + $0x80] sm:$0xf]
        %v6069 = vld [vmem:[%s6035 + $0x84] sm:$0xf]
        %v6070 = vld [vmem:[%s6035 + $0x88] sm:$0xf]
        %v6071 = vld [vmem:[%s6035 + $0x8c] sm:$0xf]
        %v6072 = vld [vmem:[%s6035 + $0x90] sm:$0xf]
        %v6073 = vld [vmem:[%s6035 + $0x94] sm:$0xf]
        %v6074 = vld [vmem:[%s6035 + $0x98] sm:$0xf]
        %v6075 = vld [vmem:[%s6035 + $0x9c] sm:$0xf]
        %v6076 = vld [vmem:[%s6035 + $0xa0] sm:$0xf]
        %v6077 = vld [vmem:[%s6035 + $0xa4] sm:$0xf]
        %v6078 = vld [vmem:[%s6035 + $0xa8] sm:$0xf]
        %v6079 = vld [vmem:[%s6035 + $0xac] sm:$0xf]
        %v6080 = vld [vmem:[%s6035 + $0xb0] sm:$0xf]
        %v6081 = vld [vmem:[%s6035 + $0xb4] sm:$0xf]
        %v6082 = vld [vmem:[%s6035 + $0xb8] sm:$0xf]
        %v6083 = vld [vmem:[%s6035 + $0xbc] sm:$0xf]
        %v6084 = vld [vmem:[%s6035 + $0xc0] sm:$0xf]
        %v6085 = vld [vmem:[%s6035 + $0xc4] sm:$0xf]
        %v6086 = vld [vmem:[%s6035 + $0xc8] sm:$0xf]
        %v6087 = vld [vmem:[%s6035 + $0xcc] sm:$0xf]
        %v6088 = vld [vmem:[%s6035 + $0xd0] sm:$0xf]
        %v6089 = vld [vmem:[%s6035 + $0xd4] sm:$0xf]
        %v6090 = vld [vmem:[%s6035 + $0xd8] sm:$0xf]
        %v6091 = vld [vmem:[%s6035 + $0xdc] sm:$0xf]
        %v6092 = vld [vmem:[%s6035 + $0xe0] sm:$0xf]
        %v6093 = vld [vmem:[%s6035 + $0xe4] sm:$0xf]
        %v6094 = vld [vmem:[%s6035 + $0xe8] sm:$0xf]
        %v6095 = vld [vmem:[%s6035 + $0xec] sm:$0xf]
        %v6096 = vld [vmem:[%s6035 + $0xf0] sm:$0xf]
        %v6097 = vld [vmem:[%s6035 + $0xf4] sm:$0xf]
        %v6098 = vld [vmem:[%s6035 + $0xf8] sm:$0xf]
        %v6099 = vld [vmem:[%s6035 + $0xfc] sm:$0xf]
        %v6100 = vrot.slane %v5782, 2
        %v6101 = vrot.slane %v5783, 2
        %v6102 = vrot.slane %v5784, 2
        %v6103 = vrot.slane %v5785, 2
        %v6172 = vunpack.c.l.b16 %v6036
        %v6173 = vunpack.c.l.b16 %v6037
        %v6174 = vunpack.c.l.b16 %v6038
        %v6175 = vunpack.c.l.b16 %v6039
        %v6176 = vunpack.c.l.b16 %v6040
        %v6177 = vunpack.c.l.b16 %v6041
        %v6178 = vunpack.c.l.b16 %v6042
        %v6179 = vunpack.c.l.b16 %v6043
        %v6180 = vunpack.c.l.b16 %v6044
        %v6181 = vunpack.c.l.b16 %v6045
        %v6182 = vunpack.c.l.b16 %v6046
        %v6183 = vunpack.c.l.b16 %v6047
        %v6184 = vunpack.c.l.b16 %v6048
        %v6185 = vunpack.c.l.b16 %v6049
        %v6186 = vunpack.c.l.b16 %v6050
        %v6187 = vunpack.c.l.b16 %v6051
        %v6188 = vunpack.c.l.b16 %v6052
        %v6189 = vunpack.c.l.b16 %v6053
        %v6190 = vunpack.c.l.b16 %v6054
        %v6191 = vunpack.c.l.b16 %v6055
        %v6192 = vunpack.c.l.b16 %v6056
        %v6193 = vunpack.c.l.b16 %v6057
        %v6194 = vunpack.c.l.b16 %v6058
        %v6195 = vunpack.c.l.b16 %v6059
        %v6196 = vunpack.c.l.b16 %v6060
        %v6197 = vunpack.c.l.b16 %v6061
        %v6198 = vunpack.c.l.b16 %v6062
        %v6199 = vunpack.c.l.b16 %v6063
        %v6200 = vunpack.c.l.b16 %v6064
        %v6201 = vunpack.c.l.b16 %v6065
        %v6202 = vunpack.c.l.b16 %v6066
        %v6203 = vunpack.c.l.b16 %v6067
        %v6204 = vunpack.c.l.b16 %v6068
        %v6205 = vunpack.c.l.b16 %v6069
        %v6206 = vunpack.c.l.b16 %v6070
        %v6207 = vunpack.c.l.b16 %v6071
        %v6208 = vunpack.c.l.b16 %v6072
        %v6209 = vunpack.c.l.b16 %v6073
        %v6210 = vunpack.c.l.b16 %v6074
        %v6211 = vunpack.c.l.b16 %v6075
        %v6212 = vunpack.c.l.b16 %v6076
        %v6213 = vunpack.c.l.b16 %v6077
        %v6214 = vunpack.c.l.b16 %v6078
        %v6215 = vunpack.c.l.b16 %v6079
        %v6216 = vunpack.c.l.b16 %v6080
        %v6217 = vunpack.c.l.b16 %v6081
        %v6218 = vunpack.c.l.b16 %v6082
        %v6219 = vunpack.c.l.b16 %v6083
        %v6220 = vunpack.c.l.b16 %v6084
        %v6221 = vunpack.c.l.b16 %v6085
        %v6222 = vunpack.c.l.b16 %v6086
        %v6223 = vunpack.c.l.b16 %v6087
        %v6224 = vunpack.c.l.b16 %v6088
        %v6225 = vunpack.c.l.b16 %v6089
        %v6226 = vunpack.c.l.b16 %v6090
        %v6227 = vunpack.c.l.b16 %v6091
        %v6228 = vunpack.c.l.b16 %v6092
        %v6229 = vunpack.c.l.b16 %v6093
        %v6230 = vunpack.c.l.b16 %v6094
        %v6231 = vunpack.c.l.b16 %v6095
        %v6232 = vunpack.c.l.b16 %v6096
        %v6233 = vunpack.c.l.b16 %v6097
        %v6234 = vunpack.c.l.b16 %v6098
        %v6235 = vunpack.c.l.b16 %v6099
        %v6236 = vpack.c.b16 %v6173, %v6172
        %v6237 = vpack.c.b16 %v6175, %v6174
        %v6238 = vpack.c.b16 %v6177, %v6176
        %v6239 = vpack.c.b16 %v6179, %v6178
        %v6240 = vpack.c.b16 %v6181, %v6180
        %v6241 = vpack.c.b16 %v6183, %v6182
        %v6242 = vpack.c.b16 %v6185, %v6184
        %v6243 = vpack.c.b16 %v6187, %v6186
        %v6244 = vpack.c.b16 %v6189, %v6188
        %v6245 = vpack.c.b16 %v6191, %v6190
        %v6246 = vpack.c.b16 %v6193, %v6192
        %v6247 = vpack.c.b16 %v6195, %v6194
        %v6248 = vpack.c.b16 %v6197, %v6196
        %v6249 = vpack.c.b16 %v6199, %v6198
        %v6250 = vpack.c.b16 %v6201, %v6200
        %v6251 = vpack.c.b16 %v6203, %v6202
        %v6252 = vpack.c.b16 %v6205, %v6204
        %v6253 = vpack.c.b16 %v6207, %v6206
        %v6254 = vpack.c.b16 %v6209, %v6208
        %v6255 = vpack.c.b16 %v6211, %v6210
        %v6256 = vpack.c.b16 %v6213, %v6212
        %v6257 = vpack.c.b16 %v6215, %v6214
        %v6258 = vpack.c.b16 %v6217, %v6216
        %v6259 = vpack.c.b16 %v6219, %v6218
        %v6260 = vpack.c.b16 %v6221, %v6220
        %v6261 = vpack.c.b16 %v6223, %v6222
        %v6262 = vpack.c.b16 %v6225, %v6224
        %v6263 = vpack.c.b16 %v6227, %v6226
        %v6264 = vpack.c.b16 %v6229, %v6228
        %v6265 = vpack.c.b16 %v6231, %v6230
        %v6266 = vpack.c.b16 %v6233, %v6232
        %v6267 = vpack.c.b16 %v6235, %v6234
        %6300 = vmatpush.bf16.msra.mxu0 %v6243
        %6301 = vmatpush.bf16.msra.mxu0 %v6242
        %6302 = vmatpush.bf16.msra.mxu0 %v6241
        %6303 = vmatpush.bf16.msra.mxu0 %v6240
        %6304 = vmatpush.bf16.msra.mxu0 %v6239
        %6305 = vmatpush.bf16.msra.mxu0 %v6238
        %6306 = vmatpush.bf16.msra.mxu0 %v6237
        %6307 = vmatpush.bf16.msra.mxu0 %v6236
        %6308 = vmatmul.bf16.gmra.mxu0 %v6100
        %v6309 = vpop.f32.mrf.mxu0
        %v6310 = vadd.f32 0.0, %v6309
        %v6311 = vpop.f32.mrf.mxu0
        %6312 = vdwg.mxu0
        %6313 = vmatpush.bf16.msra.mxu0 %v6251
        %6314 = vmatpush.bf16.msra.mxu0 %v6250
        %6315 = vmatpush.bf16.msra.mxu0 %v6249
        %6316 = vmatpush.bf16.msra.mxu0 %v6248
        %6317 = vmatpush.bf16.msra.mxu0 %v6247
        %6318 = vmatpush.bf16.msra.mxu0 %v6246
        %6319 = vmatpush.bf16.msra.mxu0 %v6245
        %6320 = vmatpush.bf16.msra.mxu0 %v6244
        %6321 = vmatmul.bf16.gmra.mxu0 %v6101
        %v6322 = vpop.f32.mrf.mxu0
        %v6323 = vadd.f32 %v6310, %v6322
        %v6324 = vpop.f32.mrf.mxu0
        %6325 = vdwg.mxu0
        %6326 = vmatpush.bf16.msra.mxu0 %v6259
        %6327 = vmatpush.bf16.msra.mxu0 %v6258
        %6328 = vmatpush.bf16.msra.mxu0 %v6257
        %6329 = vmatpush.bf16.msra.mxu0 %v6256
        %6330 = vmatpush.bf16.msra.mxu0 %v6255
        %6331 = vmatpush.bf16.msra.mxu0 %v6254
        %6332 = vmatpush.bf16.msra.mxu0 %v6253
        %6333 = vmatpush.bf16.msra.mxu0 %v6252
        %6334 = vmatmul.bf16.gmra.mxu0 %v6102
        %v6335 = vpop.f32.mrf.mxu0
        %v6336 = vadd.f32 %v6323, %v6335
        %v6337 = vpop.f32.mrf.mxu0
        %6338 = vdwg.mxu0
        %6339 = vmatpush.bf16.msra.mxu0 %v6267
        %6340 = vmatpush.bf16.msra.mxu0 %v6266
        %6341 = vmatpush.bf16.msra.mxu0 %v6265
        %6342 = vmatpush.bf16.msra.mxu0 %v6264
        %6343 = vmatpush.bf16.msra.mxu0 %v6263
        %6344 = vmatpush.bf16.msra.mxu0 %v6262
        %6345 = vmatpush.bf16.msra.mxu0 %v6261
        %6346 = vmatpush.bf16.msra.mxu0 %v6260
        %6347 = vmatmul.bf16.gmra.mxu0 %v6103
        %v6348 = vpop.f32.mrf.mxu0
        %v6349 = vadd.f32 %v6336, %v6348
        %v6350 = vpop.f32.mrf.mxu0
        %6351 = vdwg.mxu0
        %v6352 = vadd.f32 %v6034, %v6349
        %s6353 = scalar_lea.vmem %s4, 3584
        %v6354 = vld [vmem:[%s6353] sm:$0xf]
        %v6355 = vld [vmem:[%s6353 + $0x4] sm:$0xf]
        %v6356 = vld [vmem:[%s6353 + $0x8] sm:$0xf]
        %v6357 = vld [vmem:[%s6353 + $0xc] sm:$0xf]
        %v6358 = vld [vmem:[%s6353 + $0x10] sm:$0xf]
        %v6359 = vld [vmem:[%s6353 + $0x14] sm:$0xf]
        %v6360 = vld [vmem:[%s6353 + $0x18] sm:$0xf]
        %v6361 = vld [vmem:[%s6353 + $0x1c] sm:$0xf]
        %v6362 = vld [vmem:[%s6353 + $0x20] sm:$0xf]
        %v6363 = vld [vmem:[%s6353 + $0x24] sm:$0xf]
        %v6364 = vld [vmem:[%s6353 + $0x28] sm:$0xf]
        %v6365 = vld [vmem:[%s6353 + $0x2c] sm:$0xf]
        %v6366 = vld [vmem:[%s6353 + $0x30] sm:$0xf]
        %v6367 = vld [vmem:[%s6353 + $0x34] sm:$0xf]
        %v6368 = vld [vmem:[%s6353 + $0x38] sm:$0xf]
        %v6369 = vld [vmem:[%s6353 + $0x3c] sm:$0xf]
        %v6370 = vld [vmem:[%s6353 + $0x40] sm:$0xf]
        %v6371 = vld [vmem:[%s6353 + $0x44] sm:$0xf]
        %v6372 = vld [vmem:[%s6353 + $0x48] sm:$0xf]
        %v6373 = vld [vmem:[%s6353 + $0x4c] sm:$0xf]
        %v6374 = vld [vmem:[%s6353 + $0x50] sm:$0xf]
        %v6375 = vld [vmem:[%s6353 + $0x54] sm:$0xf]
        %v6376 = vld [vmem:[%s6353 + $0x58] sm:$0xf]
        %v6377 = vld [vmem:[%s6353 + $0x5c] sm:$0xf]
        %v6378 = vld [vmem:[%s6353 + $0x60] sm:$0xf]
        %v6379 = vld [vmem:[%s6353 + $0x64] sm:$0xf]
        %v6380 = vld [vmem:[%s6353 + $0x68] sm:$0xf]
        %v6381 = vld [vmem:[%s6353 + $0x6c] sm:$0xf]
        %v6382 = vld [vmem:[%s6353 + $0x70] sm:$0xf]
        %v6383 = vld [vmem:[%s6353 + $0x74] sm:$0xf]
        %v6384 = vld [vmem:[%s6353 + $0x78] sm:$0xf]
        %v6385 = vld [vmem:[%s6353 + $0x7c] sm:$0xf]
        %v6386 = vld [vmem:[%s6353 + $0x80] sm:$0xf]
        %v6387 = vld [vmem:[%s6353 + $0x84] sm:$0xf]
        %v6388 = vld [vmem:[%s6353 + $0x88] sm:$0xf]
        %v6389 = vld [vmem:[%s6353 + $0x8c] sm:$0xf]
        %v6390 = vld [vmem:[%s6353 + $0x90] sm:$0xf]
        %v6391 = vld [vmem:[%s6353 + $0x94] sm:$0xf]
        %v6392 = vld [vmem:[%s6353 + $0x98] sm:$0xf]
        %v6393 = vld [vmem:[%s6353 + $0x9c] sm:$0xf]
        %v6394 = vld [vmem:[%s6353 + $0xa0] sm:$0xf]
        %v6395 = vld [vmem:[%s6353 + $0xa4] sm:$0xf]
        %v6396 = vld [vmem:[%s6353 + $0xa8] sm:$0xf]
        %v6397 = vld [vmem:[%s6353 + $0xac] sm:$0xf]
        %v6398 = vld [vmem:[%s6353 + $0xb0] sm:$0xf]
        %v6399 = vld [vmem:[%s6353 + $0xb4] sm:$0xf]
        %v6400 = vld [vmem:[%s6353 + $0xb8] sm:$0xf]
        %v6401 = vld [vmem:[%s6353 + $0xbc] sm:$0xf]
        %v6402 = vld [vmem:[%s6353 + $0xc0] sm:$0xf]
        %v6403 = vld [vmem:[%s6353 + $0xc4] sm:$0xf]
        %v6404 = vld [vmem:[%s6353 + $0xc8] sm:$0xf]
        %v6405 = vld [vmem:[%s6353 + $0xcc] sm:$0xf]
        %v6406 = vld [vmem:[%s6353 + $0xd0] sm:$0xf]
        %v6407 = vld [vmem:[%s6353 + $0xd4] sm:$0xf]
        %v6408 = vld [vmem:[%s6353 + $0xd8] sm:$0xf]
        %v6409 = vld [vmem:[%s6353 + $0xdc] sm:$0xf]
        %v6410 = vld [vmem:[%s6353 + $0xe0] sm:$0xf]
        %v6411 = vld [vmem:[%s6353 + $0xe4] sm:$0xf]
        %v6412 = vld [vmem:[%s6353 + $0xe8] sm:$0xf]
        %v6413 = vld [vmem:[%s6353 + $0xec] sm:$0xf]
        %v6414 = vld [vmem:[%s6353 + $0xf0] sm:$0xf]
        %v6415 = vld [vmem:[%s6353 + $0xf4] sm:$0xf]
        %v6416 = vld [vmem:[%s6353 + $0xf8] sm:$0xf]
        %v6417 = vld [vmem:[%s6353 + $0xfc] sm:$0xf]
        %v6420 = vunpack.c.l.b16 %v1860
        %v6421 = vunpack.c.h.b16 %v1860
        %v6422 = vunpack.c.l.b16 %v1861
        %v6423 = vunpack.c.h.b16 %v1861
        %v6424 = vpack.c.b16 %v6420, %v6420
        %v6425 = vpack.c.b16 %v6421, %v6421
        %v6426 = vpack.c.b16 %v6422, %v6422
        %v6427 = vpack.c.b16 %v6423, %v6423
        %v6496 = vunpack.c.l.b16 %v6354
        %v6497 = vunpack.c.l.b16 %v6355
        %v6498 = vunpack.c.l.b16 %v6356
        %v6499 = vunpack.c.l.b16 %v6357
        %v6500 = vunpack.c.l.b16 %v6358
        %v6501 = vunpack.c.l.b16 %v6359
        %v6502 = vunpack.c.l.b16 %v6360
        %v6503 = vunpack.c.l.b16 %v6361
        %v6504 = vunpack.c.l.b16 %v6362
        %v6505 = vunpack.c.l.b16 %v6363
        %v6506 = vunpack.c.l.b16 %v6364
        %v6507 = vunpack.c.l.b16 %v6365
        %v6508 = vunpack.c.l.b16 %v6366
        %v6509 = vunpack.c.l.b16 %v6367
        %v6510 = vunpack.c.l.b16 %v6368
        %v6511 = vunpack.c.l.b16 %v6369
        %v6512 = vunpack.c.l.b16 %v6370
        %v6513 = vunpack.c.l.b16 %v6371
        %v6514 = vunpack.c.l.b16 %v6372
        %v6515 = vunpack.c.l.b16 %v6373
        %v6516 = vunpack.c.l.b16 %v6374
        %v6517 = vunpack.c.l.b16 %v6375
        %v6518 = vunpack.c.l.b16 %v6376
        %v6519 = vunpack.c.l.b16 %v6377
        %v6520 = vunpack.c.l.b16 %v6378
        %v6521 = vunpack.c.l.b16 %v6379
        %v6522 = vunpack.c.l.b16 %v6380
        %v6523 = vunpack.c.l.b16 %v6381
        %v6524 = vunpack.c.l.b16 %v6382
        %v6525 = vunpack.c.l.b16 %v6383
        %v6526 = vunpack.c.l.b16 %v6384
        %v6527 = vunpack.c.l.b16 %v6385
        %v6528 = vunpack.c.l.b16 %v6386
        %v6529 = vunpack.c.l.b16 %v6387
        %v6530 = vunpack.c.l.b16 %v6388
        %v6531 = vunpack.c.l.b16 %v6389
        %v6532 = vunpack.c.l.b16 %v6390
        %v6533 = vunpack.c.l.b16 %v6391
        %v6534 = vunpack.c.l.b16 %v6392
        %v6535 = vunpack.c.l.b16 %v6393
        %v6536 = vunpack.c.l.b16 %v6394
        %v6537 = vunpack.c.l.b16 %v6395
        %v6538 = vunpack.c.l.b16 %v6396
        %v6539 = vunpack.c.l.b16 %v6397
        %v6540 = vunpack.c.l.b16 %v6398
        %v6541 = vunpack.c.l.b16 %v6399
        %v6542 = vunpack.c.l.b16 %v6400
        %v6543 = vunpack.c.l.b16 %v6401
        %v6544 = vunpack.c.l.b16 %v6402
        %v6545 = vunpack.c.l.b16 %v6403
        %v6546 = vunpack.c.l.b16 %v6404
        %v6547 = vunpack.c.l.b16 %v6405
        %v6548 = vunpack.c.l.b16 %v6406
        %v6549 = vunpack.c.l.b16 %v6407
        %v6550 = vunpack.c.l.b16 %v6408
        %v6551 = vunpack.c.l.b16 %v6409
        %v6552 = vunpack.c.l.b16 %v6410
        %v6553 = vunpack.c.l.b16 %v6411
        %v6554 = vunpack.c.l.b16 %v6412
        %v6555 = vunpack.c.l.b16 %v6413
        %v6556 = vunpack.c.l.b16 %v6414
        %v6557 = vunpack.c.l.b16 %v6415
        %v6558 = vunpack.c.l.b16 %v6416
        %v6559 = vunpack.c.l.b16 %v6417
        %v6560 = vpack.c.b16 %v6497, %v6496
        %v6561 = vpack.c.b16 %v6499, %v6498
        %v6562 = vpack.c.b16 %v6501, %v6500
        %v6563 = vpack.c.b16 %v6503, %v6502
        %v6564 = vpack.c.b16 %v6505, %v6504
        %v6565 = vpack.c.b16 %v6507, %v6506
        %v6566 = vpack.c.b16 %v6509, %v6508
        %v6567 = vpack.c.b16 %v6511, %v6510
        %v6568 = vpack.c.b16 %v6513, %v6512
        %v6569 = vpack.c.b16 %v6515, %v6514
        %v6570 = vpack.c.b16 %v6517, %v6516
        %v6571 = vpack.c.b16 %v6519, %v6518
        %v6572 = vpack.c.b16 %v6521, %v6520
        %v6573 = vpack.c.b16 %v6523, %v6522
        %v6574 = vpack.c.b16 %v6525, %v6524
        %v6575 = vpack.c.b16 %v6527, %v6526
        %v6576 = vpack.c.b16 %v6529, %v6528
        %v6577 = vpack.c.b16 %v6531, %v6530
        %v6578 = vpack.c.b16 %v6533, %v6532
        %v6579 = vpack.c.b16 %v6535, %v6534
        %v6580 = vpack.c.b16 %v6537, %v6536
        %v6581 = vpack.c.b16 %v6539, %v6538
        %v6582 = vpack.c.b16 %v6541, %v6540
        %v6583 = vpack.c.b16 %v6543, %v6542
        %v6584 = vpack.c.b16 %v6545, %v6544
        %v6585 = vpack.c.b16 %v6547, %v6546
        %v6586 = vpack.c.b16 %v6549, %v6548
        %v6587 = vpack.c.b16 %v6551, %v6550
        %v6588 = vpack.c.b16 %v6553, %v6552
        %v6589 = vpack.c.b16 %v6555, %v6554
        %v6590 = vpack.c.b16 %v6557, %v6556
        %v6591 = vpack.c.b16 %v6559, %v6558
        %6624 = vmatpush.bf16.msra.mxu0 %v6567
        %6625 = vmatpush.bf16.msra.mxu0 %v6566
        %6626 = vmatpush.bf16.msra.mxu0 %v6565
        %6627 = vmatpush.bf16.msra.mxu0 %v6564
        %6628 = vmatpush.bf16.msra.mxu0 %v6563
        %6629 = vmatpush.bf16.msra.mxu0 %v6562
        %6630 = vmatpush.bf16.msra.mxu0 %v6561
        %6631 = vmatpush.bf16.msra.mxu0 %v6560
        %6632 = vmatmul.bf16.gmra.mxu0 %v6424
        %v6633 = vpop.f32.mrf.mxu0
        %v6634 = vadd.f32 0.0, %v6633
        %v6635 = vpop.f32.mrf.mxu0
        %6636 = vdwg.mxu0
        %6637 = vmatpush.bf16.msra.mxu0 %v6575
        %6638 = vmatpush.bf16.msra.mxu0 %v6574
        %6639 = vmatpush.bf16.msra.mxu0 %v6573
        %6640 = vmatpush.bf16.msra.mxu0 %v6572
        %6641 = vmatpush.bf16.msra.mxu0 %v6571
        %6642 = vmatpush.bf16.msra.mxu0 %v6570
        %6643 = vmatpush.bf16.msra.mxu0 %v6569
        %6644 = vmatpush.bf16.msra.mxu0 %v6568
        %6645 = vmatmul.bf16.gmra.mxu0 %v6425
        %v6646 = vpop.f32.mrf.mxu0
        %v6647 = vadd.f32 %v6634, %v6646
        %v6648 = vpop.f32.mrf.mxu0
        %6649 = vdwg.mxu0
        %6650 = vmatpush.bf16.msra.mxu0 %v6583
        %6651 = vmatpush.bf16.msra.mxu0 %v6582
        %6652 = vmatpush.bf16.msra.mxu0 %v6581
        %6653 = vmatpush.bf16.msra.mxu0 %v6580
        %6654 = vmatpush.bf16.msra.mxu0 %v6579
        %6655 = vmatpush.bf16.msra.mxu0 %v6578
        %6656 = vmatpush.bf16.msra.mxu0 %v6577
        %6657 = vmatpush.bf16.msra.mxu0 %v6576
        %6658 = vmatmul.bf16.gmra.mxu0 %v6426
        %v6659 = vpop.f32.mrf.mxu0
        %v6660 = vadd.f32 %v6647, %v6659
        %v6661 = vpop.f32.mrf.mxu0
        %6662 = vdwg.mxu0
        %6663 = vmatpush.bf16.msra.mxu0 %v6591
        %6664 = vmatpush.bf16.msra.mxu0 %v6590
        %6665 = vmatpush.bf16.msra.mxu0 %v6589
        %6666 = vmatpush.bf16.msra.mxu0 %v6588
        %6667 = vmatpush.bf16.msra.mxu0 %v6587
        %6668 = vmatpush.bf16.msra.mxu0 %v6586
        %6669 = vmatpush.bf16.msra.mxu0 %v6585
        %6670 = vmatpush.bf16.msra.mxu0 %v6584
        %6671 = vmatmul.bf16.gmra.mxu0 %v6427
        %v6672 = vpop.f32.mrf.mxu0
        %v6673 = vadd.f32 %v6660, %v6672
        %v6674 = vpop.f32.mrf.mxu0
        %6675 = vdwg.mxu0
        %v6676 = vadd.f32 %v6352, %v6673
        %s6677 = scalar_lea.vmem %s4, 3840
        %v6678 = vld [vmem:[%s6677] sm:$0xf]
        %v6679 = vld [vmem:[%s6677 + $0x4] sm:$0xf]
        %v6680 = vld [vmem:[%s6677 + $0x8] sm:$0xf]
        %v6681 = vld [vmem:[%s6677 + $0xc] sm:$0xf]
        %v6682 = vld [vmem:[%s6677 + $0x10] sm:$0xf]
        %v6683 = vld [vmem:[%s6677 + $0x14] sm:$0xf]
        %v6684 = vld [vmem:[%s6677 + $0x18] sm:$0xf]
        %v6685 = vld [vmem:[%s6677 + $0x1c] sm:$0xf]
        %v6686 = vld [vmem:[%s6677 + $0x20] sm:$0xf]
        %v6687 = vld [vmem:[%s6677 + $0x24] sm:$0xf]
        %v6688 = vld [vmem:[%s6677 + $0x28] sm:$0xf]
        %v6689 = vld [vmem:[%s6677 + $0x2c] sm:$0xf]
        %v6690 = vld [vmem:[%s6677 + $0x30] sm:$0xf]
        %v6691 = vld [vmem:[%s6677 + $0x34] sm:$0xf]
        %v6692 = vld [vmem:[%s6677 + $0x38] sm:$0xf]
        %v6693 = vld [vmem:[%s6677 + $0x3c] sm:$0xf]
        %v6694 = vld [vmem:[%s6677 + $0x40] sm:$0xf]
        %v6695 = vld [vmem:[%s6677 + $0x44] sm:$0xf]
        %v6696 = vld [vmem:[%s6677 + $0x48] sm:$0xf]
        %v6697 = vld [vmem:[%s6677 + $0x4c] sm:$0xf]
        %v6698 = vld [vmem:[%s6677 + $0x50] sm:$0xf]
        %v6699 = vld [vmem:[%s6677 + $0x54] sm:$0xf]
        %v6700 = vld [vmem:[%s6677 + $0x58] sm:$0xf]
        %v6701 = vld [vmem:[%s6677 + $0x5c] sm:$0xf]
        %v6702 = vld [vmem:[%s6677 + $0x60] sm:$0xf]
        %v6703 = vld [vmem:[%s6677 + $0x64] sm:$0xf]
        %v6704 = vld [vmem:[%s6677 + $0x68] sm:$0xf]
        %v6705 = vld [vmem:[%s6677 + $0x6c] sm:$0xf]
        %v6706 = vld [vmem:[%s6677 + $0x70] sm:$0xf]
        %v6707 = vld [vmem:[%s6677 + $0x74] sm:$0xf]
        %v6708 = vld [vmem:[%s6677 + $0x78] sm:$0xf]
        %v6709 = vld [vmem:[%s6677 + $0x7c] sm:$0xf]
        %v6710 = vld [vmem:[%s6677 + $0x80] sm:$0xf]
        %v6711 = vld [vmem:[%s6677 + $0x84] sm:$0xf]
        %v6712 = vld [vmem:[%s6677 + $0x88] sm:$0xf]
        %v6713 = vld [vmem:[%s6677 + $0x8c] sm:$0xf]
        %v6714 = vld [vmem:[%s6677 + $0x90] sm:$0xf]
        %v6715 = vld [vmem:[%s6677 + $0x94] sm:$0xf]
        %v6716 = vld [vmem:[%s6677 + $0x98] sm:$0xf]
        %v6717 = vld [vmem:[%s6677 + $0x9c] sm:$0xf]
        %v6718 = vld [vmem:[%s6677 + $0xa0] sm:$0xf]
        %v6719 = vld [vmem:[%s6677 + $0xa4] sm:$0xf]
        %v6720 = vld [vmem:[%s6677 + $0xa8] sm:$0xf]
        %v6721 = vld [vmem:[%s6677 + $0xac] sm:$0xf]
        %v6722 = vld [vmem:[%s6677 + $0xb0] sm:$0xf]
        %v6723 = vld [vmem:[%s6677 + $0xb4] sm:$0xf]
        %v6724 = vld [vmem:[%s6677 + $0xb8] sm:$0xf]
        %v6725 = vld [vmem:[%s6677 + $0xbc] sm:$0xf]
        %v6726 = vld [vmem:[%s6677 + $0xc0] sm:$0xf]
        %v6727 = vld [vmem:[%s6677 + $0xc4] sm:$0xf]
        %v6728 = vld [vmem:[%s6677 + $0xc8] sm:$0xf]
        %v6729 = vld [vmem:[%s6677 + $0xcc] sm:$0xf]
        %v6730 = vld [vmem:[%s6677 + $0xd0] sm:$0xf]
        %v6731 = vld [vmem:[%s6677 + $0xd4] sm:$0xf]
        %v6732 = vld [vmem:[%s6677 + $0xd8] sm:$0xf]
        %v6733 = vld [vmem:[%s6677 + $0xdc] sm:$0xf]
        %v6734 = vld [vmem:[%s6677 + $0xe0] sm:$0xf]
        %v6735 = vld [vmem:[%s6677 + $0xe4] sm:$0xf]
        %v6736 = vld [vmem:[%s6677 + $0xe8] sm:$0xf]
        %v6737 = vld [vmem:[%s6677 + $0xec] sm:$0xf]
        %v6738 = vld [vmem:[%s6677 + $0xf0] sm:$0xf]
        %v6739 = vld [vmem:[%s6677 + $0xf4] sm:$0xf]
        %v6740 = vld [vmem:[%s6677 + $0xf8] sm:$0xf]
        %v6741 = vld [vmem:[%s6677 + $0xfc] sm:$0xf]
        %v6742 = vrot.slane %v6424, 2
        %v6743 = vrot.slane %v6425, 2
        %v6744 = vrot.slane %v6426, 2
        %v6745 = vrot.slane %v6427, 2
        %v6814 = vunpack.c.l.b16 %v6678
        %v6815 = vunpack.c.l.b16 %v6679
        %v6816 = vunpack.c.l.b16 %v6680
        %v6817 = vunpack.c.l.b16 %v6681
        %v6818 = vunpack.c.l.b16 %v6682
        %v6819 = vunpack.c.l.b16 %v6683
        %v6820 = vunpack.c.l.b16 %v6684
        %v6821 = vunpack.c.l.b16 %v6685
        %v6822 = vunpack.c.l.b16 %v6686
        %v6823 = vunpack.c.l.b16 %v6687
        %v6824 = vunpack.c.l.b16 %v6688
        %v6825 = vunpack.c.l.b16 %v6689
        %v6826 = vunpack.c.l.b16 %v6690
        %v6827 = vunpack.c.l.b16 %v6691
        %v6828 = vunpack.c.l.b16 %v6692
        %v6829 = vunpack.c.l.b16 %v6693
        %v6830 = vunpack.c.l.b16 %v6694
        %v6831 = vunpack.c.l.b16 %v6695
        %v6832 = vunpack.c.l.b16 %v6696
        %v6833 = vunpack.c.l.b16 %v6697
        %v6834 = vunpack.c.l.b16 %v6698
        %v6835 = vunpack.c.l.b16 %v6699
        %v6836 = vunpack.c.l.b16 %v6700
        %v6837 = vunpack.c.l.b16 %v6701
        %v6838 = vunpack.c.l.b16 %v6702
        %v6839 = vunpack.c.l.b16 %v6703
        %v6840 = vunpack.c.l.b16 %v6704
        %v6841 = vunpack.c.l.b16 %v6705
        %v6842 = vunpack.c.l.b16 %v6706
        %v6843 = vunpack.c.l.b16 %v6707
        %v6844 = vunpack.c.l.b16 %v6708
        %v6845 = vunpack.c.l.b16 %v6709
        %v6846 = vunpack.c.l.b16 %v6710
        %v6847 = vunpack.c.l.b16 %v6711
        %v6848 = vunpack.c.l.b16 %v6712
        %v6849 = vunpack.c.l.b16 %v6713
        %v6850 = vunpack.c.l.b16 %v6714
        %v6851 = vunpack.c.l.b16 %v6715
        %v6852 = vunpack.c.l.b16 %v6716
        %v6853 = vunpack.c.l.b16 %v6717
        %v6854 = vunpack.c.l.b16 %v6718
        %v6855 = vunpack.c.l.b16 %v6719
        %v6856 = vunpack.c.l.b16 %v6720
        %v6857 = vunpack.c.l.b16 %v6721
        %v6858 = vunpack.c.l.b16 %v6722
        %v6859 = vunpack.c.l.b16 %v6723
        %v6860 = vunpack.c.l.b16 %v6724
        %v6861 = vunpack.c.l.b16 %v6725
        %v6862 = vunpack.c.l.b16 %v6726
        %v6863 = vunpack.c.l.b16 %v6727
        %v6864 = vunpack.c.l.b16 %v6728
        %v6865 = vunpack.c.l.b16 %v6729
        %v6866 = vunpack.c.l.b16 %v6730
        %v6867 = vunpack.c.l.b16 %v6731
        %v6868 = vunpack.c.l.b16 %v6732
        %v6869 = vunpack.c.l.b16 %v6733
        %v6870 = vunpack.c.l.b16 %v6734
        %v6871 = vunpack.c.l.b16 %v6735
        %v6872 = vunpack.c.l.b16 %v6736
        %v6873 = vunpack.c.l.b16 %v6737
        %v6874 = vunpack.c.l.b16 %v6738
        %v6875 = vunpack.c.l.b16 %v6739
        %v6876 = vunpack.c.l.b16 %v6740
        %v6877 = vunpack.c.l.b16 %v6741
        %v6878 = vpack.c.b16 %v6815, %v6814
        %v6879 = vpack.c.b16 %v6817, %v6816
        %v6880 = vpack.c.b16 %v6819, %v6818
        %v6881 = vpack.c.b16 %v6821, %v6820
        %v6882 = vpack.c.b16 %v6823, %v6822
        %v6883 = vpack.c.b16 %v6825, %v6824
        %v6884 = vpack.c.b16 %v6827, %v6826
        %v6885 = vpack.c.b16 %v6829, %v6828
        %v6886 = vpack.c.b16 %v6831, %v6830
        %v6887 = vpack.c.b16 %v6833, %v6832
        %v6888 = vpack.c.b16 %v6835, %v6834
        %v6889 = vpack.c.b16 %v6837, %v6836
        %v6890 = vpack.c.b16 %v6839, %v6838
        %v6891 = vpack.c.b16 %v6841, %v6840
        %v6892 = vpack.c.b16 %v6843, %v6842
        %v6893 = vpack.c.b16 %v6845, %v6844
        %v6894 = vpack.c.b16 %v6847, %v6846
        %v6895 = vpack.c.b16 %v6849, %v6848
        %v6896 = vpack.c.b16 %v6851, %v6850
        %v6897 = vpack.c.b16 %v6853, %v6852
        %v6898 = vpack.c.b16 %v6855, %v6854
        %v6899 = vpack.c.b16 %v6857, %v6856
        %v6900 = vpack.c.b16 %v6859, %v6858
        %v6901 = vpack.c.b16 %v6861, %v6860
        %v6902 = vpack.c.b16 %v6863, %v6862
        %v6903 = vpack.c.b16 %v6865, %v6864
        %v6904 = vpack.c.b16 %v6867, %v6866
        %v6905 = vpack.c.b16 %v6869, %v6868
        %v6906 = vpack.c.b16 %v6871, %v6870
        %v6907 = vpack.c.b16 %v6873, %v6872
        %v6908 = vpack.c.b16 %v6875, %v6874
        %v6909 = vpack.c.b16 %v6877, %v6876
        %6942 = vmatpush.bf16.msra.mxu0 %v6885
        %6943 = vmatpush.bf16.msra.mxu0 %v6884
        %6944 = vmatpush.bf16.msra.mxu0 %v6883
        %6945 = vmatpush.bf16.msra.mxu0 %v6882
        %6946 = vmatpush.bf16.msra.mxu0 %v6881
        %6947 = vmatpush.bf16.msra.mxu0 %v6880
        %6948 = vmatpush.bf16.msra.mxu0 %v6879
        %6949 = vmatpush.bf16.msra.mxu0 %v6878
        %6950 = vmatmul.bf16.gmra.mxu0 %v6742
        %v6951 = vpop.f32.mrf.mxu0
        %v6952 = vadd.f32 0.0, %v6951
        %v6953 = vpop.f32.mrf.mxu0
        %6954 = vdwg.mxu0
        %6955 = vmatpush.bf16.msra.mxu0 %v6893
        %6956 = vmatpush.bf16.msra.mxu0 %v6892
        %6957 = vmatpush.bf16.msra.mxu0 %v6891
        %6958 = vmatpush.bf16.msra.mxu0 %v6890
        %6959 = vmatpush.bf16.msra.mxu0 %v6889
        %6960 = vmatpush.bf16.msra.mxu0 %v6888
        %6961 = vmatpush.bf16.msra.mxu0 %v6887
        %6962 = vmatpush.bf16.msra.mxu0 %v6886
        %6963 = vmatmul.bf16.gmra.mxu0 %v6743
        %v6964 = vpop.f32.mrf.mxu0
        %v6965 = vadd.f32 %v6952, %v6964
        %v6966 = vpop.f32.mrf.mxu0
        %6967 = vdwg.mxu0
        %6968 = vmatpush.bf16.msra.mxu0 %v6901
        %6969 = vmatpush.bf16.msra.mxu0 %v6900
        %6970 = vmatpush.bf16.msra.mxu0 %v6899
        %6971 = vmatpush.bf16.msra.mxu0 %v6898
        %6972 = vmatpush.bf16.msra.mxu0 %v6897
        %6973 = vmatpush.bf16.msra.mxu0 %v6896
        %6974 = vmatpush.bf16.msra.mxu0 %v6895
        %6975 = vmatpush.bf16.msra.mxu0 %v6894
        %6976 = vmatmul.bf16.gmra.mxu0 %v6744
        %v6977 = vpop.f32.mrf.mxu0
        %v6978 = vadd.f32 %v6965, %v6977
        %v6979 = vpop.f32.mrf.mxu0
        %6980 = vdwg.mxu0
        %6981 = vmatpush.bf16.msra.mxu0 %v6909
        %6982 = vmatpush.bf16.msra.mxu0 %v6908
        %6983 = vmatpush.bf16.msra.mxu0 %v6907
        %6984 = vmatpush.bf16.msra.mxu0 %v6906
        %6985 = vmatpush.bf16.msra.mxu0 %v6905
        %6986 = vmatpush.bf16.msra.mxu0 %v6904
        %6987 = vmatpush.bf16.msra.mxu0 %v6903
        %6988 = vmatpush.bf16.msra.mxu0 %v6902
        %6989 = vmatmul.bf16.gmra.mxu0 %v6745
        %v6990 = vpop.f32.mrf.mxu0
        %v6991 = vadd.f32 %v6978, %v6990
        %v6992 = vpop.f32.mrf.mxu0
        %6993 = vdwg.mxu0
        %v6994 = vadd.f32 %v6676, %v6991
        %v6995 = vld [vmem:[%s5] sm:$0x1]
        %v6997 = vperm.slane %v6995, 0
        %v6999 = vadd.f32 %v6994, %v6997
        %v7000 = vmax.f32 %v6999, 0.0
        %v7001 = vpack.c.bf16 %v7000, %v7000
        %v7002 = vld [vmem:[%s6] sm:$0xf]
        %v7003 = vld [vmem:[%s6 + $0x4] sm:$0xf]
        %v7004 = vld [vmem:[%s6 + $0x8] sm:$0xf]
        %v7005 = vld [vmem:[%s6 + $0xc] sm:$0xf]
        %v7006 = vld [vmem:[%s6 + $0x10] sm:$0xf]
        %v7007 = vld [vmem:[%s6 + $0x14] sm:$0xf]
        %v7008 = vld [vmem:[%s6 + $0x18] sm:$0xf]
        %v7009 = vld [vmem:[%s6 + $0x1c] sm:$0xf]
        %v7010 = vld [vmem:[%s6 + $0x20] sm:$0xf]
        %v7011 = vld [vmem:[%s6 + $0x24] sm:$0xf]
        %v7012 = vld [vmem:[%s6 + $0x28] sm:$0xf]
        %v7013 = vld [vmem:[%s6 + $0x2c] sm:$0xf]
        %v7014 = vld [vmem:[%s6 + $0x30] sm:$0xf]
        %v7015 = vld [vmem:[%s6 + $0x34] sm:$0xf]
        %v7016 = vld [vmem:[%s6 + $0x38] sm:$0xf]
        %v7017 = vld [vmem:[%s6 + $0x3c] sm:$0xf]
        %v7018 = vld [vmem:[%s7] sm:$0x1]
        %v7020 = vperm.slane %v7018, 0
        %v7038 = vunpack.c.l.b16 %v7002
        %v7039 = vunpack.c.l.b16 %v7003
        %v7040 = vunpack.c.l.b16 %v7004
        %v7041 = vunpack.c.l.b16 %v7005
        %v7042 = vunpack.c.l.b16 %v7006
        %v7043 = vunpack.c.l.b16 %v7007
        %v7044 = vunpack.c.l.b16 %v7008
        %v7045 = vunpack.c.l.b16 %v7009
        %v7046 = vunpack.c.l.b16 %v7010
        %v7047 = vunpack.c.l.b16 %v7011
        %v7048 = vunpack.c.l.b16 %v7012
        %v7049 = vunpack.c.l.b16 %v7013
        %v7050 = vunpack.c.l.b16 %v7014
        %v7051 = vunpack.c.l.b16 %v7015
        %v7052 = vunpack.c.l.b16 %v7016
        %v7053 = vunpack.c.l.b16 %v7017
        %v7054 = vpack.c.b16 %v7039, %v7038
        %v7055 = vpack.c.b16 %v7041, %v7040
        %v7056 = vpack.c.b16 %v7043, %v7042
        %v7057 = vpack.c.b16 %v7045, %v7044
        %v7058 = vpack.c.b16 %v7047, %v7046
        %v7059 = vpack.c.b16 %v7049, %v7048
        %v7060 = vpack.c.b16 %v7051, %v7050
        %v7061 = vpack.c.b16 %v7053, %v7052
        %7070 = vmatpush.bf16.msra.mxu0 %v7061
        %7071 = vmatpush.bf16.msra.mxu0 %v7060
        %7072 = vmatpush.bf16.msra.mxu0 %v7059
        %7073 = vmatpush.bf16.msra.mxu0 %v7058
        %7074 = vmatpush.bf16.msra.mxu0 %v7057
        %7075 = vmatpush.bf16.msra.mxu0 %v7056
        %7076 = vmatpush.bf16.msra.mxu0 %v7055
        %7077 = vmatpush.bf16.msra.mxu0 %v7054
        %7078 = vmatmul.bf16.gmra.mxu0 %v7001
        %v7079 = vpop.f32.mrf.mxu0
        %v7080 = vadd.f32 %v7020, %v7079
        %v7081 = vpop.f32.mrf.mxu0
        %7082 = vdwg.mxu0
        %v7083 = vmax.f32 %v7080, 0.0
        %7084 = vst [vmem:[%s332] sm:$0xf] %v7083
        %s7085 = sand.u32 %s224, 1
        %s7086 = scalar_lea.sflag [#allocation4], %s7085
        %s7087 = sand.u32 %s224, 1
        %s7088 = smul.addr %s7087, 4
        %s7089 = scalar_lea.vmem [#allocation3], %s7088
        // Predicated region
        $region57: #{pva_box_feature_extractor.1} parent=51 // pred_check
          %p7090 = pneg %p234
        $region58: #{pva_box_feature_extractor.1} parent=51 // pred_check_branch
          %7092 = sbr.rel (%p7090) target = $region60
        $region59: #{pva_box_feature_extractor.1} parent=51 // pred_region
          %s7093 = sadd.s32 %s26, %s27
          %7095 = vsyncadd %s7086, 0
          %s7096 = smul.addr %s7093, 4
          %s7097 = scalar_lea.hbm %s8, %s7096
          %s7099 = sshll.u32 %s7089, 4
          %s7100 = int_to_ptr.vmem [resolvable:$true] %s7099
          %s7101 = sshll.u32 %s7097, 4
          %s7102 = int_to_ptr.hbm [resolvable:$true] %s7101
          %7104 = dma.vmem_to_hbm [thread:$0]  %s7100, 64, %s7102, %s7086
        $region60: #{pva_box_feature_extractor.1} parent=51 // pred_fallthru
          _
      $region52: #{pva_box_feature_extractor.1} parent=5 // pred_fallthru
        _
      %p7105 = scmp.le.s32.totalorder 2, %s17
      // Predicated region
      $region61: #{pva_box_feature_extractor.1} parent=5 // pred_check
        %p7106 = pneg %p7105
      $region62: #{pva_box_feature_extractor.1} parent=5 // pred_check_branch
        %7108 = sbr.rel (%p7106) target = $region64
      $region63: #{pva_box_feature_extractor.1} parent=5 // pred_region
        %s7109 = ssub.s32 %s17, 2
        // Predicated region
        $region65: #{pva_box_feature_extractor.1} parent=63 // pred_check
          %p7110 = pneg %p240
        $region66: #{pva_box_feature_extractor.1} parent=63 // pred_check_branch
          %7112 = sbr.rel (%p7110) target = $region68
        $region67: #{pva_box_feature_extractor.1} parent=63 // pred_region
          %s7113 = sand.u32 %s225, 1
          %s7114 = scalar_lea.sflag [#allocation4], %s7113
          %s7115 = sand.u32 %s225, 1
          %s7116 = smul.addr %s7115, 4
          %s7117 = scalar_lea.vmem [#allocation3], %s7116
          %7119 = dma.done %s7114, 64
        $region68: #{pva_box_feature_extractor.1} parent=63 // pred_fallthru
          _
      $region64: #{pva_box_feature_extractor.1} parent=5 // pred_fallthru
        _
    $region6: #{pva_box_feature_extractor.1} parent=1 // loop_footer
      %s21 = sadd.s32 1, %s17
    $region7: #{pva_box_feature_extractor.1} parent=1 // loop_footer_branch
      %16 = sbr.rel target = $region3
    $region8: #{pva_box_feature_extractor.1} parent=1 // loop_exit
      _
    %7120 = vsyncpa [#allocation4], 1
    %s7121 = scalar_lea.sflag [#allocation4], 1
    %7122 = vsyncpa %s7121, 1

</llo_original>
